<compile_context>
chip_gen: v5e
topology: v5e:2x2
jax: 0.10.0
libtpu: 0.0.40
codegen_flags: <defaults>
</compile_context>

<pallas_src>
import functools
import math

import jax
import jax.numpy as jnp
import numpy as np
from jax.experimental import pallas as pl
from jax.experimental.pallas import tpu as pltpu

f32 = jnp.float32
bf16 = jnp.bfloat16


# ---------------------------------------------------------------------------
# Fused kernel (one grid step per batch element)
# ---------------------------------------------------------------------------
def make_kernel(num_layers, cin, cout, num_heads, W, S, tq):
    E = cout
    hd = E // num_heads
    scale = 1.0 / math.sqrt(hd)
    NFIX = 8
    NPER = 17
    if S % tq != 0:
        tq = S
    offs = [dh * W + dw for dh in (-1, 0, 1) for dw in (-1, 0, 1)]

    def mm(a, b):
        # bf16 MXU operands, f32 accumulation. astype is a no-op for bf16 inputs.
        return jnp.dot(a.astype(bf16), b.astype(bf16), preferred_element_type=f32)

    def silu(v):
        return v * jax.nn.sigmoid(v)

    def kernel(*refs):
        (upP_ref, down_ref, upw_ref, upb_ref, sel_ref, gin_ref, gout_ref,
         mask_ref) = refs[:NFIX]
        out_ref = refs[-1]
        lrefs = refs[NFIX:-1]

        # (9, S) conv-tap validity mask, expanded once per channel count so each conv
        # applies it with a single VPU multiply on the whole patch matrix.
        mask9 = mask_ref[...]
        masks = {}
        for C in sorted({cin, cout}):
            masks[C] = jnp.broadcast_to(mask9[:, None, :], (9, C, S)).reshape(9 * C, S)

        def gnorm(x, wb_ref, gm_ref):
            # Per-channel lane reductions first, then a tiny exact f32 group aggregation.
            ssum = jnp.sum(x, axis=1, keepdims=True)                    # (C, 1)
            ssq = jnp.sum(x * x, axis=1, keepdims=True)                 # (C, 1)
            stats = jnp.dot(gm_ref[...], jnp.concatenate([ssum, ssq], axis=1),
                            precision=jax.lax.Precision.HIGHEST,
                            preferred_element_type=f32)                 # (C, 2)
            mean = stats[:, 0:1]
            var = jnp.maximum(stats[:, 1:2] - mean * mean, 0.0)
            inv = jax.lax.rsqrt(var + 1e-5)
            wb = wb_ref[...]
            return (x - mean) * (inv * wb[:, 0:1]) + wb[:, 1:2]

        def conv3x3(x, w_ref, b_ref):
            # Circular lane rolls are exact because the mask zeroes every wrapped /
            # out-of-image tap position.
            C = x.shape[0]
            taps = [x if o == 0 else pltpu.roll(x, shift=(-o) % S, axis=1)
                    for o in offs]
            patches = jnp.concatenate(taps, axis=0) * masks[C]          # (9C, S)
            return mm(w_ref[...], patches) + b_ref[...]

        # ---- Upsample: ConvTranspose2d(4,2,1), parity-decomposed (4 taps / pixel) ----
        upP = upP_ref[0]                                                # (4*Cup, S) bf16
        up = upb_ref[...]                                               # (Cup, 1)
        for pc in range(4):
            up = up + mm(upw_ref[pc], upP) * sel_ref[pc]                # parity select
        cur = jnp.concatenate([up, down_ref[0]], axis=0)                # (Cin, S)

        for l in range(num_layers):
            (gn1_ref, c1w_ref, c1b_ref, te_ref, gn2_ref, c2w_ref, c2b_ref,
             rw_ref, rb_ref, agn_ref, wq_ref, bq_ref, wk_ref, bk_ref,
             wvp_ref, bvp_ref, opb_ref) = lrefs[l * NPER:(l + 1) * NPER]
            gm1 = gin_ref if l == 0 else gout_ref
            resnet_in = cur

            # Resnet branch: GN+SiLU+conv3x3 (+t_emb), GN+SiLU+conv3x3, + 1x1 residual.
            h1 = conv3x3(silu(gnorm(cur, gn1_ref, gm1)), c1w_ref, c1b_ref)
            h1 = h1 + te_ref[0]                                         # (Cout,1) bcast
            h2 = conv3x3(silu(gnorm(h1, gn2_ref, gout_ref)), c2w_ref, c2b_ref)
            cur = h2 + mm(rw_ref[...], resnet_in) + rb_ref[...]

            # Self-attention: query-on-lanes orientation (all channel-major), output
            # projection folded into V, softmax tiled over query chunks of tq.
            a = gnorm(cur, agn_ref, gout_ref)                           # (E, S)
            a_bf = a.astype(bf16)
            qs, kts, vps = [], [], []
            for hh in range(num_heads):
                q_h = mm(wq_ref[hh], a_bf) + bq_ref[hh]                 # (hd, S)
                k_h = mm(wk_ref[hh], a_bf) + bk_ref[hh]                 # (hd, S)
                vp_h = mm(wvp_ref[hh], a_bf) + bvp_ref[hh]              # (E, S)
                qs.append(q_h.astype(bf16))
                kts.append(k_h.T.astype(bf16))                          # (S, hd)
                vps.append(vp_h.astype(bf16))
            chunk_outs = []
            for c0 in range(0, S, tq):
                acc = jnp.zeros((E, tq), f32)
                for hh in range(num_heads):
                    sT = mm(kts[hh], qs[hh][:, c0:c0 + tq]) * scale     # (S, tq)
                    mx = jnp.max(sT, axis=0, keepdims=True)
                    p = jnp.exp(sT - mx)
                    den = jnp.sum(p, axis=0, keepdims=True)
                    p = p * pl.reciprocal(den, approx=True)             # EUP recip
                    acc = acc + mm(vps[hh], p)                          # (E, tq)
                chunk_outs.append(acc)
            cur = cur + jnp.concatenate(chunk_outs, axis=1) + opb_ref[...]
            # TODO(synk): cross_attn path not implemented (cross_attn=False in config).

        out_ref[0] = cur

    return kernel


# ---------------------------------------------------------------------------
# Wrapper: host-side layout prep (tiny XLA ops) + single pallas_call
# ---------------------------------------------------------------------------
def upblock_forward(params, x, out_down, t_emb, cfg):
    Cin = cfg["in_channels"]
    Cout = cfg["out_channels"]
    G = cfg["norm_channels"]
    nH = cfg["num_heads"]
    L = cfg["num_layers"]
    E = Cout
    hd = E // nH

    B, Cup, H0, W0 = x.shape
    H, W = 2 * H0, 2 * W0
    S = H * W

    # ---- ConvTranspose2d(4,2,1): parity-decomposed im2col (4 taps / output pixel) ----
    p_i = np.arange(S) // W
    q_i = np.arange(S) % W
    a_i, pp = p_i // 2, p_i % 2
    b_i, qq = q_i // 2, q_i % 2
    xpad = jnp.pad(x, ((0, 0), (0, 0), (1, 1), (1, 1)))
    slots = []
    for di in (0, 1):
        ii = np.where(pp == 0, a_i - di, a_i + di) + 1
        for dj in (0, 1):
            jj = np.where(qq == 0, b_i - dj, b_i + dj) + 1
            slots.append(xpad[:, :, ii, jj])                            # (B, Cup, S)
    upP4 = jnp.concatenate(slots, axis=1).astype(bf16)                  # (B, 4*Cup, S)

    w_up = params["up_w"]                                               # (Cup, Cup, 4, 4)
    ktab = ((1, 3), (2, 0))                                             # kernel idx [parity][slot]
    wall = []
    for pc in range(4):
        ppc, qqc = pc // 2, pc % 2
        blk = [w_up[:, :, ktab[ppc][di], ktab[qqc][dj]].T               # (out, in)
               for di in (0, 1) for dj in (0, 1)]
        wall.append(jnp.concatenate(blk, axis=1))                       # (Cup, 4*Cup)
    up_wall = jnp.stack(wall, axis=0).astype(bf16)                      # (4, Cup, 4*Cup)
    up_b = params["up_b"].reshape(Cup, 1)

    pc_of_s = 2 * pp + qq
    sel = jnp.asarray((pc_of_s[None, :] == np.arange(4)[:, None])
                      .astype(np.float32)).reshape(4, 1, S)             # parity one-hot

    down_r = out_down.reshape(B, Cup, S).astype(f32)

    # Group-aggregation matrices for GroupNorm (1/(group_size*S) folded in).
    def gmat_for(C):
        cg = C // G
        m = np.zeros((C, C), np.float32)
        for c in range(C):
            g0 = (c // cg) * cg
            m[c, g0:g0 + cg] = 1.0 / (cg * S)
        return jnp.asarray(m)

    gmat_in, gmat_out = gmat_for(Cin), gmat_for(Cout)

    # 3x3 conv tap-validity mask over the flattened spatial axis.
    rr = np.arange(S) // W
    cc = np.arange(S) % W
    m9 = [((rr + dh >= 0) & (rr + dh < H) & (cc + dw >= 0) & (cc + dw < W)
           ).astype(np.float32)
          for dh in (-1, 0, 1) for dw in (-1, 0, 1)]
    mask9 = jnp.asarray(np.stack(m9, axis=0))                           # (9, S) f32

    inputs = [upP4, down_r, up_wall, up_b, sel, gmat_in, gmat_out, mask9]

    def fullspec(shape):
        if len(shape) == 2:
            return pl.BlockSpec(shape, lambda b: (0, 0))
        return pl.BlockSpec(shape, lambda b: (0, 0, 0))

    in_specs = [
        pl.BlockSpec((1, 4 * Cup, S), lambda b: (b, 0, 0)),
        pl.BlockSpec((1, Cup, S), lambda b: (b, 0, 0)),
        fullspec((4, Cup, 4 * Cup)),
        fullspec((Cup, 1)),
        fullspec((4, 1, S)),
        fullspec((Cin, Cin)),
        fullspec((Cout, Cout)),
        fullspec((9, S)),
    ]

    silu = lambda v: v * jax.nn.sigmoid(v)
    for i in range(L):
        p = params["layers"][i]
        ci = Cin if i == 0 else Cout
        # Time-embedding MLP (SiLU + Linear) is a tiny per-batch GEMM left to XLA;
        # the broadcast add itself is fused into the kernel's conv1 epilogue.
        te = (silu(t_emb) @ p["t_w"].T + p["t_b"]).reshape(B, Cout, 1)

        ipw, ipb, opw = p["in_proj_w"], p["in_proj_b"], p["op_w"]
        wq = jnp.stack([ipw[h * hd:(h + 1) * hd, :] for h in range(nH)], 0)
        bq = jnp.stack([ipb[h * hd:(h + 1) * hd].reshape(hd, 1) for h in range(nH)], 0)
        wk = jnp.stack([ipw[E + h * hd:E + (h + 1) * hd, :] for h in range(nH)], 0)
        bk = jnp.stack([ipb[E + h * hd:E + (h + 1) * hd].reshape(hd, 1)
                        for h in range(nH)], 0)
        # Fold the output projection into V (on the weights, in f32).
        wvp = jnp.stack([opw[:, h * hd:(h + 1) * hd]
                         @ ipw[2 * E + h * hd:2 * E + (h + 1) * hd, :]
                         for h in range(nH)], 0)
        bvp = jnp.stack([(opw[:, h * hd:(h + 1) * hd]
                          @ ipb[2 * E + h * hd:2 * E + (h + 1) * hd]).reshape(E, 1)
                         for h in range(nH)], 0)

        inputs += [
            jnp.stack([p["gn1_w"], p["gn1_b"]], axis=1),
            jnp.transpose(p["conv1_w"], (0, 2, 3, 1)).reshape(Cout, 9 * ci).astype(bf16),
            p["conv1_b"].reshape(Cout, 1),
            te,
            jnp.stack([p["gn2_w"], p["gn2_b"]], axis=1),
            jnp.transpose(p["conv2_w"], (0, 2, 3, 1)).reshape(Cout, 9 * Cout).astype(bf16),
            p["conv2_b"].reshape(Cout, 1),
            p["res_w"].reshape(Cout, ci).astype(bf16),
            p["res_b"].reshape(Cout, 1),
            jnp.stack([p["agn_w"], p["agn_b"]], axis=1),
            wq.astype(bf16), bq, wk.astype(bf16), bk, wvp.astype(bf16), bvp,
            p["op_b"].reshape(E, 1),
        ]
        in_specs += [
            fullspec((ci, 2)),
            fullspec((Cout, 9 * ci)),
            fullspec((Cout, 1)),
            pl.BlockSpec((1, Cout, 1), lambda b: (b, 0, 0)),
            fullspec((Cout, 2)),
            fullspec((Cout, 9 * Cout)),
            fullspec((Cout, 1)),
            fullspec((Cout, ci)),
            fullspec((Cout, 1)),
            fullspec((Cout, 2)),
            fullspec((nH, hd, E)),
            fullspec((nH, hd, 1)),
            fullspec((nH, hd, E)),
            fullspec((nH, hd, 1)),
            fullspec((nH, E, E)),
            fullspec((nH, E, 1)),
            fullspec((E, 1)),
        ]

    kernel = make_kernel(L, Cin, Cout, nH, W, S, tq=128)
    out = pl.pallas_call(
        kernel,
        out_shape=jax.ShapeDtypeStruct((B, Cout, S), f32),
        grid=(B,),
        in_specs=in_specs,
        out_specs=pl.BlockSpec((1, Cout, S), lambda b: (b, 0, 0)),
        compiler_params=pltpu.CompilerParams(dimension_semantics=("parallel",)),
    )(*inputs)
    return out.reshape(B, Cout, H, W)


# ---------------------------------------------------------------------------
# Pure-JAX reference (PyTorch semantics) for the correctness check
# ---------------------------------------------------------------------------
def ref_forward(params, x, out_down, t_emb, cfg):
    G = cfg["norm_channels"]
    nH = cfg["num_heads"]
    Cout = cfg["out_channels"]
    P = jax.lax.Precision.HIGHEST

    def conv(x, w, b, pad):
        y = jax.lax.conv_general_dilated(
            x, w, (1, 1), [(pad, pad), (pad, pad)],
            dimension_numbers=("NCHW", "OIHW", "NCHW"), precision=P)
        return y + b[None, :, None, None]

    def convT(x, w, b):
        wf = jnp.transpose(w[:, :, ::-1, ::-1], (1, 0, 2, 3))
        y = jax.lax.conv_general_dilated(
            x, wf, (1, 1), [(2, 2), (2, 2)], lhs_dilation=(2, 2),
            dimension_numbers=("NCHW", "OIHW", "NCHW"), precision=P)
        return y + b[None, :, None, None]

    def gn(x, g, bt, eps=1e-5):
        B, C = x.shape[:2]
        xr = x.reshape(B, G, -1)
        mu = xr.mean(-1, keepdims=True)
        var = ((xr - mu) ** 2).mean(-1, keepdims=True)
        xn = ((xr - mu) / jnp.sqrt(var + eps)).reshape(x.shape)
        shp = (1, C) + (1,) * (x.ndim - 2)
        return xn * g.reshape(shp) + bt.reshape(shp)

    def silu(x):
        return x * jax.nn.sigmoid(x)

    x = convT(x, params["up_w"], params["up_b"])
    out = jnp.concatenate([x, out_down], axis=1)
    for i in range(cfg["num_layers"]):
        p = params["layers"][i]
        rin = out
        B, C, H, W = out.shape
        h = conv(silu(gn(out, p["gn1_w"], p["gn1_b"])), p["conv1_w"], p["conv1_b"], 1)
        te = silu(t_emb) @ p["t_w"].T + p["t_b"]
        h = h + te[:, :, None, None]
        h = conv(silu(gn(h, p["gn2_w"], p["gn2_b"])), p["conv2_w"], p["conv2_b"], 1)
        out = h + conv(rin, p["res_w"], p["res_b"], 0)
        S = H * W
        ia = gn(out.reshape(B, Cout, S), p["agn_w"], p["agn_b"]).transpose(0, 2, 1)
        qkv = jnp.einsum("bse,fe->bsf", ia, p["in_proj_w"], precision=P) + p["in_proj_b"]
        E = Cout
        hd = E // nH
        q, k, v = qkv[..., :E], qkv[..., E:2 * E], qkv[..., 2 * E:]
        sp = lambda t: t.reshape(B, S, nH, hd).transpose(0, 2, 1, 3)
        q, k, v = sp(q), sp(k), sp(v)
        s = jnp.einsum("bhqd,bhkd->bhqk", q, k, precision=P) / jnp.sqrt(hd)
        pr = jax.nn.softmax(s, axis=-1)
        o = jnp.einsum("bhqk,bhkd->bhqd", pr, v, precision=P)
        o = o.transpose(0, 2, 1, 3).reshape(B, S, E)
        o = jnp.einsum("bse,fe->bsf", o, p["op_w"], precision=P) + p["op_b"]
        out = out + o.transpose(0, 2, 1).reshape(B, E, H, W)
    return out


# ---------------------------------------------------------------------------
# Deterministic parameters
# ---------------------------------------------------------------------------
def make_params(cfg):
    Cin, Cout, T = cfg["in_channels"], cfg["out_channels"], cfg["t_emb_dim"]
    ks = iter(jax.random.split(jax.random.PRNGKey(0), 128))

    def rn(shape, scale=0.1):
        return scale * jax.random.normal(next(ks), shape, jnp.float32)

    params = {
        "up_w": rn((Cin // 2, Cin // 2, 4, 4)),
        "up_b": rn((Cin // 2,)),
        "layers": [],
    }
    for i in range(cfg["num_layers"]):
        ci = Cin if i == 0 else Cout
        params["layers"].append({
            "gn1_w": 1.0 + rn((ci,)), "gn1_b": rn((ci,)),
            "conv1_w": rn((Cout, ci, 3, 3)), "conv1_b": rn((Cout,)),
            "t_w": rn((Cout, T)), "t_b": rn((Cout,)),
            "gn2_w": 1.0 + rn((Cout,)), "gn2_b": rn((Cout,)),
            "conv2_w": rn((Cout, Cout, 3, 3)), "conv2_b": rn((Cout,)),
            "agn_w": 1.0 + rn((Cout,)), "agn_b": rn((Cout,)),
            "in_proj_w": rn((3 * Cout, Cout)), "in_proj_b": rn((3 * Cout,)),
            "op_w": rn((Cout, Cout)), "op_b": rn((Cout,)),
            "res_w": rn((Cout, ci, 1, 1)), "res_b": rn((Cout,)),
        })
    return params


if __name__ == "__main__":
    cfg = dict(in_channels=8, out_channels=8, t_emb_dim=16, up_sample=True,
               num_heads=2, num_layers=1, norm_channels=4, cross_attn=False)
    params = make_params(cfg)

    key = jax.random.PRNGKey(0)
    k1, k2, k3 = jax.random.split(key, 3)
    x = jax.random.normal(k1, (2, cfg["in_channels"] // 2, 8, 8), jnp.float32)
    out_down = jax.random.normal(k2, (2, cfg["in_channels"] // 2, 16, 16), jnp.float32)
    t_emb = jax.random.normal(k3, (2, cfg["t_emb_dim"]), jnp.float32)

    fwd = jax.jit(functools.partial(upblock_forward, cfg=cfg))
    out = jax.block_until_ready(fwd(params, x, out_down, t_emb))

    ref = ref_forward(params, x, out_down, t_emb, cfg)
    err = float(jnp.max(jnp.abs(out - ref)))
    assert out.shape == (2, cfg["out_channels"], 16, 16), out.shape
    # bf16 MXU operands (f32 accumulate) + approx reciprocal vs f32 HIGHEST reference.
    assert np.isfinite(err) and err < 5e-2, f"mismatch vs reference: {err}"
    print("KERNEL_OK")
</pallas_src>

<mosaic_0001>
module attributes {stable_mosaic.version = 11 : i64} {
  func.func @kernel(%arg0: i32, %arg1: memref<1x16x256xbf16, #tpu.memory_space<vmem>>, %arg2: memref<1x4x256xf32, #tpu.memory_space<vmem>>, %arg3: memref<4x4x16xbf16, #tpu.memory_space<vmem>>, %arg4: memref<4x1xf32, #tpu.memory_space<vmem>>, %arg5: memref<4x1x256xf32, #tpu.memory_space<vmem>>, %arg6: memref<8x8xf32, #tpu.memory_space<vmem>>, %arg7: memref<8x8xf32, #tpu.memory_space<vmem>>, %arg8: memref<9x256xf32, #tpu.memory_space<vmem>>, %arg9: memref<8x2xf32, #tpu.memory_space<vmem>>, %arg10: memref<8x72xbf16, #tpu.memory_space<vmem>>, %arg11: memref<8x1xf32, #tpu.memory_space<vmem>>, %arg12: memref<1x8x1xf32, #tpu.memory_space<vmem>>, %arg13: memref<8x2xf32, #tpu.memory_space<vmem>>, %arg14: memref<8x72xbf16, #tpu.memory_space<vmem>>, %arg15: memref<8x1xf32, #tpu.memory_space<vmem>>, %arg16: memref<8x8xbf16, #tpu.memory_space<vmem>>, %arg17: memref<8x1xf32, #tpu.memory_space<vmem>>, %arg18: memref<8x2xf32, #tpu.memory_space<vmem>>, %arg19: memref<2x4x8xbf16, #tpu.memory_space<vmem>>, %arg20: memref<2x4x1xf32, #tpu.memory_space<vmem>>, %arg21: memref<2x4x8xbf16, #tpu.memory_space<vmem>>, %arg22: memref<2x4x1xf32, #tpu.memory_space<vmem>>, %arg23: memref<2x8x8xbf16, #tpu.memory_space<vmem>>, %arg24: memref<2x8x1xf32, #tpu.memory_space<vmem>>, %arg25: memref<8x1xf32, #tpu.memory_space<vmem>>, %arg26: memref<1x8x256xf32, #tpu.memory_space<vmem>>) attributes {dimension_semantics = [#tpu.dimension_semantics<parallel>], iteration_bounds = array<i64: 2>, scalar_prefetch = 0 : i64, scratch_operands = 0 : i64, tpu.core_type = #tpu.core_type<tc>, window_params = [{transform_indices = @transform_0, window_bounds = array<i64: 1, 16, 256>}, {transform_indices = @transform_1, window_bounds = array<i64: 1, 4, 256>}, {pipeline_mode = #tpu.pipeline_mode<synchronous>, transform_indices = @transform_2, window_bounds = array<i64: 4, 4, 16>}, {pipeline_mode = #tpu.pipeline_mode<synchronous>, transform_indices = @transform_3, window_bounds = array<i64: 4, 1>}, {pipeline_mode = #tpu.pipeline_mode<synchronous>, transform_indices = @transform_4, window_bounds = array<i64: 4, 1, 256>}, {pipeline_mode = #tpu.pipeline_mode<synchronous>, transform_indices = @transform_5, window_bounds = array<i64: 8, 8>}, {pipeline_mode = #tpu.pipeline_mode<synchronous>, transform_indices = @transform_6, window_bounds = array<i64: 8, 8>}, {pipeline_mode = #tpu.pipeline_mode<synchronous>, transform_indices = @transform_7, window_bounds = array<i64: 9, 256>}, {pipeline_mode = #tpu.pipeline_mode<synchronous>, transform_indices = @transform_8, window_bounds = array<i64: 8, 2>}, {pipeline_mode = #tpu.pipeline_mode<synchronous>, transform_indices = @transform_9, window_bounds = array<i64: 8, 72>}, {pipeline_mode = #tpu.pipeline_mode<synchronous>, transform_indices = @transform_10, window_bounds = array<i64: 8, 1>}, {transform_indices = @transform_11, window_bounds = array<i64: 1, 8, 1>}, {pipeline_mode = #tpu.pipeline_mode<synchronous>, transform_indices = @transform_12, window_bounds = array<i64: 8, 2>}, {pipeline_mode = #tpu.pipeline_mode<synchronous>, transform_indices = @transform_13, window_bounds = array<i64: 8, 72>}, {pipeline_mode = #tpu.pipeline_mode<synchronous>, transform_indices = @transform_14, window_bounds = array<i64: 8, 1>}, {pipeline_mode = #tpu.pipeline_mode<synchronous>, transform_indices = @transform_15, window_bounds = array<i64: 8, 8>}, {pipeline_mode = #tpu.pipeline_mode<synchronous>, transform_indices = @transform_16, window_bounds = array<i64: 8, 1>}, {pipeline_mode = #tpu.pipeline_mode<synchronous>, transform_indices = @transform_17, window_bounds = array<i64: 8, 2>}, {pipeline_mode = #tpu.pipeline_mode<synchronous>, transform_indices = @transform_18, window_bounds = array<i64: 2, 4, 8>}, {pipeline_mode = #tpu.pipeline_mode<synchronous>, transform_indices = @transform_19, window_bounds = array<i64: 2, 4, 1>}, {pipeline_mode = #tpu.pipeline_mode<synchronous>, transform_indices = @transform_20, window_bounds = array<i64: 2, 4, 8>}, {pipeline_mode = #tpu.pipeline_mode<synchronous>, transform_indices = @transform_21, window_bounds = array<i64: 2, 4, 1>}, {pipeline_mode = #tpu.pipeline_mode<synchronous>, transform_indices = @transform_22, window_bounds = array<i64: 2, 8, 8>}, {pipeline_mode = #tpu.pipeline_mode<synchronous>, transform_indices = @transform_23, window_bounds = array<i64: 2, 8, 1>}, {pipeline_mode = #tpu.pipeline_mode<synchronous>, transform_indices = @transform_24, window_bounds = array<i64: 8, 1>}, {transform_indices = @transform_25, window_bounds = array<i64: 1, 8, 256>}]} {
    %c0 = arith.constant 0 : index
    %c0_0 = arith.constant 0 : index
    %0 = vector.load %arg8[%c0, %c0_0] : memref<9x256xf32, #tpu.memory_space<vmem>>, vector<9x256xf32>
    %1 = vector.shape_cast %0 : vector<9x256xf32> to vector<9x1x256xf32>
    %2 = vector.shape_cast %1 : vector<9x1x256xf32> to vector<9x1x256xf32>
    %3 = vector.broadcast %2 : vector<9x1x256xf32> to vector<9x8x256xf32>
    %4 = vector.shape_cast %3 : vector<9x8x256xf32> to vector<72x256xf32>
    %c0_1 = arith.constant 0 : index
    %c0_2 = arith.constant 0 : index
    %c0_3 = arith.constant 0 : index
    %5 = vector.load %arg1[%c0_1, %c0_2, %c0_3] : memref<1x16x256xbf16, #tpu.memory_space<vmem>>, vector<1x16x256xbf16>
    %6 = vector.shape_cast %5 : vector<1x16x256xbf16> to vector<16x256xbf16>
    %c0_4 = arith.constant 0 : index
    %c0_5 = arith.constant 0 : index
    %7 = vector.load %arg4[%c0_4, %c0_5] : memref<4x1xf32, #tpu.memory_space<vmem>>, vector<4x1xf32>
    %c0_6 = arith.constant 0 : index
    %c0_7 = arith.constant 0 : index
    %c0_8 = arith.constant 0 : index
    %8 = vector.load %arg3[%c0_6, %c0_7, %c0_8] : memref<4x4x16xbf16, #tpu.memory_space<vmem>>, vector<1x4x16xbf16>
    %9 = vector.shape_cast %8 : vector<1x4x16xbf16> to vector<4x16xbf16>
    %cst = arith.constant dense<0.000000e+00> : vector<4x256xf32>
    %10 = tpu.matmul %9, %6, %cst {dimension_numbers = #tpu.dot_dimension_numbers<[1], [0], [0], [1], [0, 0, 1, 1], [], []>} : vector<4x16xbf16>, vector<16x256xbf16>, vector<4x256xf32> -> vector<4x256xf32>
    %c0_9 = arith.constant 0 : index
    %c0_10 = arith.constant 0 : index
    %c0_11 = arith.constant 0 : index
    %11 = vector.load %arg5[%c0_9, %c0_10, %c0_11] : memref<4x1x256xf32, #tpu.memory_space<vmem>>, vector<1x1x256xf32>
    %12 = vector.shape_cast %11 : vector<1x1x256xf32> to vector<1x256xf32>
    %13 = vector.broadcast %12 : vector<1x256xf32> to vector<4x256xf32>
    %14 = arith.mulf %10, %13 : vector<4x256xf32>
    %15 = vector.broadcast %7 : vector<4x1xf32> to vector<4x256xf32>
    %16 = arith.addf %15, %14 : vector<4x256xf32>
    %c1 = arith.constant 1 : index
    %c0_12 = arith.constant 0 : index
    %c0_13 = arith.constant 0 : index
    %17 = vector.load %arg3[%c1, %c0_12, %c0_13] : memref<4x4x16xbf16, #tpu.memory_space<vmem>>, vector<1x4x16xbf16>
    %18 = vector.shape_cast %17 : vector<1x4x16xbf16> to vector<4x16xbf16>
    %cst_14 = arith.constant dense<0.000000e+00> : vector<4x256xf32>
    %19 = tpu.matmul %18, %6, %cst_14 {dimension_numbers = #tpu.dot_dimension_numbers<[1], [0], [0], [1], [0, 0, 1, 1], [], []>} : vector<4x16xbf16>, vector<16x256xbf16>, vector<4x256xf32> -> vector<4x256xf32>
    %c1_15 = arith.constant 1 : index
    %c0_16 = arith.constant 0 : index
    %c0_17 = arith.constant 0 : index
    %20 = vector.load %arg5[%c1_15, %c0_16, %c0_17] : memref<4x1x256xf32, #tpu.memory_space<vmem>>, vector<1x1x256xf32>
    %21 = vector.shape_cast %20 : vector<1x1x256xf32> to vector<1x256xf32>
    %22 = vector.broadcast %21 : vector<1x256xf32> to vector<4x256xf32>
    %23 = arith.mulf %19, %22 : vector<4x256xf32>
    %24 = arith.addf %16, %23 : vector<4x256xf32>
    %c2 = arith.constant 2 : index
    %c0_18 = arith.constant 0 : index
    %c0_19 = arith.constant 0 : index
    %25 = vector.load %arg3[%c2, %c0_18, %c0_19] : memref<4x4x16xbf16, #tpu.memory_space<vmem>>, vector<1x4x16xbf16>
    %26 = vector.shape_cast %25 : vector<1x4x16xbf16> to vector<4x16xbf16>
    %cst_20 = arith.constant dense<0.000000e+00> : vector<4x256xf32>
    %27 = tpu.matmul %26, %6, %cst_20 {dimension_numbers = #tpu.dot_dimension_numbers<[1], [0], [0], [1], [0, 0, 1, 1], [], []>} : vector<4x16xbf16>, vector<16x256xbf16>, vector<4x256xf32> -> vector<4x256xf32>
    %c2_21 = arith.constant 2 : index
    %c0_22 = arith.constant 0 : index
    %c0_23 = arith.constant 0 : index
    %28 = vector.load %arg5[%c2_21, %c0_22, %c0_23] : memref<4x1x256xf32, #tpu.memory_space<vmem>>, vector<1x1x256xf32>
    %29 = vector.shape_cast %28 : vector<1x1x256xf32> to vector<1x256xf32>
    %30 = vector.broadcast %29 : vector<1x256xf32> to vector<4x256xf32>
    %31 = arith.mulf %27, %30 : vector<4x256xf32>
    %32 = arith.addf %24, %31 : vector<4x256xf32>
    %c3 = arith.constant 3 : index
    %c0_24 = arith.constant 0 : index
    %c0_25 = arith.constant 0 : index
    %33 = vector.load %arg3[%c3, %c0_24, %c0_25] : memref<4x4x16xbf16, #tpu.memory_space<vmem>>, vector<1x4x16xbf16>
    %34 = vector.shape_cast %33 : vector<1x4x16xbf16> to vector<4x16xbf16>
    %cst_26 = arith.constant dense<0.000000e+00> : vector<4x256xf32>
    %35 = tpu.matmul %34, %6, %cst_26 {dimension_numbers = #tpu.dot_dimension_numbers<[1], [0], [0], [1], [0, 0, 1, 1], [], []>} : vector<4x16xbf16>, vector<16x256xbf16>, vector<4x256xf32> -> vector<4x256xf32>
    %c3_27 = arith.constant 3 : index
    %c0_28 = arith.constant 0 : index
    %c0_29 = arith.constant 0 : index
    %36 = vector.load %arg5[%c3_27, %c0_28, %c0_29] : memref<4x1x256xf32, #tpu.memory_space<vmem>>, vector<1x1x256xf32>
    %37 = vector.shape_cast %36 : vector<1x1x256xf32> to vector<1x256xf32>
    %38 = vector.broadcast %37 : vector<1x256xf32> to vector<4x256xf32>
    %39 = arith.mulf %35, %38 : vector<4x256xf32>
    %40 = arith.addf %32, %39 : vector<4x256xf32>
    %c0_30 = arith.constant 0 : index
    %c0_31 = arith.constant 0 : index
    %c0_32 = arith.constant 0 : index
    %41 = vector.load %arg2[%c0_30, %c0_31, %c0_32] : memref<1x4x256xf32, #tpu.memory_space<vmem>>, vector<1x4x256xf32>
    %42 = vector.shape_cast %41 : vector<1x4x256xf32> to vector<4x256xf32>
    %43 = tpu.concatenate %40, %42 in 0 : vector<4x256xf32>, vector<4x256xf32> -> vector<8x256xf32>
    %cst_33 = arith.constant dense<0.000000e+00> : vector<8xf32>
    %44 = vector.multi_reduction <add>, %43, %cst_33 [1] : vector<8x256xf32> to vector<8xf32>
    %45 = vector.shape_cast %44 : vector<8xf32> to vector<8x1xf32>
    %46 = arith.mulf %43, %43 : vector<8x256xf32>
    %cst_34 = arith.constant dense<0.000000e+00> : vector<8xf32>
    %47 = vector.multi_reduction <add>, %46, %cst_34 [1] : vector<8x256xf32> to vector<8xf32>
    %48 = vector.shape_cast %47 : vector<8xf32> to vector<8x1xf32>
    %c0_35 = arith.constant 0 : index
    %c0_36 = arith.constant 0 : index
    %49 = vector.load %arg6[%c0_35, %c0_36] : memref<8x8xf32, #tpu.memory_space<vmem>>, vector<8x8xf32>
    %50 = tpu.concatenate %45, %48 in 1 : vector<8x1xf32>, vector<8x1xf32> -> vector<8x2xf32>
    %cst_37 = arith.constant dense<0.000000e+00> : vector<8x2xf32>
    %51 = tpu.matmul %49, %50, %cst_37 {dimension_numbers = #tpu.dot_dimension_numbers<[1], [0], [0], [1], [0, 0, 1, 1], [], []>, precision = #tpu.contract_precision<fp32>} : vector<8x8xf32>, vector<8x2xf32>, vector<8x2xf32> -> vector<8x2xf32>
    %52 = vector.extract_strided_slice %51 {offsets = [0, 0], sizes = [8, 1], strides = [1, 1]} : vector<8x2xf32> to vector<8x1xf32>
    %53 = vector.extract_strided_slice %51 {offsets = [0, 1], sizes = [8, 1], strides = [1, 1]} : vector<8x2xf32> to vector<8x1xf32>
    %54 = arith.mulf %52, %52 : vector<8x1xf32>
    %55 = arith.subf %53, %54 : vector<8x1xf32>
    %cst_38 = arith.constant 0.000000e+00 : f32
    %56 = vector.broadcast %cst_38 : f32 to vector<8x1xf32>
    %57 = arith.maximumf %55, %56 : vector<8x1xf32>
    %cst_39 = arith.constant 9.99999974E-6 : f32
    %58 = vector.broadcast %cst_39 : f32 to vector<8x1xf32>
    %59 = arith.addf %57, %58 : vector<8x1xf32>
    %60 = math.rsqrt %59 : vector<8x1xf32>
    %c0_40 = arith.constant 0 : index
    %c0_41 = arith.constant 0 : index
    %61 = vector.load %arg9[%c0_40, %c0_41] : memref<8x2xf32, #tpu.memory_space<vmem>>, vector<8x2xf32>
    %62 = vector.broadcast %52 : vector<8x1xf32> to vector<8x256xf32>
    %63 = arith.subf %43, %62 : vector<8x256xf32>
    %64 = vector.extract_strided_slice %61 {offsets = [0, 0], sizes = [8, 1], strides = [1, 1]} : vector<8x2xf32> to vector<8x1xf32>
    %65 = arith.mulf %60, %64 : vector<8x1xf32>
    %66 = vector.broadcast %65 : vector<8x1xf32> to vector<8x256xf32>
    %67 = arith.mulf %63, %66 : vector<8x256xf32>
    %68 = vector.extract_strided_slice %61 {offsets = [0, 1], sizes = [8, 1], strides = [1, 1]} : vector<8x2xf32> to vector<8x1xf32>
    %69 = vector.broadcast %68 : vector<8x1xf32> to vector<8x256xf32>
    %70 = arith.addf %67, %69 : vector<8x256xf32>
    %71 = arith.negf %70 : vector<8x256xf32>
    %72 = math.exp %71 : vector<8x256xf32>
    %cst_42 = arith.constant 1.000000e+00 : f32
    %73 = vector.broadcast %cst_42 : f32 to vector<8x256xf32>
    %74 = arith.addf %73, %72 : vector<8x256xf32>
    %75 = arith.divf %73, %74 : vector<8x256xf32>
    %76 = arith.mulf %70, %75 : vector<8x256xf32>
    %c17_i32 = arith.constant 17 : i32
    %77 = tpu.dynamic_rotate %76 by %c17_i32 dim 1 : vector<8x256xf32>, i32 -> vector<8x256xf32>
    %c16_i32 = arith.constant 16 : i32
    %78 = tpu.dynamic_rotate %76 by %c16_i32 dim 1 : vector<8x256xf32>, i32 -> vector<8x256xf32>
    %c15_i32 = arith.constant 15 : i32
    %79 = tpu.dynamic_rotate %76 by %c15_i32 dim 1 : vector<8x256xf32>, i32 -> vector<8x256xf32>
    %c1_i32 = arith.constant 1 : i32
    %80 = tpu.dynamic_rotate %76 by %c1_i32 dim 1 : vector<8x256xf32>, i32 -> vector<8x256xf32>
    %c255_i32 = arith.constant 255 : i32
    %81 = tpu.dynamic_rotate %76 by %c255_i32 dim 1 : vector<8x256xf32>, i32 -> vector<8x256xf32>
    %c241_i32 = arith.constant 241 : i32
    %82 = tpu.dynamic_rotate %76 by %c241_i32 dim 1 : vector<8x256xf32>, i32 -> vector<8x256xf32>
    %c240_i32 = arith.constant 240 : i32
    %83 = tpu.dynamic_rotate %76 by %c240_i32 dim 1 : vector<8x256xf32>, i32 -> vector<8x256xf32>
    %c239_i32 = arith.constant 239 : i32
    %84 = tpu.dynamic_rotate %76 by %c239_i32 dim 1 : vector<8x256xf32>, i32 -> vector<8x256xf32>
    %85 = tpu.concatenate %77, %78, %79, %80, %76, %81, %82, %83, %84 in 0 : vector<8x256xf32>, vector<8x256xf32>, vector<8x256xf32>, vector<8x256xf32>, vector<8x256xf32>, vector<8x256xf32>, vector<8x256xf32>, vector<8x256xf32>, vector<8x256xf32> -> vector<72x256xf32>
    %86 = arith.mulf %85, %4 : vector<72x256xf32>
    %c0_43 = arith.constant 0 : index
    %c0_44 = arith.constant 0 : index
    %87 = vector.load %arg10[%c0_43, %c0_44] : memref<8x72xbf16, #tpu.memory_space<vmem>>, vector<8x72xbf16>
    %88 = arith.truncf %86 : vector<72x256xf32> to vector<72x256xbf16>
    %cst_45 = arith.constant dense<0.000000e+00> : vector<8x256xf32>
    %89 = tpu.matmul %87, %88, %cst_45 {dimension_numbers = #tpu.dot_dimension_numbers<[1], [0], [0], [1], [0, 0, 1, 1], [], []>} : vector<8x72xbf16>, vector<72x256xbf16>, vector<8x256xf32> -> vector<8x256xf32>
    %c0_46 = arith.constant 0 : index
    %c0_47 = arith.constant 0 : index
    %90 = vector.load %arg11[%c0_46, %c0_47] : memref<8x1xf32, #tpu.memory_space<vmem>>, vector<8x1xf32>
    %91 = vector.broadcast %90 : vector<8x1xf32> to vector<8x256xf32>
    %92 = arith.addf %89, %91 : vector<8x256xf32>
    %c0_48 = arith.constant 0 : index
    %c0_49 = arith.constant 0 : index
    %c0_50 = arith.constant 0 : index
    %93 = vector.load %arg12[%c0_48, %c0_49, %c0_50] : memref<1x8x1xf32, #tpu.memory_space<vmem>>, vector<1x8x1xf32>
    %94 = vector.shape_cast %93 : vector<1x8x1xf32> to vector<8x1xf32>
    %95 = vector.broadcast %94 : vector<8x1xf32> to vector<8x256xf32>
    %96 = arith.addf %92, %95 : vector<8x256xf32>
    %cst_51 = arith.constant dense<0.000000e+00> : vector<8xf32>
    %97 = vector.multi_reduction <add>, %96, %cst_51 [1] : vector<8x256xf32> to vector<8xf32>
    %98 = vector.shape_cast %97 : vector<8xf32> to vector<8x1xf32>
    %99 = arith.mulf %96, %96 : vector<8x256xf32>
    %cst_52 = arith.constant dense<0.000000e+00> : vector<8xf32>
    %100 = vector.multi_reduction <add>, %99, %cst_52 [1] : vector<8x256xf32> to vector<8xf32>
    %101 = vector.shape_cast %100 : vector<8xf32> to vector<8x1xf32>
    %c0_53 = arith.constant 0 : index
    %c0_54 = arith.constant 0 : index
    %102 = vector.load %arg7[%c0_53, %c0_54] : memref<8x8xf32, #tpu.memory_space<vmem>>, vector<8x8xf32>
    %103 = tpu.concatenate %98, %101 in 1 : vector<8x1xf32>, vector<8x1xf32> -> vector<8x2xf32>
    %cst_55 = arith.constant dense<0.000000e+00> : vector<8x2xf32>
    %104 = tpu.matmul %102, %103, %cst_55 {dimension_numbers = #tpu.dot_dimension_numbers<[1], [0], [0], [1], [0, 0, 1, 1], [], []>, precision = #tpu.contract_precision<fp32>} : vector<8x8xf32>, vector<8x2xf32>, vector<8x2xf32> -> vector<8x2xf32>
    %105 = vector.extract_strided_slice %104 {offsets = [0, 0], sizes = [8, 1], strides = [1, 1]} : vector<8x2xf32> to vector<8x1xf32>
    %106 = vector.extract_strided_slice %104 {offsets = [0, 1], sizes = [8, 1], strides = [1, 1]} : vector<8x2xf32> to vector<8x1xf32>
    %107 = arith.mulf %105, %105 : vector<8x1xf32>
    %108 = arith.subf %106, %107 : vector<8x1xf32>
    %cst_56 = arith.constant 0.000000e+00 : f32
    %109 = vector.broadcast %cst_56 : f32 to vector<8x1xf32>
    %110 = arith.maximumf %108, %109 : vector<8x1xf32>
    %cst_57 = arith.constant 9.99999974E-6 : f32
    %111 = vector.broadcast %cst_57 : f32 to vector<8x1xf32>
    %112 = arith.addf %110, %111 : vector<8x1xf32>
    %113 = math.rsqrt %112 : vector<8x1xf32>
    %c0_58 = arith.constant 0 : index
    %c0_59 = arith.constant 0 : index
    %114 = vector.load %arg13[%c0_58, %c0_59] : memref<8x2xf32, #tpu.memory_space<vmem>>, vector<8x2xf32>
    %115 = vector.broadcast %105 : vector<8x1xf32> to vector<8x256xf32>
    %116 = arith.subf %96, %115 : vector<8x256xf32>
    %117 = vector.extract_strided_slice %114 {offsets = [0, 0], sizes = [8, 1], strides = [1, 1]} : vector<8x2xf32> to vector<8x1xf32>
    %118 = arith.mulf %113, %117 : vector<8x1xf32>
    %119 = vector.broadcast %118 : vector<8x1xf32> to vector<8x256xf32>
    %120 = arith.mulf %116, %119 : vector<8x256xf32>
    %121 = vector.extract_strided_slice %114 {offsets = [0, 1], sizes = [8, 1], strides = [1, 1]} : vector<8x2xf32> to vector<8x1xf32>
    %122 = vector.broadcast %121 : vector<8x1xf32> to vector<8x256xf32>
    %123 = arith.addf %120, %122 : vector<8x256xf32>
    %124 = arith.negf %123 : vector<8x256xf32>
    %125 = math.exp %124 : vector<8x256xf32>
    %cst_60 = arith.constant 1.000000e+00 : f32
    %126 = vector.broadcast %cst_60 : f32 to vector<8x256xf32>
    %127 = arith.addf %126, %125 : vector<8x256xf32>
    %128 = arith.divf %126, %127 : vector<8x256xf32>
    %129 = arith.mulf %123, %128 : vector<8x256xf32>
    %c17_i32_61 = arith.constant 17 : i32
    %130 = tpu.dynamic_rotate %129 by %c17_i32_61 dim 1 : vector<8x256xf32>, i32 -> vector<8x256xf32>
    %c16_i32_62 = arith.constant 16 : i32
    %131 = tpu.dynamic_rotate %129 by %c16_i32_62 dim 1 : vector<8x256xf32>, i32 -> vector<8x256xf32>
    %c15_i32_63 = arith.constant 15 : i32
    %132 = tpu.dynamic_rotate %129 by %c15_i32_63 dim 1 : vector<8x256xf32>, i32 -> vector<8x256xf32>
    %c1_i32_64 = arith.constant 1 : i32
    %133 = tpu.dynamic_rotate %129 by %c1_i32_64 dim 1 : vector<8x256xf32>, i32 -> vector<8x256xf32>
    %c255_i32_65 = arith.constant 255 : i32
    %134 = tpu.dynamic_rotate %129 by %c255_i32_65 dim 1 : vector<8x256xf32>, i32 -> vector<8x256xf32>
    %c241_i32_66 = arith.constant 241 : i32
    %135 = tpu.dynamic_rotate %129 by %c241_i32_66 dim 1 : vector<8x256xf32>, i32 -> vector<8x256xf32>
    %c240_i32_67 = arith.constant 240 : i32
    %136 = tpu.dynamic_rotate %129 by %c240_i32_67 dim 1 : vector<8x256xf32>, i32 -> vector<8x256xf32>
    %c239_i32_68 = arith.constant 239 : i32
    %137 = tpu.dynamic_rotate %129 by %c239_i32_68 dim 1 : vector<8x256xf32>, i32 -> vector<8x256xf32>
    %138 = tpu.concatenate %130, %131, %132, %133, %129, %134, %135, %136, %137 in 0 : vector<8x256xf32>, vector<8x256xf32>, vector<8x256xf32>, vector<8x256xf32>, vector<8x256xf32>, vector<8x256xf32>, vector<8x256xf32>, vector<8x256xf32>, vector<8x256xf32> -> vector<72x256xf32>
    %139 = arith.mulf %138, %4 : vector<72x256xf32>
    %c0_69 = arith.constant 0 : index
    %c0_70 = arith.constant 0 : index
    %140 = vector.load %arg14[%c0_69, %c0_70] : memref<8x72xbf16, #tpu.memory_space<vmem>>, vector<8x72xbf16>
    %141 = arith.truncf %139 : vector<72x256xf32> to vector<72x256xbf16>
    %cst_71 = arith.constant dense<0.000000e+00> : vector<8x256xf32>
    %142 = tpu.matmul %140, %141, %cst_71 {dimension_numbers = #tpu.dot_dimension_numbers<[1], [0], [0], [1], [0, 0, 1, 1], [], []>} : vector<8x72xbf16>, vector<72x256xbf16>, vector<8x256xf32> -> vector<8x256xf32>
    %c0_72 = arith.constant 0 : index
    %c0_73 = arith.constant 0 : index
    %143 = vector.load %arg15[%c0_72, %c0_73] : memref<8x1xf32, #tpu.memory_space<vmem>>, vector<8x1xf32>
    %144 = vector.broadcast %143 : vector<8x1xf32> to vector<8x256xf32>
    %145 = arith.addf %142, %144 : vector<8x256xf32>
    %c0_74 = arith.constant 0 : index
    %c0_75 = arith.constant 0 : index
    %146 = vector.load %arg16[%c0_74, %c0_75] : memref<8x8xbf16, #tpu.memory_space<vmem>>, vector<8x8xbf16>
    %147 = arith.truncf %43 : vector<8x256xf32> to vector<8x256xbf16>
    %cst_76 = arith.constant dense<0.000000e+00> : vector<8x256xf32>
    %148 = tpu.matmul %146, %147, %cst_76 {dimension_numbers = #tpu.dot_dimension_numbers<[1], [0], [0], [1], [0, 0, 1, 1], [], []>} : vector<8x8xbf16>, vector<8x256xbf16>, vector<8x256xf32> -> vector<8x256xf32>
    %149 = arith.addf %145, %148 : vector<8x256xf32>
    %c0_77 = arith.constant 0 : index
    %c0_78 = arith.constant 0 : index
    %150 = vector.load %arg17[%c0_77, %c0_78] : memref<8x1xf32, #tpu.memory_space<vmem>>, vector<8x1xf32>
    %151 = vector.broadcast %150 : vector<8x1xf32> to vector<8x256xf32>
    %152 = arith.addf %149, %151 : vector<8x256xf32>
    %cst_79 = arith.constant dense<0.000000e+00> : vector<8xf32>
    %153 = vector.multi_reduction <add>, %152, %cst_79 [1] : vector<8x256xf32> to vector<8xf32>
    %154 = vector.shape_cast %153 : vector<8xf32> to vector<8x1xf32>
    %155 = arith.mulf %152, %152 : vector<8x256xf32>
    %cst_80 = arith.constant dense<0.000000e+00> : vector<8xf32>
    %156 = vector.multi_reduction <add>, %155, %cst_80 [1] : vector<8x256xf32> to vector<8xf32>
    %157 = vector.shape_cast %156 : vector<8xf32> to vector<8x1xf32>
    %c0_81 = arith.constant 0 : index
    %c0_82 = arith.constant 0 : index
    %158 = vector.load %arg7[%c0_81, %c0_82] : memref<8x8xf32, #tpu.memory_space<vmem>>, vector<8x8xf32>
    %159 = tpu.concatenate %154, %157 in 1 : vector<8x1xf32>, vector<8x1xf32> -> vector<8x2xf32>
    %cst_83 = arith.constant dense<0.000000e+00> : vector<8x2xf32>
    %160 = tpu.matmul %158, %159, %cst_83 {dimension_numbers = #tpu.dot_dimension_numbers<[1], [0], [0], [1], [0, 0, 1, 1], [], []>, precision = #tpu.contract_precision<fp32>} : vector<8x8xf32>, vector<8x2xf32>, vector<8x2xf32> -> vector<8x2xf32>
    %161 = vector.extract_strided_slice %160 {offsets = [0, 0], sizes = [8, 1], strides = [1, 1]} : vector<8x2xf32> to vector<8x1xf32>
    %162 = vector.extract_strided_slice %160 {offsets = [0, 1], sizes = [8, 1], strides = [1, 1]} : vector<8x2xf32> to vector<8x1xf32>
    %163 = arith.mulf %161, %161 : vector<8x1xf32>
    %164 = arith.subf %162, %163 : vector<8x1xf32>
    %cst_84 = arith.constant 0.000000e+00 : f32
    %165 = vector.broadcast %cst_84 : f32 to vector<8x1xf32>
    %166 = arith.maximumf %164, %165 : vector<8x1xf32>
    %cst_85 = arith.constant 9.99999974E-6 : f32
    %167 = vector.broadcast %cst_85 : f32 to vector<8x1xf32>
    %168 = arith.addf %166, %167 : vector<8x1xf32>
    %169 = math.rsqrt %168 : vector<8x1xf32>
    %c0_86 = arith.constant 0 : index
    %c0_87 = arith.constant 0 : index
    %170 = vector.load %arg18[%c0_86, %c0_87] : memref<8x2xf32, #tpu.memory_space<vmem>>, vector<8x2xf32>
    %171 = vector.broadcast %161 : vector<8x1xf32> to vector<8x256xf32>
    %172 = arith.subf %152, %171 : vector<8x256xf32>
    %173 = vector.extract_strided_slice %170 {offsets = [0, 0], sizes = [8, 1], strides = [1, 1]} : vector<8x2xf32> to vector<8x1xf32>
    %174 = arith.mulf %169, %173 : vector<8x1xf32>
    %175 = vector.broadcast %174 : vector<8x1xf32> to vector<8x256xf32>
    %176 = arith.mulf %172, %175 : vector<8x256xf32>
    %177 = vector.extract_strided_slice %170 {offsets = [0, 1], sizes = [8, 1], strides = [1, 1]} : vector<8x2xf32> to vector<8x1xf32>
    %178 = vector.broadcast %177 : vector<8x1xf32> to vector<8x256xf32>
    %179 = arith.addf %176, %178 : vector<8x256xf32>
    %180 = arith.truncf %179 : vector<8x256xf32> to vector<8x256xbf16>
    %c0_88 = arith.constant 0 : index
    %c0_89 = arith.constant 0 : index
    %c0_90 = arith.constant 0 : index
    %181 = vector.load %arg19[%c0_88, %c0_89, %c0_90] : memref<2x4x8xbf16, #tpu.memory_space<vmem>>, vector<1x4x8xbf16>
    %182 = vector.shape_cast %181 : vector<1x4x8xbf16> to vector<4x8xbf16>
    %cst_91 = arith.constant dense<0.000000e+00> : vector<4x256xf32>
    %183 = tpu.matmul %182, %180, %cst_91 {dimension_numbers = #tpu.dot_dimension_numbers<[1], [0], [0], [1], [0, 0, 1, 1], [], []>} : vector<4x8xbf16>, vector<8x256xbf16>, vector<4x256xf32> -> vector<4x256xf32>
    %c0_92 = arith.constant 0 : index
    %c0_93 = arith.constant 0 : index
    %c0_94 = arith.constant 0 : index
    %184 = vector.load %arg20[%c0_92, %c0_93, %c0_94] : memref<2x4x1xf32, #tpu.memory_space<vmem>>, vector<1x4x1xf32>
    %185 = vector.shape_cast %184 : vector<1x4x1xf32> to vector<4x1xf32>
    %186 = vector.broadcast %185 : vector<4x1xf32> to vector<4x256xf32>
    %187 = arith.addf %183, %186 : vector<4x256xf32>
    %c0_95 = arith.constant 0 : index
    %c0_96 = arith.constant 0 : index
    %c0_97 = arith.constant 0 : index
    %188 = vector.load %arg21[%c0_95, %c0_96, %c0_97] : memref<2x4x8xbf16, #tpu.memory_space<vmem>>, vector<1x4x8xbf16>
    %189 = vector.shape_cast %188 : vector<1x4x8xbf16> to vector<4x8xbf16>
    %cst_98 = arith.constant dense<0.000000e+00> : vector<4x256xf32>
    %190 = tpu.matmul %189, %180, %cst_98 {dimension_numbers = #tpu.dot_dimension_numbers<[1], [0], [0], [1], [0, 0, 1, 1], [], []>} : vector<4x8xbf16>, vector<8x256xbf16>, vector<4x256xf32> -> vector<4x256xf32>
    %c0_99 = arith.constant 0 : index
    %c0_100 = arith.constant 0 : index
    %c0_101 = arith.constant 0 : index
    %191 = vector.load %arg22[%c0_99, %c0_100, %c0_101] : memref<2x4x1xf32, #tpu.memory_space<vmem>>, vector<1x4x1xf32>
    %192 = vector.shape_cast %191 : vector<1x4x1xf32> to vector<4x1xf32>
    %193 = vector.broadcast %192 : vector<4x1xf32> to vector<4x256xf32>
    %194 = arith.addf %190, %193 : vector<4x256xf32>
    %c0_102 = arith.constant 0 : index
    %c0_103 = arith.constant 0 : index
    %c0_104 = arith.constant 0 : index
    %195 = vector.load %arg23[%c0_102, %c0_103, %c0_104] : memref<2x8x8xbf16, #tpu.memory_space<vmem>>, vector<1x8x8xbf16>
    %196 = vector.shape_cast %195 : vector<1x8x8xbf16> to vector<8x8xbf16>
    %cst_105 = arith.constant dense<0.000000e+00> : vector<8x256xf32>
    %197 = tpu.matmul %196, %180, %cst_105 {dimension_numbers = #tpu.dot_dimension_numbers<[1], [0], [0], [1], [0, 0, 1, 1], [], []>} : vector<8x8xbf16>, vector<8x256xbf16>, vector<8x256xf32> -> vector<8x256xf32>
    %c0_106 = arith.constant 0 : index
    %c0_107 = arith.constant 0 : index
    %c0_108 = arith.constant 0 : index
    %198 = vector.load %arg24[%c0_106, %c0_107, %c0_108] : memref<2x8x1xf32, #tpu.memory_space<vmem>>, vector<1x8x1xf32>
    %199 = vector.shape_cast %198 : vector<1x8x1xf32> to vector<8x1xf32>
    %200 = vector.broadcast %199 : vector<8x1xf32> to vector<8x256xf32>
    %201 = arith.addf %197, %200 : vector<8x256xf32>
    %202 = arith.truncf %187 : vector<4x256xf32> to vector<4x256xbf16>
    %203 = tpu.transpose %194, [1, 0] : vector<4x256xf32> -> vector<256x4xf32>
    %204 = arith.truncf %203 : vector<256x4xf32> to vector<256x4xbf16>
    %205 = arith.truncf %201 : vector<8x256xf32> to vector<8x256xbf16>
    %c1_109 = arith.constant 1 : index
    %c0_110 = arith.constant 0 : index
    %c0_111 = arith.constant 0 : index
    %206 = vector.load %arg19[%c1_109, %c0_110, %c0_111] : memref<2x4x8xbf16, #tpu.memory_space<vmem>>, vector<1x4x8xbf16>
    %207 = vector.shape_cast %206 : vector<1x4x8xbf16> to vector<4x8xbf16>
    %cst_112 = arith.constant dense<0.000000e+00> : vector<4x256xf32>
    %208 = tpu.matmul %207, %180, %cst_112 {dimension_numbers = #tpu.dot_dimension_numbers<[1], [0], [0], [1], [0, 0, 1, 1], [], []>} : vector<4x8xbf16>, vector<8x256xbf16>, vector<4x256xf32> -> vector<4x256xf32>
    %c1_113 = arith.constant 1 : index
    %c0_114 = arith.constant 0 : index
    %c0_115 = arith.constant 0 : index
    %209 = vector.load %arg20[%c1_113, %c0_114, %c0_115] : memref<2x4x1xf32, #tpu.memory_space<vmem>>, vector<1x4x1xf32>
    %210 = vector.shape_cast %209 : vector<1x4x1xf32> to vector<4x1xf32>
    %211 = vector.broadcast %210 : vector<4x1xf32> to vector<4x256xf32>
    %212 = arith.addf %208, %211 : vector<4x256xf32>
    %c1_116 = arith.constant 1 : index
    %c0_117 = arith.constant 0 : index
    %c0_118 = arith.constant 0 : index
    %213 = vector.load %arg21[%c1_116, %c0_117, %c0_118] : memref<2x4x8xbf16, #tpu.memory_space<vmem>>, vector<1x4x8xbf16>
    %214 = vector.shape_cast %213 : vector<1x4x8xbf16> to vector<4x8xbf16>
    %cst_119 = arith.constant dense<0.000000e+00> : vector<4x256xf32>
    %215 = tpu.matmul %214, %180, %cst_119 {dimension_numbers = #tpu.dot_dimension_numbers<[1], [0], [0], [1], [0, 0, 1, 1], [], []>} : vector<4x8xbf16>, vector<8x256xbf16>, vector<4x256xf32> -> vector<4x256xf32>
    %c1_120 = arith.constant 1 : index
    %c0_121 = arith.constant 0 : index
    %c0_122 = arith.constant 0 : index
    %216 = vector.load %arg22[%c1_120, %c0_121, %c0_122] : memref<2x4x1xf32, #tpu.memory_space<vmem>>, vector<1x4x1xf32>
    %217 = vector.shape_cast %216 : vector<1x4x1xf32> to vector<4x1xf32>
    %218 = vector.broadcast %217 : vector<4x1xf32> to vector<4x256xf32>
    %219 = arith.addf %215, %218 : vector<4x256xf32>
    %c1_123 = arith.constant 1 : index
    %c0_124 = arith.constant 0 : index
    %c0_125 = arith.constant 0 : index
    %220 = vector.load %arg23[%c1_123, %c0_124, %c0_125] : memref<2x8x8xbf16, #tpu.memory_space<vmem>>, vector<1x8x8xbf16>
    %221 = vector.shape_cast %220 : vector<1x8x8xbf16> to vector<8x8xbf16>
    %cst_126 = arith.constant dense<0.000000e+00> : vector<8x256xf32>
    %222 = tpu.matmul %221, %180, %cst_126 {dimension_numbers = #tpu.dot_dimension_numbers<[1], [0], [0], [1], [0, 0, 1, 1], [], []>} : vector<8x8xbf16>, vector<8x256xbf16>, vector<8x256xf32> -> vector<8x256xf32>
    %c1_127 = arith.constant 1 : index
    %c0_128 = arith.constant 0 : index
    %c0_129 = arith.constant 0 : index
    %223 = vector.load %arg24[%c1_127, %c0_128, %c0_129] : memref<2x8x1xf32, #tpu.memory_space<vmem>>, vector<1x8x1xf32>
    %224 = vector.shape_cast %223 : vector<1x8x1xf32> to vector<8x1xf32>
    %225 = vector.broadcast %224 : vector<8x1xf32> to vector<8x256xf32>
    %226 = arith.addf %222, %225 : vector<8x256xf32>
    %227 = arith.truncf %212 : vector<4x256xf32> to vector<4x256xbf16>
    %228 = tpu.transpose %219, [1, 0] : vector<4x256xf32> -> vector<256x4xf32>
    %229 = arith.truncf %228 : vector<256x4xf32> to vector<256x4xbf16>
    %230 = arith.truncf %226 : vector<8x256xf32> to vector<8x256xbf16>
    %cst_130 = arith.constant 0.000000e+00 : f32
    %231 = vector.broadcast %cst_130 : f32 to vector<8x128xf32>
    %232 = vector.extract_strided_slice %202 {offsets = [0, 0], sizes = [4, 128], strides = [1, 1]} : vector<4x256xbf16> to vector<4x128xbf16>
    %cst_131 = arith.constant dense<0.000000e+00> : vector<256x128xf32>
    %233 = tpu.matmul %204, %232, %cst_131 {dimension_numbers = #tpu.dot_dimension_numbers<[1], [0], [0], [1], [0, 0, 1, 1], [], []>} : vector<256x4xbf16>, vector<4x128xbf16>, vector<256x128xf32> -> vector<256x128xf32>
    %cst_132 = arith.constant 5.000000e-01 : f32
    %234 = vector.broadcast %cst_132 : f32 to vector<256x128xf32>
    %235 = arith.mulf %233, %234 : vector<256x128xf32>
    %cst_133 = arith.constant dense<0xFF800000> : vector<128xf32>
    %236 = vector.multi_reduction <maximumf>, %235, %cst_133 [0] : vector<256x128xf32> to vector<128xf32>
    %237 = vector.shape_cast %236 : vector<128xf32> to vector<1x128xf32>
    %238 = vector.broadcast %237 : vector<1x128xf32> to vector<256x128xf32>
    %239 = arith.subf %235, %238 : vector<256x128xf32>
    %240 = math.exp %239 : vector<256x128xf32>
    %cst_134 = arith.constant dense<0.000000e+00> : vector<128xf32>
    %241 = vector.multi_reduction <add>, %240, %cst_134 [0] : vector<256x128xf32> to vector<128xf32>
    %242 = vector.shape_cast %241 : vector<128xf32> to vector<1x128xf32>
    %243 = tpu.reciprocal %242 {approx = true} : vector<1x128xf32> -> vector<1x128xf32>
    %244 = vector.broadcast %243 : vector<1x128xf32> to vector<256x128xf32>
    %245 = arith.mulf %240, %244 : vector<256x128xf32>
    %246 = arith.truncf %245 : vector<256x128xf32> to vector<256x128xbf16>
    %cst_135 = arith.constant dense<0.000000e+00> : vector<8x128xf32>
    %247 = tpu.matmul %205, %246, %cst_135 {dimension_numbers = #tpu.dot_dimension_numbers<[1], [0], [0], [1], [0, 0, 1, 1], [], []>} : vector<8x256xbf16>, vector<256x128xbf16>, vector<8x128xf32> -> vector<8x128xf32>
    %248 = arith.addf %231, %247 : vector<8x128xf32>
    %249 = vector.extract_strided_slice %227 {offsets = [0, 0], sizes = [4, 128], strides = [1, 1]} : vector<4x256xbf16> to vector<4x128xbf16>
    %cst_136 = arith.constant dense<0.000000e+00> : vector<256x128xf32>
    %250 = tpu.matmul %229, %249, %cst_136 {dimension_numbers = #tpu.dot_dimension_numbers<[1], [0], [0], [1], [0, 0, 1, 1], [], []>} : vector<256x4xbf16>, vector<4x128xbf16>, vector<256x128xf32> -> vector<256x128xf32>
    %cst_137 = arith.constant 5.000000e-01 : f32
    %251 = vector.broadcast %cst_137 : f32 to vector<256x128xf32>
    %252 = arith.mulf %250, %251 : vector<256x128xf32>
    %cst_138 = arith.constant dense<0xFF800000> : vector<128xf32>
    %253 = vector.multi_reduction <maximumf>, %252, %cst_138 [0] : vector<256x128xf32> to vector<128xf32>
    %254 = vector.shape_cast %253 : vector<128xf32> to vector<1x128xf32>
    %255 = vector.broadcast %254 : vector<1x128xf32> to vector<256x128xf32>
    %256 = arith.subf %252, %255 : vector<256x128xf32>
    %257 = math.exp %256 : vector<256x128xf32>
    %cst_139 = arith.constant dense<0.000000e+00> : vector<128xf32>
    %258 = vector.multi_reduction <add>, %257, %cst_139 [0] : vector<256x128xf32> to vector<128xf32>
    %259 = vector.shape_cast %258 : vector<128xf32> to vector<1x128xf32>
    %260 = tpu.reciprocal %259 {approx = true} : vector<1x128xf32> -> vector<1x128xf32>
    %261 = vector.broadcast %260 : vector<1x128xf32> to vector<256x128xf32>
    %262 = arith.mulf %257, %261 : vector<256x128xf32>
    %263 = arith.truncf %262 : vector<256x128xf32> to vector<256x128xbf16>
    %cst_140 = arith.constant dense<0.000000e+00> : vector<8x128xf32>
    %264 = tpu.matmul %230, %263, %cst_140 {dimension_numbers = #tpu.dot_dimension_numbers<[1], [0], [0], [1], [0, 0, 1, 1], [], []>} : vector<8x256xbf16>, vector<256x128xbf16>, vector<8x128xf32> -> vector<8x128xf32>
    %265 = arith.addf %248, %264 : vector<8x128xf32>
    %cst_141 = arith.constant 0.000000e+00 : f32
    %266 = vector.broadcast %cst_141 : f32 to vector<8x128xf32>
    %267 = vector.extract_strided_slice %202 {offsets = [0, 128], sizes = [4, 128], strides = [1, 1]} : vector<4x256xbf16> to vector<4x128xbf16>
    %cst_142 = arith.constant dense<0.000000e+00> : vector<256x128xf32>
    %268 = tpu.matmul %204, %267, %cst_142 {dimension_numbers = #tpu.dot_dimension_numbers<[1], [0], [0], [1], [0, 0, 1, 1], [], []>} : vector<256x4xbf16>, vector<4x128xbf16>, vector<256x128xf32> -> vector<256x128xf32>
    %cst_143 = arith.constant 5.000000e-01 : f32
    %269 = vector.broadcast %cst_143 : f32 to vector<256x128xf32>
    %270 = arith.mulf %268, %269 : vector<256x128xf32>
    %cst_144 = arith.constant dense<0xFF800000> : vector<128xf32>
    %271 = vector.multi_reduction <maximumf>, %270, %cst_144 [0] : vector<256x128xf32> to vector<128xf32>
    %272 = vector.shape_cast %271 : vector<128xf32> to vector<1x128xf32>
    %273 = vector.broadcast %272 : vector<1x128xf32> to vector<256x128xf32>
    %274 = arith.subf %270, %273 : vector<256x128xf32>
    %275 = math.exp %274 : vector<256x128xf32>
    %cst_145 = arith.constant dense<0.000000e+00> : vector<128xf32>
    %276 = vector.multi_reduction <add>, %275, %cst_145 [0] : vector<256x128xf32> to vector<128xf32>
    %277 = vector.shape_cast %276 : vector<128xf32> to vector<1x128xf32>
    %278 = tpu.reciprocal %277 {approx = true} : vector<1x128xf32> -> vector<1x128xf32>
    %279 = vector.broadcast %278 : vector<1x128xf32> to vector<256x128xf32>
    %280 = arith.mulf %275, %279 : vector<256x128xf32>
    %281 = arith.truncf %280 : vector<256x128xf32> to vector<256x128xbf16>
    %cst_146 = arith.constant dense<0.000000e+00> : vector<8x128xf32>
    %282 = tpu.matmul %205, %281, %cst_146 {dimension_numbers = #tpu.dot_dimension_numbers<[1], [0], [0], [1], [0, 0, 1, 1], [], []>} : vector<8x256xbf16>, vector<256x128xbf16>, vector<8x128xf32> -> vector<8x128xf32>
    %283 = arith.addf %266, %282 : vector<8x128xf32>
    %284 = vector.extract_strided_slice %227 {offsets = [0, 128], sizes = [4, 128], strides = [1, 1]} : vector<4x256xbf16> to vector<4x128xbf16>
    %cst_147 = arith.constant dense<0.000000e+00> : vector<256x128xf32>
    %285 = tpu.matmul %229, %284, %cst_147 {dimension_numbers = #tpu.dot_dimension_numbers<[1], [0], [0], [1], [0, 0, 1, 1], [], []>} : vector<256x4xbf16>, vector<4x128xbf16>, vector<256x128xf32> -> vector<256x128xf32>
    %cst_148 = arith.constant 5.000000e-01 : f32
    %286 = vector.broadcast %cst_148 : f32 to vector<256x128xf32>
    %287 = arith.mulf %285, %286 : vector<256x128xf32>
    %cst_149 = arith.constant dense<0xFF800000> : vector<128xf32>
    %288 = vector.multi_reduction <maximumf>, %287, %cst_149 [0] : vector<256x128xf32> to vector<128xf32>
    %289 = vector.shape_cast %288 : vector<128xf32> to vector<1x128xf32>
    %290 = vector.broadcast %289 : vector<1x128xf32> to vector<256x128xf32>
    %291 = arith.subf %287, %290 : vector<256x128xf32>
    %292 = math.exp %291 : vector<256x128xf32>
    %cst_150 = arith.constant dense<0.000000e+00> : vector<128xf32>
    %293 = vector.multi_reduction <add>, %292, %cst_150 [0] : vector<256x128xf32> to vector<128xf32>
    %294 = vector.shape_cast %293 : vector<128xf32> to vector<1x128xf32>
    %295 = tpu.reciprocal %294 {approx = true} : vector<1x128xf32> -> vector<1x128xf32>
    %296 = vector.broadcast %295 : vector<1x128xf32> to vector<256x128xf32>
    %297 = arith.mulf %292, %296 : vector<256x128xf32>
    %298 = arith.truncf %297 : vector<256x128xf32> to vector<256x128xbf16>
    %cst_151 = arith.constant dense<0.000000e+00> : vector<8x128xf32>
    %299 = tpu.matmul %230, %298, %cst_151 {dimension_numbers = #tpu.dot_dimension_numbers<[1], [0], [0], [1], [0, 0, 1, 1], [], []>} : vector<8x256xbf16>, vector<256x128xbf16>, vector<8x128xf32> -> vector<8x128xf32>
    %300 = arith.addf %283, %299 : vector<8x128xf32>
    %301 = tpu.concatenate %265, %300 in 1 : vector<8x128xf32>, vector<8x128xf32> -> vector<8x256xf32>
    %302 = arith.addf %152, %301 : vector<8x256xf32>
    %c0_152 = arith.constant 0 : index
    %c0_153 = arith.constant 0 : index
    %303 = vector.load %arg25[%c0_152, %c0_153] : memref<8x1xf32, #tpu.memory_space<vmem>>, vector<8x1xf32>
    %304 = vector.broadcast %303 : vector<8x1xf32> to vector<8x256xf32>
    %305 = arith.addf %302, %304 : vector<8x256xf32>
    %c0_154 = arith.constant 0 : index
    %c0_155 = arith.constant 0 : index
    %c0_156 = arith.constant 0 : index
    %306 = vector.load %arg26[%c0_154, %c0_155, %c0_156] : memref<1x8x256xf32, #tpu.memory_space<vmem>>, vector<1x8x256xf32>
    %307 = vector.shape_cast %306 : vector<1x8x256xf32> to vector<8x256xf32>
    %308 = vector.shape_cast %305 : vector<8x256xf32> to vector<1x8x256xf32>
    tpu.vector_store %arg26[%c0_154, %c0_155, %c0_156], %308 {strides = array<i32>} : memref<1x8x256xf32, #tpu.memory_space<vmem>>, vector<1x8x256xf32>,
    return
  }
  func.func @transform_0(%arg0: i32) -> (i32, i32, i32) {
    %c0_i32 = arith.constant 0 : i32
    %c0_i32_0 = arith.constant 0 : i32
    %c0_i32_1 = arith.constant 0 : i32
    return %arg0, %c0_i32, %c0_i32_0 : i32, i32, i32
  }
  func.func @transform_1(%arg0: i32) -> (i32, i32, i32) {
    %c0_i32 = arith.constant 0 : i32
    %c0_i32_0 = arith.constant 0 : i32
    %c0_i32_1 = arith.constant 0 : i32
    return %arg0, %c0_i32, %c0_i32_0 : i32, i32, i32
  }
  func.func @transform_2(%arg0: i32) -> (i32, i32, i32) {
    %c0_i32 = arith.constant 0 : i32
    %c0_i32_0 = arith.constant 0 : i32
    %c0_i32_1 = arith.constant 0 : i32
    %c0_i32_2 = arith.constant 0 : i32
    return %c0_i32, %c0_i32_0, %c0_i32_1 : i32, i32, i32
  }
  func.func @transform_3(%arg0: i32) -> (i32, i32) {
    %c0_i32 = arith.constant 0 : i32
    %c0_i32_0 = arith.constant 0 : i32
    %c0_i32_1 = arith.constant 0 : i32
    return %c0_i32, %c0_i32_0 : i32, i32
  }
  func.func @transform_4(%arg0: i32) -> (i32, i32, i32) {
    %c0_i32 = arith.constant 0 : i32
    %c0_i32_0 = arith.constant 0 : i32
    %c0_i32_1 = arith.constant 0 : i32
    %c0_i32_2 = arith.constant 0 : i32
    return %c0_i32, %c0_i32_0, %c0_i32_1 : i32, i32, i32
  }
  func.func @transform_5(%arg0: i32) -> (i32, i32) {
    %c0_i32 = arith.constant 0 : i32
    %c0_i32_0 = arith.constant 0 : i32
    %c0_i32_1 = arith.constant 0 : i32
    return %c0_i32, %c0_i32_0 : i32, i32
  }
  func.func @transform_6(%arg0: i32) -> (i32, i32) {
    %c0_i32 = arith.constant 0 : i32
    %c0_i32_0 = arith.constant 0 : i32
    %c0_i32_1 = arith.constant 0 : i32
    return %c0_i32, %c0_i32_0 : i32, i32
  }
  func.func @transform_7(%arg0: i32) -> (i32, i32) {
    %c0_i32 = arith.constant 0 : i32
    %c0_i32_0 = arith.constant 0 : i32
    %c0_i32_1 = arith.constant 0 : i32
    return %c0_i32, %c0_i32_0 : i32, i32
  }
  func.func @transform_8(%arg0: i32) -> (i32, i32) {
    %c0_i32 = arith.constant 0 : i32
    %c0_i32_0 = arith.constant 0 : i32
    %c0_i32_1 = arith.constant 0 : i32
    return %c0_i32, %c0_i32_0 : i32, i32
  }
  func.func @transform_9(%arg0: i32) -> (i32, i32) {
    %c0_i32 = arith.constant 0 : i32
    %c0_i32_0 = arith.constant 0 : i32
    %c0_i32_1 = arith.constant 0 : i32
    return %c0_i32, %c0_i32_0 : i32, i32
  }
  func.func @transform_10(%arg0: i32) -> (i32, i32) {
    %c0_i32 = arith.constant 0 : i32
    %c0_i32_0 = arith.constant 0 : i32
    %c0_i32_1 = arith.constant 0 : i32
    return %c0_i32, %c0_i32_0 : i32, i32
  }
  func.func @transform_11(%arg0: i32) -> (i32, i32, i32) {
    %c0_i32 = arith.constant 0 : i32
    %c0_i32_0 = arith.constant 0 : i32
    %c0_i32_1 = arith.constant 0 : i32
    return %arg0, %c0_i32, %c0_i32_0 : i32, i32, i32
  }
  func.func @transform_12(%arg0: i32) -> (i32, i32) {
    %c0_i32 = arith.constant 0 : i32
    %c0_i32_0 = arith.constant 0 : i32
    %c0_i32_1 = arith.constant 0 : i32
    return %c0_i32, %c0_i32_0 : i32, i32
  }
  func.func @transform_13(%arg0: i32) -> (i32, i32) {
    %c0_i32 = arith.constant 0 : i32
    %c0_i32_0 = arith.constant 0 : i32
    %c0_i32_1 = arith.constant 0 : i32
    return %c0_i32, %c0_i32_0 : i32, i32
  }
  func.func @transform_14(%arg0: i32) -> (i32, i32) {
    %c0_i32 = arith.constant 0 : i32
    %c0_i32_0 = arith.constant 0 : i32
    %c0_i32_1 = arith.constant 0 : i32
    return %c0_i32, %c0_i32_0 : i32, i32
  }
  func.func @transform_15(%arg0: i32) -> (i32, i32) {
    %c0_i32 = arith.constant 0 : i32
    %c0_i32_0 = arith.constant 0 : i32
    %c0_i32_1 = arith.constant 0 : i32
    return %c0_i32, %c0_i32_0 : i32, i32
  }
  func.func @transform_16(%arg0: i32) -> (i32, i32) {
    %c0_i32 = arith.constant 0 : i32
    %c0_i32_0 = arith.constant 0 : i32
    %c0_i32_1 = arith.constant 0 : i32
    return %c0_i32, %c0_i32_0 : i32, i32
  }
  func.func @transform_17(%arg0: i32) -> (i32, i32) {
    %c0_i32 = arith.constant 0 : i32
    %c0_i32_0 = arith.constant 0 : i32
    %c0_i32_1 = arith.constant 0 : i32
    return %c0_i32, %c0_i32_0 : i32, i32
  }
  func.func @transform_18(%arg0: i32) -> (i32, i32, i32) {
    %c0_i32 = arith.constant 0 : i32
    %c0_i32_0 = arith.constant 0 : i32
    %c0_i32_1 = arith.constant 0 : i32
    %c0_i32_2 = arith.constant 0 : i32
    return %c0_i32, %c0_i32_0, %c0_i32_1 : i32, i32, i32
  }
  func.func @transform_19(%arg0: i32) -> (i32, i32, i32) {
    %c0_i32 = arith.constant 0 : i32
    %c0_i32_0 = arith.constant 0 : i32
    %c0_i32_1 = arith.constant 0 : i32
    %c0_i32_2 = arith.constant 0 : i32
    return %c0_i32, %c0_i32_0, %c0_i32_1 : i32, i32, i32
  }
  func.func @transform_20(%arg0: i32) -> (i32, i32, i32) {
    %c0_i32 = arith.constant 0 : i32
    %c0_i32_0 = arith.constant 0 : i32
    %c0_i32_1 = arith.constant 0 : i32
    %c0_i32_2 = arith.constant 0 : i32
    return %c0_i32, %c0_i32_0, %c0_i32_1 : i32, i32, i32
  }
  func.func @transform_21(%arg0: i32) -> (i32, i32, i32) {
    %c0_i32 = arith.constant 0 : i32
    %c0_i32_0 = arith.constant 0 : i32
    %c0_i32_1 = arith.constant 0 : i32
    %c0_i32_2 = arith.constant 0 : i32
    return %c0_i32, %c0_i32_0, %c0_i32_1 : i32, i32, i32
  }
  func.func @transform_22(%arg0: i32) -> (i32, i32, i32) {
    %c0_i32 = arith.constant 0 : i32
    %c0_i32_0 = arith.constant 0 : i32
    %c0_i32_1 = arith.constant 0 : i32
    %c0_i32_2 = arith.constant 0 : i32
    return %c0_i32, %c0_i32_0, %c0_i32_1 : i32, i32, i32
  }
  func.func @transform_23(%arg0: i32) -> (i32, i32, i32) {
    %c0_i32 = arith.constant 0 : i32
    %c0_i32_0 = arith.constant 0 : i32
    %c0_i32_1 = arith.constant 0 : i32
    %c0_i32_2 = arith.constant 0 : i32
    return %c0_i32, %c0_i32_0, %c0_i32_1 : i32, i32, i32
  }
  func.func @transform_24(%arg0: i32) -> (i32, i32) {
    %c0_i32 = arith.constant 0 : i32
    %c0_i32_0 = arith.constant 0 : i32
    %c0_i32_1 = arith.constant 0 : i32
    return %c0_i32, %c0_i32_0 : i32, i32
  }
  func.func @transform_25(%arg0: i32) -> (i32, i32, i32) {
    %c0_i32 = arith.constant 0 : i32
    %c0_i32_0 = arith.constant 0 : i32
    %c0_i32_1 = arith.constant 0 : i32
    return %arg0, %c0_i32, %c0_i32_0 : i32, i32, i32
  }
}

</mosaic_0001>

<llo_original>
// kernel: upblock_forward.1
$region0: #{upblock_forward.1}
  #allocation0 [shape = 'u32[]', space=smem, size = 0x4, offset = 0x4, fixed_abs, tag = 'smem constant byte address 0x4 - core index']
  #allocation1 [shape = 'u32[72,128]{1,0:T(1,128)}', space=vmem, size = 0x9000, scoped, tag = 'internal scratch']
  %s0 = inlined_call_operand.vmem [shape: bf16[2,16,256], index: 0, kind: input, shape index: {}]
  %s1 = inlined_call_operand.vmem [shape: f32[2,4,256], index: 1, kind: input, shape index: {}]
  %s2 = inlined_call_operand.vmem [shape: bf16[4,4,16], index: 2, kind: input, shape index: {}]
  %s3 = inlined_call_operand.vmem [shape: f32[4,1], index: 3, kind: input, shape index: {}]
  %s4 = inlined_call_operand.vmem [shape: f32[4,1,256], index: 4, kind: input, shape index: {}]
  %s5 = inlined_call_operand.vmem [shape: f32[8,8], index: 5, kind: input, shape index: {}, may-alias: {5,6}]
  %s6 = inlined_call_operand.vmem [shape: f32[8,8], index: 6, kind: input, shape index: {}, may-alias: {5,6}]
  %s7 = inlined_call_operand.vmem [shape: f32[9,256], index: 7, kind: input, shape index: {}]
  %s8 = inlined_call_operand.vmem [shape: f32[8,2], index: 8, kind: input, shape index: {}]
  %s9 = inlined_call_operand.vmem [shape: bf16[8,72], index: 9, kind: input, shape index: {}]
  %s10 = inlined_call_operand.vmem [shape: f32[8,1], index: 10, kind: input, shape index: {}]
  %s11 = inlined_call_operand.vmem [shape: f32[2,8,1], index: 11, kind: input, shape index: {}]
  %s12 = inlined_call_operand.vmem [shape: f32[8,2], index: 12, kind: input, shape index: {}]
  %s13 = inlined_call_operand.vmem [shape: bf16[8,72], index: 13, kind: input, shape index: {}]
  %s14 = inlined_call_operand.vmem [shape: f32[8,1], index: 14, kind: input, shape index: {}]
  %s15 = inlined_call_operand.vmem [shape: bf16[8,8], index: 15, kind: input, shape index: {}]
  %s16 = inlined_call_operand.vmem [shape: f32[8,1], index: 16, kind: input, shape index: {}]
  %s17 = inlined_call_operand.vmem [shape: f32[8,2], index: 17, kind: input, shape index: {}]
  %s18 = inlined_call_operand.vmem [shape: bf16[2,4,8], index: 18, kind: input, shape index: {}]
  %s19 = inlined_call_operand.vmem [shape: f32[2,4,1], index: 19, kind: input, shape index: {}]
  %s20 = inlined_call_operand.vmem [shape: bf16[2,4,8], index: 20, kind: input, shape index: {}]
  %s21 = inlined_call_operand.vmem [shape: f32[2,4,1], index: 21, kind: input, shape index: {}]
  %s22 = inlined_call_operand.vmem [shape: bf16[2,8,8], index: 22, kind: input, shape index: {}]
  %s23 = inlined_call_operand.vmem [shape: f32[2,8,1], index: 23, kind: input, shape index: {}]
  %s24 = inlined_call_operand.vmem [shape: f32[8,1], index: 24, kind: input, shape index: {}]
  %s25 = inlined_call_operand.vmem [shape: f32[2,8,256], index: 25, kind: output, shape index: {}]
  %s26 = sld [smem:[#allocation0]]
  $region133: #{upblock_forward.1} parent=0
    _
  %s28 = ssub.s32 1, %s26
  %s29 = scalar_select 0, %s28, %s26
  loop: start=0, step=1, limit=4
  $region2: #{upblock_forward.1} parent=0 // loop_pre_header
    _
  $region3: #{upblock_forward.1} parent=0 // loop_header
    %s31 = sphi 0, %s35
    %p32 = scmp.ge.s32.totalorder %s31, 4
    %s41 = sphi 0, %s43
    %s44 = sphi 0, %s41
    %s45 = sphi 0, %s44
    %s61 = sphi 0, %s45
    %s67 = sphi 0, %s69
    %s70 = sphi 0, %s67
    %s71 = sphi 0, %s70
    %s87 = sphi 0, %s71
    %s91 = sphi 0, %s91
    %s93 = sphi 0, %s91
    %s94 = sphi 0, %s93
    %s108 = sphi 0, %s94
    %s112 = sphi 0, %s112
    %s114 = sphi 0, %s112
    %s115 = sphi 0, %s114
    %s129 = sphi 0, %s115
    %s133 = sphi 0, %s133
    %s135 = sphi 0, %s133
    %s136 = sphi 0, %s135
    %s150 = sphi 0, %s136
    %s154 = sphi 0, %s154
    %s156 = sphi 0, %s154
    %s157 = sphi 0, %s156
    %s171 = sphi 0, %s157
    %s175 = sphi 0, %s175
    %s177 = sphi 0, %s175
    %s178 = sphi 0, %s177
    %s192 = sphi 0, %s178
    %s196 = sphi 0, %s196
    %s198 = sphi 0, %s196
    %s199 = sphi 0, %s198
    %s213 = sphi 0, %s199
    %s217 = sphi 0, %s217
    %s219 = sphi 0, %s217
    %s220 = sphi 0, %s219
    %s234 = sphi 0, %s220
    %s238 = sphi 0, %s238
    %s240 = sphi 0, %s238
    %s241 = sphi 0, %s240
    %s255 = sphi 0, %s241
    %s259 = sphi 0, %s259
    %s261 = sphi 0, %s259
    %s262 = sphi 0, %s261
    %s276 = sphi 0, %s262
    %s282 = sphi 0, %s284
    %s285 = sphi 0, %s282
    %s286 = sphi 0, %s285
    %s302 = sphi 0, %s286
    %s306 = sphi 0, %s306
    %s308 = sphi 0, %s306
    %s309 = sphi 0, %s308
    %s323 = sphi 0, %s309
    %s327 = sphi 0, %s327
    %s329 = sphi 0, %s327
    %s330 = sphi 0, %s329
    %s344 = sphi 0, %s330
    %s348 = sphi 0, %s348
    %s350 = sphi 0, %s348
    %s351 = sphi 0, %s350
    %s365 = sphi 0, %s351
    %s369 = sphi 0, %s369
    %s371 = sphi 0, %s369
    %s372 = sphi 0, %s371
    %s386 = sphi 0, %s372
    %s390 = sphi 0, %s390
    %s392 = sphi 0, %s390
    %s393 = sphi 0, %s392
    %s407 = sphi 0, %s393
    %s411 = sphi 0, %s411
    %s413 = sphi 0, %s411
    %s414 = sphi 0, %s413
    %s428 = sphi 0, %s414
    %s432 = sphi 0, %s432
    %s434 = sphi 0, %s432
    %s435 = sphi 0, %s434
    %s449 = sphi 0, %s435
    %s453 = sphi 0, %s453
    %s455 = sphi 0, %s453
    %s456 = sphi 0, %s455
    %s470 = sphi 0, %s456
    %s474 = sphi 0, %s474
    %s476 = sphi 0, %s474
    %s477 = sphi 0, %s476
    %s491 = sphi 0, %s477
    %s495 = sphi 0, %s495
    %s497 = sphi 0, %s495
    %s498 = sphi 0, %s497
    %s512 = sphi 0, %s498
    %s516 = sphi 0, %s516
    %s518 = sphi 0, %s516
    %s519 = sphi 0, %s518
    %s533 = sphi 0, %s519
    %s537 = sphi 0, %s537
    %s539 = sphi 0, %s537
    %s540 = sphi 0, %s539
    %s554 = sphi 0, %s540
    %s558 = sphi 0, %s558
    %s560 = sphi 0, %s558
    %s561 = sphi 0, %s560
    %s575 = sphi 0, %s561
    %s581 = sphi 0, %s583
    %s584 = sphi 0, %s581
    %s585 = sphi 0, %s584
    %s601 = sphi 0, %s585
  $region4: #{upblock_forward.1} parent=0 // loop_header_branch
    %34 = sbr.rel (%p32) target = $region8
  $region5: #{upblock_forward.1} parent=0 // loop_body
    %s36 = ssub.s32 %s31, 1
    %s37 = ssub.s32 %s31, 2
    %s38 = sadd.s32 %s31, 1
    %s39 = ssub.s32 %s31, %s38
    %p40 = scmp.eq.s32.totalorder %s39, 0
    %s42 = sadd.s32 %s41, 1
    %s43 = scalar_select %p40, %s41, %s42
    %p46 = pneg %p40
    %p47 = scmp.eq.s32.totalorder %s31, 1
    %p48 = por %p46, %p47
    %p49 = scmp.ne.s32.totalorder %s41, %s44
    %p50 = scmp.eq.s32.totalorder %s31, 0
    %p51 = por %p49, %p50
    %p52 = scmp.ne.s32.totalorder %s41, %s44
    %p53 = scmp.eq.s32.totalorder %s36, 1
    %p54 = por %p52, %p53
    %p55 = scmp.ne.s32.totalorder %s44, %s45
    %p56 = scmp.eq.s32.totalorder %s36, 0
    %p57 = por %p55, %p56
    %p58 = scmp.ne.s32.totalorder %s44, %s45
    %p59 = scmp.eq.s32.totalorder %s37, 1
    %p60 = por %p58, %p59
    %p62 = scmp.ne.s32.totalorder %s45, %s61
    %p63 = scmp.eq.s32.totalorder %s37, 0
    %p64 = por %p62, %p63
    %s65 = ssub.s32 %s31, %s38
    %p66 = scmp.eq.s32.totalorder %s65, 0
    %s68 = sadd.s32 %s67, 1
    %s69 = scalar_select %p66, %s67, %s68
    %p72 = pneg %p66
    %p73 = scmp.eq.s32.totalorder %s31, 1
    %p74 = por %p72, %p73
    %p75 = scmp.ne.s32.totalorder %s67, %s70
    %p76 = scmp.eq.s32.totalorder %s31, 0
    %p77 = por %p75, %p76
    %p78 = scmp.ne.s32.totalorder %s67, %s70
    %p79 = scmp.eq.s32.totalorder %s36, 1
    %p80 = por %p78, %p79
    %p81 = scmp.ne.s32.totalorder %s70, %s71
    %p82 = scmp.eq.s32.totalorder %s36, 0
    %p83 = por %p81, %p82
    %p84 = scmp.ne.s32.totalorder %s70, %s71
    %p85 = scmp.eq.s32.totalorder %s37, 1
    %p86 = por %p84, %p85
    %p88 = scmp.ne.s32.totalorder %s71, %s87
    %p89 = scmp.eq.s32.totalorder %s37, 0
    %p90 = por %p88, %p89
    %s92 = sadd.s32 %s91, 1
    %p95 = scmp.eq.s32.totalorder %s31, 1
    %p96 = scmp.ne.s32.totalorder %s91, %s93
    %p97 = scmp.eq.s32.totalorder %s31, 0
    %p98 = por %p96, %p97
    %p99 = scmp.ne.s32.totalorder %s91, %s93
    %p100 = scmp.eq.s32.totalorder %s36, 1
    %p101 = por %p99, %p100
    %p102 = scmp.ne.s32.totalorder %s93, %s94
    %p103 = scmp.eq.s32.totalorder %s36, 0
    %p104 = por %p102, %p103
    %p105 = scmp.ne.s32.totalorder %s93, %s94
    %p106 = scmp.eq.s32.totalorder %s37, 1
    %p107 = por %p105, %p106
    %p109 = scmp.ne.s32.totalorder %s94, %s108
    %p110 = scmp.eq.s32.totalorder %s37, 0
    %p111 = por %p109, %p110
    %s113 = sadd.s32 %s112, 1
    %p116 = scmp.eq.s32.totalorder %s31, 1
    %p117 = scmp.ne.s32.totalorder %s112, %s114
    %p118 = scmp.eq.s32.totalorder %s31, 0
    %p119 = por %p117, %p118
    %p120 = scmp.ne.s32.totalorder %s112, %s114
    %p121 = scmp.eq.s32.totalorder %s36, 1
    %p122 = por %p120, %p121
    %p123 = scmp.ne.s32.totalorder %s114, %s115
    %p124 = scmp.eq.s32.totalorder %s36, 0
    %p125 = por %p123, %p124
    %p126 = scmp.ne.s32.totalorder %s114, %s115
    %p127 = scmp.eq.s32.totalorder %s37, 1
    %p128 = por %p126, %p127
    %p130 = scmp.ne.s32.totalorder %s115, %s129
    %p131 = scmp.eq.s32.totalorder %s37, 0
    %p132 = por %p130, %p131
    %s134 = sadd.s32 %s133, 1
    %p137 = scmp.eq.s32.totalorder %s31, 1
    %p138 = scmp.ne.s32.totalorder %s133, %s135
    %p139 = scmp.eq.s32.totalorder %s31, 0
    %p140 = por %p138, %p139
    %p141 = scmp.ne.s32.totalorder %s133, %s135
    %p142 = scmp.eq.s32.totalorder %s36, 1
    %p143 = por %p141, %p142
    %p144 = scmp.ne.s32.totalorder %s135, %s136
    %p145 = scmp.eq.s32.totalorder %s36, 0
    %p146 = por %p144, %p145
    %p147 = scmp.ne.s32.totalorder %s135, %s136
    %p148 = scmp.eq.s32.totalorder %s37, 1
    %p149 = por %p147, %p148
    %p151 = scmp.ne.s32.totalorder %s136, %s150
    %p152 = scmp.eq.s32.totalorder %s37, 0
    %p153 = por %p151, %p152
    %s155 = sadd.s32 %s154, 1
    %p158 = scmp.eq.s32.totalorder %s31, 1
    %p159 = scmp.ne.s32.totalorder %s154, %s156
    %p160 = scmp.eq.s32.totalorder %s31, 0
    %p161 = por %p159, %p160
    %p162 = scmp.ne.s32.totalorder %s154, %s156
    %p163 = scmp.eq.s32.totalorder %s36, 1
    %p164 = por %p162, %p163
    %p165 = scmp.ne.s32.totalorder %s156, %s157
    %p166 = scmp.eq.s32.totalorder %s36, 0
    %p167 = por %p165, %p166
    %p168 = scmp.ne.s32.totalorder %s156, %s157
    %p169 = scmp.eq.s32.totalorder %s37, 1
    %p170 = por %p168, %p169
    %p172 = scmp.ne.s32.totalorder %s157, %s171
    %p173 = scmp.eq.s32.totalorder %s37, 0
    %p174 = por %p172, %p173
    %s176 = sadd.s32 %s175, 1
    %p179 = scmp.eq.s32.totalorder %s31, 1
    %p180 = scmp.ne.s32.totalorder %s175, %s177
    %p181 = scmp.eq.s32.totalorder %s31, 0
    %p182 = por %p180, %p181
    %p183 = scmp.ne.s32.totalorder %s175, %s177
    %p184 = scmp.eq.s32.totalorder %s36, 1
    %p185 = por %p183, %p184
    %p186 = scmp.ne.s32.totalorder %s177, %s178
    %p187 = scmp.eq.s32.totalorder %s36, 0
    %p188 = por %p186, %p187
    %p189 = scmp.ne.s32.totalorder %s177, %s178
    %p190 = scmp.eq.s32.totalorder %s37, 1
    %p191 = por %p189, %p190
    %p193 = scmp.ne.s32.totalorder %s178, %s192
    %p194 = scmp.eq.s32.totalorder %s37, 0
    %p195 = por %p193, %p194
    %s197 = sadd.s32 %s196, 1
    %p200 = scmp.eq.s32.totalorder %s31, 1
    %p201 = scmp.ne.s32.totalorder %s196, %s198
    %p202 = scmp.eq.s32.totalorder %s31, 0
    %p203 = por %p201, %p202
    %p204 = scmp.ne.s32.totalorder %s196, %s198
    %p205 = scmp.eq.s32.totalorder %s36, 1
    %p206 = por %p204, %p205
    %p207 = scmp.ne.s32.totalorder %s198, %s199
    %p208 = scmp.eq.s32.totalorder %s36, 0
    %p209 = por %p207, %p208
    %p210 = scmp.ne.s32.totalorder %s198, %s199
    %p211 = scmp.eq.s32.totalorder %s37, 1
    %p212 = por %p210, %p211
    %p214 = scmp.ne.s32.totalorder %s199, %s213
    %p215 = scmp.eq.s32.totalorder %s37, 0
    %p216 = por %p214, %p215
    %s218 = sadd.s32 %s217, 1
    %p221 = scmp.eq.s32.totalorder %s31, 1
    %p222 = scmp.ne.s32.totalorder %s217, %s219
    %p223 = scmp.eq.s32.totalorder %s31, 0
    %p224 = por %p222, %p223
    %p225 = scmp.ne.s32.totalorder %s217, %s219
    %p226 = scmp.eq.s32.totalorder %s36, 1
    %p227 = por %p225, %p226
    %p228 = scmp.ne.s32.totalorder %s219, %s220
    %p229 = scmp.eq.s32.totalorder %s36, 0
    %p230 = por %p228, %p229
    %p231 = scmp.ne.s32.totalorder %s219, %s220
    %p232 = scmp.eq.s32.totalorder %s37, 1
    %p233 = por %p231, %p232
    %p235 = scmp.ne.s32.totalorder %s220, %s234
    %p236 = scmp.eq.s32.totalorder %s37, 0
    %p237 = por %p235, %p236
    %s239 = sadd.s32 %s238, 1
    %p242 = scmp.eq.s32.totalorder %s31, 1
    %p243 = scmp.ne.s32.totalorder %s238, %s240
    %p244 = scmp.eq.s32.totalorder %s31, 0
    %p245 = por %p243, %p244
    %p246 = scmp.ne.s32.totalorder %s238, %s240
    %p247 = scmp.eq.s32.totalorder %s36, 1
    %p248 = por %p246, %p247
    %p249 = scmp.ne.s32.totalorder %s240, %s241
    %p250 = scmp.eq.s32.totalorder %s36, 0
    %p251 = por %p249, %p250
    %p252 = scmp.ne.s32.totalorder %s240, %s241
    %p253 = scmp.eq.s32.totalorder %s37, 1
    %p254 = por %p252, %p253
    %p256 = scmp.ne.s32.totalorder %s241, %s255
    %p257 = scmp.eq.s32.totalorder %s37, 0
    %p258 = por %p256, %p257
    %s260 = sadd.s32 %s259, 1
    %p263 = scmp.eq.s32.totalorder %s31, 1
    %p264 = scmp.ne.s32.totalorder %s259, %s261
    %p265 = scmp.eq.s32.totalorder %s31, 0
    %p266 = por %p264, %p265
    %p267 = scmp.ne.s32.totalorder %s259, %s261
    %p268 = scmp.eq.s32.totalorder %s36, 1
    %p269 = por %p267, %p268
    %p270 = scmp.ne.s32.totalorder %s261, %s262
    %p271 = scmp.eq.s32.totalorder %s36, 0
    %p272 = por %p270, %p271
    %p273 = scmp.ne.s32.totalorder %s261, %s262
    %p274 = scmp.eq.s32.totalorder %s37, 1
    %p275 = por %p273, %p274
    %p277 = scmp.ne.s32.totalorder %s262, %s276
    %p278 = scmp.eq.s32.totalorder %s37, 0
    %p279 = por %p277, %p278
    %s280 = ssub.s32 %s31, %s38
    %p281 = scmp.eq.s32.totalorder %s280, 0
    %s283 = sadd.s32 %s282, 1
    %s284 = scalar_select %p281, %s282, %s283
    %p287 = pneg %p281
    %p288 = scmp.eq.s32.totalorder %s31, 1
    %p289 = por %p287, %p288
    %p290 = scmp.ne.s32.totalorder %s282, %s285
    %p291 = scmp.eq.s32.totalorder %s31, 0
    %p292 = por %p290, %p291
    %p293 = scmp.ne.s32.totalorder %s282, %s285
    %p294 = scmp.eq.s32.totalorder %s36, 1
    %p295 = por %p293, %p294
    %p296 = scmp.ne.s32.totalorder %s285, %s286
    %p297 = scmp.eq.s32.totalorder %s36, 0
    %p298 = por %p296, %p297
    %p299 = scmp.ne.s32.totalorder %s285, %s286
    %p300 = scmp.eq.s32.totalorder %s37, 1
    %p301 = por %p299, %p300
    %p303 = scmp.ne.s32.totalorder %s286, %s302
    %p304 = scmp.eq.s32.totalorder %s37, 0
    %p305 = por %p303, %p304
    %s307 = sadd.s32 %s306, 1
    %p310 = scmp.eq.s32.totalorder %s31, 1
    %p311 = scmp.ne.s32.totalorder %s306, %s308
    %p312 = scmp.eq.s32.totalorder %s31, 0
    %p313 = por %p311, %p312
    %p314 = scmp.ne.s32.totalorder %s306, %s308
    %p315 = scmp.eq.s32.totalorder %s36, 1
    %p316 = por %p314, %p315
    %p317 = scmp.ne.s32.totalorder %s308, %s309
    %p318 = scmp.eq.s32.totalorder %s36, 0
    %p319 = por %p317, %p318
    %p320 = scmp.ne.s32.totalorder %s308, %s309
    %p321 = scmp.eq.s32.totalorder %s37, 1
    %p322 = por %p320, %p321
    %p324 = scmp.ne.s32.totalorder %s309, %s323
    %p325 = scmp.eq.s32.totalorder %s37, 0
    %p326 = por %p324, %p325
    %s328 = sadd.s32 %s327, 1
    %p331 = scmp.eq.s32.totalorder %s31, 1
    %p332 = scmp.ne.s32.totalorder %s327, %s329
    %p333 = scmp.eq.s32.totalorder %s31, 0
    %p334 = por %p332, %p333
    %p335 = scmp.ne.s32.totalorder %s327, %s329
    %p336 = scmp.eq.s32.totalorder %s36, 1
    %p337 = por %p335, %p336
    %p338 = scmp.ne.s32.totalorder %s329, %s330
    %p339 = scmp.eq.s32.totalorder %s36, 0
    %p340 = por %p338, %p339
    %p341 = scmp.ne.s32.totalorder %s329, %s330
    %p342 = scmp.eq.s32.totalorder %s37, 1
    %p343 = por %p341, %p342
    %p345 = scmp.ne.s32.totalorder %s330, %s344
    %p346 = scmp.eq.s32.totalorder %s37, 0
    %p347 = por %p345, %p346
    %s349 = sadd.s32 %s348, 1
    %p352 = scmp.eq.s32.totalorder %s31, 1
    %p353 = scmp.ne.s32.totalorder %s348, %s350
    %p354 = scmp.eq.s32.totalorder %s31, 0
    %p355 = por %p353, %p354
    %p356 = scmp.ne.s32.totalorder %s348, %s350
    %p357 = scmp.eq.s32.totalorder %s36, 1
    %p358 = por %p356, %p357
    %p359 = scmp.ne.s32.totalorder %s350, %s351
    %p360 = scmp.eq.s32.totalorder %s36, 0
    %p361 = por %p359, %p360
    %p362 = scmp.ne.s32.totalorder %s350, %s351
    %p363 = scmp.eq.s32.totalorder %s37, 1
    %p364 = por %p362, %p363
    %p366 = scmp.ne.s32.totalorder %s351, %s365
    %p367 = scmp.eq.s32.totalorder %s37, 0
    %p368 = por %p366, %p367
    %s370 = sadd.s32 %s369, 1
    %p373 = scmp.eq.s32.totalorder %s31, 1
    %p374 = scmp.ne.s32.totalorder %s369, %s371
    %p375 = scmp.eq.s32.totalorder %s31, 0
    %p376 = por %p374, %p375
    %p377 = scmp.ne.s32.totalorder %s369, %s371
    %p378 = scmp.eq.s32.totalorder %s36, 1
    %p379 = por %p377, %p378
    %p380 = scmp.ne.s32.totalorder %s371, %s372
    %p381 = scmp.eq.s32.totalorder %s36, 0
    %p382 = por %p380, %p381
    %p383 = scmp.ne.s32.totalorder %s371, %s372
    %p384 = scmp.eq.s32.totalorder %s37, 1
    %p385 = por %p383, %p384
    %p387 = scmp.ne.s32.totalorder %s372, %s386
    %p388 = scmp.eq.s32.totalorder %s37, 0
    %p389 = por %p387, %p388
    %s391 = sadd.s32 %s390, 1
    %p394 = scmp.eq.s32.totalorder %s31, 1
    %p395 = scmp.ne.s32.totalorder %s390, %s392
    %p396 = scmp.eq.s32.totalorder %s31, 0
    %p397 = por %p395, %p396
    %p398 = scmp.ne.s32.totalorder %s390, %s392
    %p399 = scmp.eq.s32.totalorder %s36, 1
    %p400 = por %p398, %p399
    %p401 = scmp.ne.s32.totalorder %s392, %s393
    %p402 = scmp.eq.s32.totalorder %s36, 0
    %p403 = por %p401, %p402
    %p404 = scmp.ne.s32.totalorder %s392, %s393
    %p405 = scmp.eq.s32.totalorder %s37, 1
    %p406 = por %p404, %p405
    %p408 = scmp.ne.s32.totalorder %s393, %s407
    %p409 = scmp.eq.s32.totalorder %s37, 0
    %p410 = por %p408, %p409
    %s412 = sadd.s32 %s411, 1
    %p415 = scmp.eq.s32.totalorder %s31, 1
    %p416 = scmp.ne.s32.totalorder %s411, %s413
    %p417 = scmp.eq.s32.totalorder %s31, 0
    %p418 = por %p416, %p417
    %p419 = scmp.ne.s32.totalorder %s411, %s413
    %p420 = scmp.eq.s32.totalorder %s36, 1
    %p421 = por %p419, %p420
    %p422 = scmp.ne.s32.totalorder %s413, %s414
    %p423 = scmp.eq.s32.totalorder %s36, 0
    %p424 = por %p422, %p423
    %p425 = scmp.ne.s32.totalorder %s413, %s414
    %p426 = scmp.eq.s32.totalorder %s37, 1
    %p427 = por %p425, %p426
    %p429 = scmp.ne.s32.totalorder %s414, %s428
    %p430 = scmp.eq.s32.totalorder %s37, 0
    %p431 = por %p429, %p430
    %s433 = sadd.s32 %s432, 1
    %p436 = scmp.eq.s32.totalorder %s31, 1
    %p437 = scmp.ne.s32.totalorder %s432, %s434
    %p438 = scmp.eq.s32.totalorder %s31, 0
    %p439 = por %p437, %p438
    %p440 = scmp.ne.s32.totalorder %s432, %s434
    %p441 = scmp.eq.s32.totalorder %s36, 1
    %p442 = por %p440, %p441
    %p443 = scmp.ne.s32.totalorder %s434, %s435
    %p444 = scmp.eq.s32.totalorder %s36, 0
    %p445 = por %p443, %p444
    %p446 = scmp.ne.s32.totalorder %s434, %s435
    %p447 = scmp.eq.s32.totalorder %s37, 1
    %p448 = por %p446, %p447
    %p450 = scmp.ne.s32.totalorder %s435, %s449
    %p451 = scmp.eq.s32.totalorder %s37, 0
    %p452 = por %p450, %p451
    %s454 = sadd.s32 %s453, 1
    %p457 = scmp.eq.s32.totalorder %s31, 1
    %p458 = scmp.ne.s32.totalorder %s453, %s455
    %p459 = scmp.eq.s32.totalorder %s31, 0
    %p460 = por %p458, %p459
    %p461 = scmp.ne.s32.totalorder %s453, %s455
    %p462 = scmp.eq.s32.totalorder %s36, 1
    %p463 = por %p461, %p462
    %p464 = scmp.ne.s32.totalorder %s455, %s456
    %p465 = scmp.eq.s32.totalorder %s36, 0
    %p466 = por %p464, %p465
    %p467 = scmp.ne.s32.totalorder %s455, %s456
    %p468 = scmp.eq.s32.totalorder %s37, 1
    %p469 = por %p467, %p468
    %p471 = scmp.ne.s32.totalorder %s456, %s470
    %p472 = scmp.eq.s32.totalorder %s37, 0
    %p473 = por %p471, %p472
    %s475 = sadd.s32 %s474, 1
    %p478 = scmp.eq.s32.totalorder %s31, 1
    %p479 = scmp.ne.s32.totalorder %s474, %s476
    %p480 = scmp.eq.s32.totalorder %s31, 0
    %p481 = por %p479, %p480
    %p482 = scmp.ne.s32.totalorder %s474, %s476
    %p483 = scmp.eq.s32.totalorder %s36, 1
    %p484 = por %p482, %p483
    %p485 = scmp.ne.s32.totalorder %s476, %s477
    %p486 = scmp.eq.s32.totalorder %s36, 0
    %p487 = por %p485, %p486
    %p488 = scmp.ne.s32.totalorder %s476, %s477
    %p489 = scmp.eq.s32.totalorder %s37, 1
    %p490 = por %p488, %p489
    %p492 = scmp.ne.s32.totalorder %s477, %s491
    %p493 = scmp.eq.s32.totalorder %s37, 0
    %p494 = por %p492, %p493
    %s496 = sadd.s32 %s495, 1
    %p499 = scmp.eq.s32.totalorder %s31, 1
    %p500 = scmp.ne.s32.totalorder %s495, %s497
    %p501 = scmp.eq.s32.totalorder %s31, 0
    %p502 = por %p500, %p501
    %p503 = scmp.ne.s32.totalorder %s495, %s497
    %p504 = scmp.eq.s32.totalorder %s36, 1
    %p505 = por %p503, %p504
    %p506 = scmp.ne.s32.totalorder %s497, %s498
    %p507 = scmp.eq.s32.totalorder %s36, 0
    %p508 = por %p506, %p507
    %p509 = scmp.ne.s32.totalorder %s497, %s498
    %p510 = scmp.eq.s32.totalorder %s37, 1
    %p511 = por %p509, %p510
    %p513 = scmp.ne.s32.totalorder %s498, %s512
    %p514 = scmp.eq.s32.totalorder %s37, 0
    %p515 = por %p513, %p514
    %s517 = sadd.s32 %s516, 1
    %p520 = scmp.eq.s32.totalorder %s31, 1
    %p521 = scmp.ne.s32.totalorder %s516, %s518
    %p522 = scmp.eq.s32.totalorder %s31, 0
    %p523 = por %p521, %p522
    %p524 = scmp.ne.s32.totalorder %s516, %s518
    %p525 = scmp.eq.s32.totalorder %s36, 1
    %p526 = por %p524, %p525
    %p527 = scmp.ne.s32.totalorder %s518, %s519
    %p528 = scmp.eq.s32.totalorder %s36, 0
    %p529 = por %p527, %p528
    %p530 = scmp.ne.s32.totalorder %s518, %s519
    %p531 = scmp.eq.s32.totalorder %s37, 1
    %p532 = por %p530, %p531
    %p534 = scmp.ne.s32.totalorder %s519, %s533
    %p535 = scmp.eq.s32.totalorder %s37, 0
    %p536 = por %p534, %p535
    %s538 = sadd.s32 %s537, 1
    %p541 = scmp.eq.s32.totalorder %s31, 1
    %p542 = scmp.ne.s32.totalorder %s537, %s539
    %p543 = scmp.eq.s32.totalorder %s31, 0
    %p544 = por %p542, %p543
    %p545 = scmp.ne.s32.totalorder %s537, %s539
    %p546 = scmp.eq.s32.totalorder %s36, 1
    %p547 = por %p545, %p546
    %p548 = scmp.ne.s32.totalorder %s539, %s540
    %p549 = scmp.eq.s32.totalorder %s36, 0
    %p550 = por %p548, %p549
    %p551 = scmp.ne.s32.totalorder %s539, %s540
    %p552 = scmp.eq.s32.totalorder %s37, 1
    %p553 = por %p551, %p552
    %p555 = scmp.ne.s32.totalorder %s540, %s554
    %p556 = scmp.eq.s32.totalorder %s37, 0
    %p557 = por %p555, %p556
    %s559 = sadd.s32 %s558, 1
    %p562 = scmp.eq.s32.totalorder %s31, 1
    %p563 = scmp.ne.s32.totalorder %s558, %s560
    %p564 = scmp.eq.s32.totalorder %s31, 0
    %p565 = por %p563, %p564
    %p566 = scmp.ne.s32.totalorder %s558, %s560
    %p567 = scmp.eq.s32.totalorder %s36, 1
    %p568 = por %p566, %p567
    %p569 = scmp.ne.s32.totalorder %s560, %s561
    %p570 = scmp.eq.s32.totalorder %s36, 0
    %p571 = por %p569, %p570
    %p572 = scmp.ne.s32.totalorder %s560, %s561
    %p573 = scmp.eq.s32.totalorder %s37, 1
    %p574 = por %p572, %p573
    %p576 = scmp.ne.s32.totalorder %s561, %s575
    %p577 = scmp.eq.s32.totalorder %s37, 0
    %p578 = por %p576, %p577
    %s579 = ssub.s32 %s31, %s38
    %p580 = scmp.eq.s32.totalorder %s579, 0
    %s582 = sadd.s32 %s581, 1
    %s583 = scalar_select %p580, %s581, %s582
    %p586 = pneg %p580
    %p587 = scmp.eq.s32.totalorder %s31, 1
    %p588 = por %p586, %p587
    %p589 = scmp.ne.s32.totalorder %s581, %s584
    %p590 = scmp.eq.s32.totalorder %s31, 0
    %p591 = por %p589, %p590
    %p592 = scmp.ne.s32.totalorder %s581, %s584
    %p593 = scmp.eq.s32.totalorder %s36, 1
    %p594 = por %p592, %p593
    %p595 = scmp.ne.s32.totalorder %s584, %s585
    %p596 = scmp.eq.s32.totalorder %s36, 0
    %p597 = por %p595, %p596
    %p598 = scmp.ne.s32.totalorder %s584, %s585
    %p599 = scmp.eq.s32.totalorder %s37, 1
    %p600 = por %p598, %p599
    %p602 = scmp.ne.s32.totalorder %s585, %s601
    %p603 = scmp.eq.s32.totalorder %s37, 0
    %p604 = por %p602, %p603
    %p605 = scmp.le.s32.totalorder 1, %s31
    %p606 = scmp.lt.s32.totalorder %s31, 3
    %p607 = pnand %p605, %p606
    %p608 = pneg %p607
    // Predicated region
    $region9: #{upblock_forward.1} parent=5 // pred_check
      _
    $region10: #{upblock_forward.1} parent=5 // pred_check_branch
      %610 = sbr.rel (%p607) target = $region12
    $region11: #{upblock_forward.1} parent=5 // pred_region
      %s611 = ssub.s32 %s31, 1
      // Predicated region
      $region13: #{upblock_forward.1} parent=11 // pred_check
        %p612 = pneg %p104
      $region14: #{upblock_forward.1} parent=11 // pred_check_branch
        %614 = sbr.rel (%p612) target = $region16
      $region15: #{upblock_forward.1} parent=11 // pred_region
        _
      $region16: #{upblock_forward.1} parent=11 // pred_fallthru
        _
      // Predicated region
      $region17: #{upblock_forward.1} parent=11 // pred_check
        %p615 = pneg %p125
      $region18: #{upblock_forward.1} parent=11 // pred_check_branch
        %617 = sbr.rel (%p615) target = $region20
      $region19: #{upblock_forward.1} parent=11 // pred_region
        _
      $region20: #{upblock_forward.1} parent=11 // pred_fallthru
        _
      // Predicated region
      $region21: #{upblock_forward.1} parent=11 // pred_check
        %p618 = pneg %p146
      $region22: #{upblock_forward.1} parent=11 // pred_check_branch
        %620 = sbr.rel (%p618) target = $region24
      $region23: #{upblock_forward.1} parent=11 // pred_region
        _
      $region24: #{upblock_forward.1} parent=11 // pred_fallthru
        _
      // Predicated region
      $region25: #{upblock_forward.1} parent=11 // pred_check
        %p621 = pneg %p167
      $region26: #{upblock_forward.1} parent=11 // pred_check_branch
        %623 = sbr.rel (%p621) target = $region28
      $region27: #{upblock_forward.1} parent=11 // pred_region
        _
      $region28: #{upblock_forward.1} parent=11 // pred_fallthru
        _
      // Predicated region
      $region29: #{upblock_forward.1} parent=11 // pred_check
        %p624 = pneg %p188
      $region30: #{upblock_forward.1} parent=11 // pred_check_branch
        %626 = sbr.rel (%p624) target = $region32
      $region31: #{upblock_forward.1} parent=11 // pred_region
        _
      $region32: #{upblock_forward.1} parent=11 // pred_fallthru
        _
      // Predicated region
      $region33: #{upblock_forward.1} parent=11 // pred_check
        %p627 = pneg %p209
      $region34: #{upblock_forward.1} parent=11 // pred_check_branch
        %629 = sbr.rel (%p627) target = $region36
      $region35: #{upblock_forward.1} parent=11 // pred_region
        _
      $region36: #{upblock_forward.1} parent=11 // pred_fallthru
        _
      // Predicated region
      $region37: #{upblock_forward.1} parent=11 // pred_check
        %p630 = pneg %p230
      $region38: #{upblock_forward.1} parent=11 // pred_check_branch
        %632 = sbr.rel (%p630) target = $region40
      $region39: #{upblock_forward.1} parent=11 // pred_region
        _
      $region40: #{upblock_forward.1} parent=11 // pred_fallthru
        _
      // Predicated region
      $region41: #{upblock_forward.1} parent=11 // pred_check
        %p633 = pneg %p251
      $region42: #{upblock_forward.1} parent=11 // pred_check_branch
        %635 = sbr.rel (%p633) target = $region44
      $region43: #{upblock_forward.1} parent=11 // pred_region
        _
      $region44: #{upblock_forward.1} parent=11 // pred_fallthru
        _
      // Predicated region
      $region45: #{upblock_forward.1} parent=11 // pred_check
        %p636 = pneg %p272
      $region46: #{upblock_forward.1} parent=11 // pred_check_branch
        %638 = sbr.rel (%p636) target = $region48
      $region47: #{upblock_forward.1} parent=11 // pred_region
        _
      $region48: #{upblock_forward.1} parent=11 // pred_fallthru
        _
      // Predicated region
      $region49: #{upblock_forward.1} parent=11 // pred_check
        %p639 = pneg %p319
      $region50: #{upblock_forward.1} parent=11 // pred_check_branch
        %641 = sbr.rel (%p639) target = $region52
      $region51: #{upblock_forward.1} parent=11 // pred_region
        _
      $region52: #{upblock_forward.1} parent=11 // pred_fallthru
        _
      // Predicated region
      $region53: #{upblock_forward.1} parent=11 // pred_check
        %p642 = pneg %p340
      $region54: #{upblock_forward.1} parent=11 // pred_check_branch
        %644 = sbr.rel (%p642) target = $region56
      $region55: #{upblock_forward.1} parent=11 // pred_region
        _
      $region56: #{upblock_forward.1} parent=11 // pred_fallthru
        _
      // Predicated region
      $region57: #{upblock_forward.1} parent=11 // pred_check
        %p645 = pneg %p361
      $region58: #{upblock_forward.1} parent=11 // pred_check_branch
        %647 = sbr.rel (%p645) target = $region60
      $region59: #{upblock_forward.1} parent=11 // pred_region
        _
      $region60: #{upblock_forward.1} parent=11 // pred_fallthru
        _
      // Predicated region
      $region61: #{upblock_forward.1} parent=11 // pred_check
        %p648 = pneg %p382
      $region62: #{upblock_forward.1} parent=11 // pred_check_branch
        %650 = sbr.rel (%p648) target = $region64
      $region63: #{upblock_forward.1} parent=11 // pred_region
        _
      $region64: #{upblock_forward.1} parent=11 // pred_fallthru
        _
      // Predicated region
      $region65: #{upblock_forward.1} parent=11 // pred_check
        %p651 = pneg %p403
      $region66: #{upblock_forward.1} parent=11 // pred_check_branch
        %653 = sbr.rel (%p651) target = $region68
      $region67: #{upblock_forward.1} parent=11 // pred_region
        _
      $region68: #{upblock_forward.1} parent=11 // pred_fallthru
        _
      // Predicated region
      $region69: #{upblock_forward.1} parent=11 // pred_check
        %p654 = pneg %p424
      $region70: #{upblock_forward.1} parent=11 // pred_check_branch
        %656 = sbr.rel (%p654) target = $region72
      $region71: #{upblock_forward.1} parent=11 // pred_region
        _
      $region72: #{upblock_forward.1} parent=11 // pred_fallthru
        _
      // Predicated region
      $region73: #{upblock_forward.1} parent=11 // pred_check
        %p657 = pneg %p445
      $region74: #{upblock_forward.1} parent=11 // pred_check_branch
        %659 = sbr.rel (%p657) target = $region76
      $region75: #{upblock_forward.1} parent=11 // pred_region
        _
      $region76: #{upblock_forward.1} parent=11 // pred_fallthru
        _
      // Predicated region
      $region77: #{upblock_forward.1} parent=11 // pred_check
        %p660 = pneg %p466
      $region78: #{upblock_forward.1} parent=11 // pred_check_branch
        %662 = sbr.rel (%p660) target = $region80
      $region79: #{upblock_forward.1} parent=11 // pred_region
        _
      $region80: #{upblock_forward.1} parent=11 // pred_fallthru
        _
      // Predicated region
      $region81: #{upblock_forward.1} parent=11 // pred_check
        %p663 = pneg %p487
      $region82: #{upblock_forward.1} parent=11 // pred_check_branch
        %665 = sbr.rel (%p663) target = $region84
      $region83: #{upblock_forward.1} parent=11 // pred_region
        _
      $region84: #{upblock_forward.1} parent=11 // pred_fallthru
        _
      // Predicated region
      $region85: #{upblock_forward.1} parent=11 // pred_check
        %p666 = pneg %p508
      $region86: #{upblock_forward.1} parent=11 // pred_check_branch
        %668 = sbr.rel (%p666) target = $region88
      $region87: #{upblock_forward.1} parent=11 // pred_region
        _
      $region88: #{upblock_forward.1} parent=11 // pred_fallthru
        _
      // Predicated region
      $region89: #{upblock_forward.1} parent=11 // pred_check
        %p669 = pneg %p529
      $region90: #{upblock_forward.1} parent=11 // pred_check_branch
        %671 = sbr.rel (%p669) target = $region92
      $region91: #{upblock_forward.1} parent=11 // pred_region
        _
      $region92: #{upblock_forward.1} parent=11 // pred_fallthru
        _
      // Predicated region
      $region93: #{upblock_forward.1} parent=11 // pred_check
        %p672 = pneg %p550
      $region94: #{upblock_forward.1} parent=11 // pred_check_branch
        %674 = sbr.rel (%p672) target = $region96
      $region95: #{upblock_forward.1} parent=11 // pred_region
        _
      $region96: #{upblock_forward.1} parent=11 // pred_fallthru
        _
      // Predicated region
      $region97: #{upblock_forward.1} parent=11 // pred_check
        %p675 = pneg %p571
      $region98: #{upblock_forward.1} parent=11 // pred_check_branch
        %677 = sbr.rel (%p675) target = $region100
      $region99: #{upblock_forward.1} parent=11 // pred_region
        _
      $region100: #{upblock_forward.1} parent=11 // pred_fallthru
        _
    $region12: #{upblock_forward.1} parent=5 // pred_fallthru
      _
    %p678 = scmp.lt.s32.totalorder %s31, 2
    // Predicated region
    $region101: #{upblock_forward.1} parent=5 // pred_check
      %p679 = pneg %p678
    $region102: #{upblock_forward.1} parent=5 // pred_check_branch
      %681 = sbr.rel (%p679) target = $region104
    $region103: #{upblock_forward.1} parent=5 // pred_region
      // Predicated region
      $region105: #{upblock_forward.1} parent=103 // pred_check
        %p682 = pneg %p51
      $region106: #{upblock_forward.1} parent=103 // pred_check_branch
        %684 = sbr.rel (%p682) target = $region108
      $region107: #{upblock_forward.1} parent=103 // pred_region
        %p685 = scmp.lt.s32.totalorder %s31, 1
        %s686 = scalar_select %p685, %s31, 1
        %s687 = smul.addr %s686, 4
        %s688 = smul.addr %s687, 4
        %s689 = scalar_lea.vmem %s0, %s688
      $region108: #{upblock_forward.1} parent=103 // pred_fallthru
        _
      // Predicated region
      $region109: #{upblock_forward.1} parent=103 // pred_check
        %p690 = pneg %p77
      $region110: #{upblock_forward.1} parent=103 // pred_check_branch
        %692 = sbr.rel (%p690) target = $region112
      $region111: #{upblock_forward.1} parent=103 // pred_region
        %p693 = scmp.lt.s32.totalorder %s31, 1
        %s694 = scalar_select %p693, %s31, 1
        %s695 = smul.addr %s694, 2
        %s696 = smul.addr %s695, 4
        %s697 = scalar_lea.vmem %s1, %s696
      $region112: #{upblock_forward.1} parent=103 // pred_fallthru
        _
      // Predicated region
      $region113: #{upblock_forward.1} parent=103 // pred_check
        %p698 = pneg %p292
      $region114: #{upblock_forward.1} parent=103 // pred_check_branch
        %700 = sbr.rel (%p698) target = $region116
      $region115: #{upblock_forward.1} parent=103 // pred_region
        %p701 = scmp.lt.s32.totalorder %s31, 1
        %s702 = scalar_select %p701, %s31, 1
        %s703 = smul.addr %s702, 8
        %s704 = scalar_lea.vmem %s11, %s703
      $region116: #{upblock_forward.1} parent=103 // pred_fallthru
        _
    $region104: #{upblock_forward.1} parent=5 // pred_fallthru
      _
    %p705 = scmp.le.s32.totalorder 1, %s31
    %p706 = scmp.lt.s32.totalorder %s31, 3
    %p707 = pnand %p705, %p706
    %p708 = pneg %p707
    // Predicated region
    $region117: #{upblock_forward.1} parent=5 // pred_check
      _
    $region118: #{upblock_forward.1} parent=5 // pred_check_branch
      %710 = sbr.rel (%p707) target = $region120
    $region119: #{upblock_forward.1} parent=5 // pred_region
      %s711 = ssub.s32 %s31, 1
      %p712 = scmp.lt.s32.totalorder %s36, 1
      %s713 = scalar_select %p712, %s36, 1
      %s714 = smul.addr %s713, 4
      %s715 = smul.addr %s714, 4
      %s716 = scalar_lea.vmem %s0, %s715
      %p717 = pneg %p57
      %p718 = pneg %p54
      %p719 = scmp.lt.s32.totalorder %s36, 1
      %s720 = scalar_select %p719, %s36, 1
      %s721 = smul.addr %s720, 2
      %s722 = smul.addr %s721, 4
      %s723 = scalar_lea.vmem %s1, %s722
      %p724 = pneg %p83
      %p725 = pneg %p80
      %p726 = pneg %p104
      %p727 = pneg %p101
      %p728 = pneg %p125
      %p729 = pneg %p122
      %p730 = pneg %p146
      %p731 = pneg %p143
      %p732 = pneg %p167
      %p733 = pneg %p164
      %p734 = pneg %p188
      %p735 = pneg %p185
      %p736 = pneg %p209
      %p737 = pneg %p206
      %p738 = pneg %p230
      %p739 = pneg %p227
      %p740 = pneg %p251
      %p741 = pneg %p248
      %p742 = pneg %p272
      %p743 = pneg %p269
      %p744 = scmp.lt.s32.totalorder %s36, 1
      %s745 = scalar_select %p744, %s36, 1
      %s746 = smul.addr %s745, 8
      %s747 = scalar_lea.vmem %s11, %s746
      %p748 = pneg %p298
      %p749 = pneg %p295
      %p750 = pneg %p319
      %p751 = pneg %p316
      %p752 = pneg %p340
      %p753 = pneg %p337
      %p754 = pneg %p361
      %p755 = pneg %p358
      %p756 = pneg %p382
      %p757 = pneg %p379
      %p758 = pneg %p403
      %p759 = pneg %p400
      %p760 = pneg %p424
      %p761 = pneg %p421
      %p762 = pneg %p445
      %p763 = pneg %p442
      %p764 = pneg %p466
      %p765 = pneg %p463
      %p766 = pneg %p487
      %p767 = pneg %p484
      %p768 = pneg %p508
      %p769 = pneg %p505
      %p770 = pneg %p529
      %p771 = pneg %p526
      %p772 = pneg %p550
      %p773 = pneg %p547
      %p774 = pneg %p571
      %p775 = pneg %p568
      %p776 = pneg %p597
      %p777 = pneg %p594
      %p778 = scmp.lt.s32.totalorder %s36, 1
      %s779 = scalar_select %p778, %s36, 1
      %s780 = smul.addr %s779, 2
      %s781 = smul.addr %s780, 8
      %s782 = scalar_lea.vmem %s25, %s781
      %p783 = scmp.lt.s32.totalorder %s36, 1
      %s784 = scalar_select %p783, %s36, 1
      %s785 = smul.addr %s784, 4
      %s786 = smul.addr %s785, 4
      %s787 = scalar_lea.vmem %s0, %s786
      %p788 = scmp.lt.s32.totalorder %s36, 1
      %s789 = scalar_select %p788, %s36, 1
      %s790 = smul.addr %s789, 2
      %s791 = smul.addr %s790, 4
      %s792 = scalar_lea.vmem %s1, %s791
      %p793 = scmp.lt.s32.totalorder %s36, 1
      %s794 = scalar_select %p793, %s36, 1
      %s795 = smul.addr %s794, 8
      %s796 = scalar_lea.vmem %s11, %s795
      %p797 = scmp.lt.s32.totalorder %s36, 1
      %s798 = scalar_select %p797, %s36, 1
      %s799 = smul.addr %s798, 2
      %s800 = smul.addr %s799, 8
      %s801 = scalar_lea.vmem %s25, %s800
      %v803 = vld [vmem:[%s7] sm:$0xff]
      %v804 = vld [vmem:[%s7 + $0x8] sm:$0xff]
      %v805 = vld [vmem:[%s7 + $0x10] sm:$0x1]
      %v806 = vld [vmem:[%s7 + $0x18] sm:$0x1]
      %v811 = vrot.slane %v804, 7
      %v812 = vrot.slane %v806, 7
      %vm813 = vcmask 1040384
      %v814 = vsel %vm813, %v803, %v811
      %vm815 = vcmask 1041409
      %v816 = vsel %vm815, %v803, %v811
      %v817 = vrot.slane %v816, 1
      %vm818 = vcmask 1042434
      %v819 = vsel %vm818, %v803, %v811
      %v820 = vrot.slane %v819, 2
      %vm821 = vcmask 1043459
      %v822 = vsel %vm821, %v803, %v811
      %v823 = vrot.slane %v822, 3
      %vm824 = vcmask 1044484
      %v825 = vsel %vm824, %v803, %v811
      %v826 = vrot.slane %v825, 4
      %vm827 = vcmask 1045509
      %v828 = vsel %vm827, %v803, %v811
      %v829 = vrot.slane %v828, 5
      %vm830 = vcmask 1046534
      %v831 = vsel %vm830, %v803, %v811
      %v832 = vrot.slane %v831, 6
      %vm833 = vcmask 1046528
      %v834 = vsel %vm833, %v811, %v803
      %v835 = vrot.slane %v834, 7
      %v836 = vsel %vm813, %v805, %v812
      %v837 = vperm.slane %v814, 0
      %v838 = vperm.slane %v814, 1
      %v839 = vperm.slane %v817, 0
      %v840 = vperm.slane %v817, 1
      %v841 = vperm.slane %v820, 0
      %v842 = vperm.slane %v820, 1
      %v843 = vperm.slane %v823, 0
      %v844 = vperm.slane %v823, 1
      %v845 = vperm.slane %v826, 0
      %v846 = vperm.slane %v826, 1
      %v847 = vperm.slane %v829, 0
      %v848 = vperm.slane %v829, 1
      %v849 = vperm.slane %v832, 0
      %v850 = vperm.slane %v832, 1
      %v851 = vperm.slane %v835, 0
      %v852 = vperm.slane %v835, 1
      %v853 = vperm.slane %v836, 0
      %v854 = vperm.slane %v836, 1
      %v873 = vld [vmem:[%s787] sm:$0xff]
      %v874 = vld [vmem:[%s787 + $0x8] sm:$0xff]
      %v875 = vld [vmem:[%s3] sm:$0xf]
      %v876 = vld [vmem:[%s2] sm:$0x3]
      %v879 = vunpack.c.l.b16 %v873
      %v880 = vunpack.c.h.b16 %v873
      %v881 = vunpack.c.l.b16 %v874
      %v882 = vunpack.c.h.b16 %v874
      %v883 = vpack.c.b16 %v881, %v879
      %v884 = vpack.c.b16 %v882, %v880
      %vm887 = vcmask 130048
      %v889 = vsel %vm887, %v876, 0
      %891 = vmatpush.bf16.msra.mxu0 0
      %892 = vmatpush.bf16.msra.mxu0 0
      %893 = vmatpush.bf16.msra.mxu0 0
      %894 = vmatpush.bf16.msra.mxu0 0
      %895 = vmatpush.bf16.msra.mxu0 0
      %896 = vmatpush.bf16.msra.mxu0 0
      %897 = vmatpush.bf16.msra.mxu0 0
      %898 = vmatpush.bf16.msra.mxu0 %v883
      %899 = vmatmul.bf16.gmra.mxu0 %v889
      %v900 = vpop.f32.mrf.mxu0
      %v901 = vadd.f32 0.0, %v900
      %v902 = vpop.f32.mrf.mxu0
      %903 = vdwg.mxu0
      %904 = vmatpush.bf16.msra.mxu0 0
      %905 = vmatpush.bf16.msra.mxu0 0
      %906 = vmatpush.bf16.msra.mxu0 0
      %907 = vmatpush.bf16.msra.mxu0 0
      %908 = vmatpush.bf16.msra.mxu0 0
      %909 = vmatpush.bf16.msra.mxu0 0
      %910 = vmatpush.bf16.msra.mxu0 0
      %911 = vmatpush.bf16.msra.mxu0 %v884
      %912 = vmatmul.bf16.gmra.mxu0 %v889
      %v913 = vpop.f32.mrf.mxu0
      %v914 = vadd.f32 0.0, %v913
      %v915 = vpop.f32.mrf.mxu0
      %916 = vdwg.mxu0
      %v917 = vld [vmem:[%s4] sm:$0x3]
      %v919 = vperm.slane %v917, 0
      %v920 = vperm.slane %v917, 1
      %v923 = vmul.f32 %v901, %v919
      %v924 = vmul.f32 %v914, %v920
      %926 = vset.pattern.permute.xlu0 0
      %927 = vperm.xlu0 %926, %v875
      %v928 = vpop.permute.xlu0 %927
      %v930 = vadd.f32 %v928, %v923
      %v931 = vadd.f32 %v928, %v924
      %s932 = scalar_lea.vmem %s2, 2
      %v933 = vld [vmem:[%s932] sm:$0x3]
      %v935 = vsel %vm887, %v933, 0
      %937 = vmatpush.bf16.msra.mxu0 0
      %938 = vmatpush.bf16.msra.mxu0 0
      %939 = vmatpush.bf16.msra.mxu0 0
      %940 = vmatpush.bf16.msra.mxu0 0
      %941 = vmatpush.bf16.msra.mxu0 0
      %942 = vmatpush.bf16.msra.mxu0 0
      %943 = vmatpush.bf16.msra.mxu0 0
      %944 = vmatpush.bf16.msra.mxu0 %v883
      %945 = vmatmul.bf16.gmra.mxu0 %v935
      %v946 = vpop.f32.mrf.mxu0
      %v947 = vadd.f32 0.0, %v946
      %v948 = vpop.f32.mrf.mxu0
      %949 = vdwg.mxu0
      %950 = vmatpush.bf16.msra.mxu0 0
      %951 = vmatpush.bf16.msra.mxu0 0
      %952 = vmatpush.bf16.msra.mxu0 0
      %953 = vmatpush.bf16.msra.mxu0 0
      %954 = vmatpush.bf16.msra.mxu0 0
      %955 = vmatpush.bf16.msra.mxu0 0
      %956 = vmatpush.bf16.msra.mxu0 0
      %957 = vmatpush.bf16.msra.mxu0 %v884
      %958 = vmatmul.bf16.gmra.mxu0 %v935
      %v959 = vpop.f32.mrf.mxu0
      %v960 = vadd.f32 0.0, %v959
      %v961 = vpop.f32.mrf.mxu0
      %962 = vdwg.mxu0
      %s963 = scalar_lea.vmem %s4, 2
      %v964 = vld [vmem:[%s963] sm:$0x3]
      %v966 = vperm.slane %v964, 0
      %v967 = vperm.slane %v964, 1
      %v970 = vmul.f32 %v947, %v966
      %v971 = vmul.f32 %v960, %v967
      %v972 = vadd.f32 %v930, %v970
      %v973 = vadd.f32 %v931, %v971
      %s974 = scalar_lea.vmem %s2, 4
      %v975 = vld [vmem:[%s974] sm:$0x3]
      %v977 = vsel %vm887, %v975, 0
      %979 = vmatpush.bf16.msra.mxu0 0
      %980 = vmatpush.bf16.msra.mxu0 0
      %981 = vmatpush.bf16.msra.mxu0 0
      %982 = vmatpush.bf16.msra.mxu0 0
      %983 = vmatpush.bf16.msra.mxu0 0
      %984 = vmatpush.bf16.msra.mxu0 0
      %985 = vmatpush.bf16.msra.mxu0 0
      %986 = vmatpush.bf16.msra.mxu0 %v883
      %987 = vmatmul.bf16.gmra.mxu0 %v977
      %v988 = vpop.f32.mrf.mxu0
      %v989 = vadd.f32 0.0, %v988
      %v990 = vpop.f32.mrf.mxu0
      %991 = vdwg.mxu0
      %992 = vmatpush.bf16.msra.mxu0 0
      %993 = vmatpush.bf16.msra.mxu0 0
      %994 = vmatpush.bf16.msra.mxu0 0
      %995 = vmatpush.bf16.msra.mxu0 0
      %996 = vmatpush.bf16.msra.mxu0 0
      %997 = vmatpush.bf16.msra.mxu0 0
      %998 = vmatpush.bf16.msra.mxu0 0
      %999 = vmatpush.bf16.msra.mxu0 %v884
      %1000 = vmatmul.bf16.gmra.mxu0 %v977
      %v1001 = vpop.f32.mrf.mxu0
      %v1002 = vadd.f32 0.0, %v1001
      %v1003 = vpop.f32.mrf.mxu0
      %1004 = vdwg.mxu0
      %s1005 = scalar_lea.vmem %s4, 4
      %v1006 = vld [vmem:[%s1005] sm:$0x3]
      %v1008 = vperm.slane %v1006, 0
      %v1009 = vperm.slane %v1006, 1
      %v1012 = vmul.f32 %v989, %v1008
      %v1013 = vmul.f32 %v1002, %v1009
      %v1014 = vadd.f32 %v972, %v1012
      %v1015 = vadd.f32 %v973, %v1013
      %s1016 = scalar_lea.vmem %s2, 6
      %v1017 = vld [vmem:[%s1016] sm:$0x3]
      %v1019 = vsel %vm887, %v1017, 0
      %1021 = vmatpush.bf16.msra.mxu0 0
      %1022 = vmatpush.bf16.msra.mxu0 0
      %1023 = vmatpush.bf16.msra.mxu0 0
      %1024 = vmatpush.bf16.msra.mxu0 0
      %1025 = vmatpush.bf16.msra.mxu0 0
      %1026 = vmatpush.bf16.msra.mxu0 0
      %1027 = vmatpush.bf16.msra.mxu0 0
      %1028 = vmatpush.bf16.msra.mxu0 %v883
      %1029 = vmatmul.bf16.gmra.mxu0 %v1019
      %v1030 = vpop.f32.mrf.mxu0
      %v1031 = vadd.f32 0.0, %v1030
      %v1032 = vpop.f32.mrf.mxu0
      %1033 = vdwg.mxu0
      %1034 = vmatpush.bf16.msra.mxu0 0
      %1035 = vmatpush.bf16.msra.mxu0 0
      %1036 = vmatpush.bf16.msra.mxu0 0
      %1037 = vmatpush.bf16.msra.mxu0 0
      %1038 = vmatpush.bf16.msra.mxu0 0
      %1039 = vmatpush.bf16.msra.mxu0 0
      %1040 = vmatpush.bf16.msra.mxu0 0
      %1041 = vmatpush.bf16.msra.mxu0 %v884
      %1042 = vmatmul.bf16.gmra.mxu0 %v1019
      %v1043 = vpop.f32.mrf.mxu0
      %v1044 = vadd.f32 0.0, %v1043
      %v1045 = vpop.f32.mrf.mxu0
      %1046 = vdwg.mxu0
      %s1047 = scalar_lea.vmem %s4, 6
      %v1048 = vld [vmem:[%s1047] sm:$0x3]
      %v1050 = vperm.slane %v1048, 0
      %v1051 = vperm.slane %v1048, 1
      %v1054 = vmul.f32 %v1031, %v1050
      %v1055 = vmul.f32 %v1044, %v1051
      %v1056 = vadd.f32 %v1014, %v1054
      %v1057 = vadd.f32 %v1015, %v1055
      %v1058 = vld [vmem:[%s792] sm:$0xff]
      %s1060 = scalar_lea.vmem [#allocation1], 1
      %1061 = vst [vmem:[%s1060] ss:$2 sm:$0xff] %v1058
      %v1062 = vld.sshfl [vmem:[#allocation1] sm:$0xff pattern:$0x75316420]
      %v1063 = vld.sshfl [vmem:[#allocation1 + $0x8] sm:$0xff pattern:$0x75316420]
      %vm1066 = vcmask 1043456
      %v1067 = vsel %vm1066, %v1056, %v1062
      %v1068 = vsel %vm1066, %v1057, %v1063
      %v1069 = vadd.f32 %v1067, %v1068
      %1070 = vadd.xlane.f32.xlu0 %v1069
      %v1071 = vpop.xlane.xlu0 %1070
      %v1072 = vmul.f32 %v1067, %v1067
      %v1073 = vmul.f32 %v1068, %v1068
      %v1074 = vadd.f32 %v1072, %v1073
      %1075 = vadd.xlane.f32.xlu0 %v1074
      %v1076 = vpop.xlane.xlu0 %1075
      %v1077 = vld [vmem:[%s5] sm:$0xff]
      %vm1078 = vcmask 7168
      %v1079 = vsel %vm1078, %v1071, %v1076
      %vm1080 = vcmask 64512
      %v1082 = vsel %vm1080, %v1077, 0
      %1084 = vmatpush.msra.mxu0 0.0
      %1085 = vmatpush.msra.mxu0 0.0
      %1086 = vmatpush.msra.mxu0 0.0
      %1087 = vmatpush.msra.mxu0 0.0
      %1088 = vmatpush.msra.mxu0 0.0
      %1089 = vmatpush.msra.mxu0 0.0
      %1090 = vmatpush.msra.mxu0 0.0
      %1091 = vmatpush.msra.mxu0 0.0
      %1092 = vmatpush.msra.mxu0 0.0
      %1093 = vmatpush.msra.mxu0 0.0
      %1094 = vmatpush.msra.mxu0 0.0
      %1095 = vmatpush.msra.mxu0 0.0
      %1096 = vmatpush.msra.mxu0 0.0
      %1097 = vmatpush.msra.mxu0 0.0
      %1098 = vmatpush.msra.mxu0 0.0
      %v1099 = vand.u32 %v1079, 4294901760
      %1100 = vmatpush.msra.mxu0 %v1099
      %v1101 = vand.u32 %v1082, 4294901760
      %v1102 = vsub.f32 %v1082, %v1101
      %v1103 = vand.u32 %v1102, 4294901760
      %v1104 = vsub.f32 %v1102, %v1103
      %v1105 = vand.u32 %v1104, 4294901760
      %1106 = vmatmul.f32.gmra.mxu0 %v1105
      %v1107 = vpop.f32.mrf.mxu0
      %v1108 = vadd.f32 0.0, %v1107
      %1109 = vdwg.mxu0
      %1110 = vmatpush.msra.mxu0 0.0
      %1111 = vmatpush.msra.mxu0 0.0
      %1112 = vmatpush.msra.mxu0 0.0
      %1113 = vmatpush.msra.mxu0 0.0
      %1114 = vmatpush.msra.mxu0 0.0
      %1115 = vmatpush.msra.mxu0 0.0
      %1116 = vmatpush.msra.mxu0 0.0
      %1117 = vmatpush.msra.mxu0 0.0
      %1118 = vmatpush.msra.mxu0 0.0
      %1119 = vmatpush.msra.mxu0 0.0
      %1120 = vmatpush.msra.mxu0 0.0
      %1121 = vmatpush.msra.mxu0 0.0
      %1122 = vmatpush.msra.mxu0 0.0
      %1123 = vmatpush.msra.mxu0 0.0
      %1124 = vmatpush.msra.mxu0 0.0
      %v1125 = vand.u32 %v1079, 4294901760
      %v1126 = vsub.f32 %v1079, %v1125
      %v1127 = vand.u32 %v1126, 4294901760
      %v1128 = vsub.f32 %v1126, %v1127
      %v1129 = vand.u32 %v1128, 4294901760
      %1130 = vmatpush.msra.mxu0 %v1129
      %v1131 = vand.u32 %v1082, 4294901760
      %1132 = vmatmul.f32.gmra.mxu0 %v1131
      %v1133 = vpop.f32.mrf.mxu0
      %v1134 = vadd.f32 %v1108, %v1133
      %1135 = vdwg.mxu0
      %1136 = vmatpush.msra.mxu0 0.0
      %1137 = vmatpush.msra.mxu0 0.0
      %1138 = vmatpush.msra.mxu0 0.0
      %1139 = vmatpush.msra.mxu0 0.0
      %1140 = vmatpush.msra.mxu0 0.0
      %1141 = vmatpush.msra.mxu0 0.0
      %1142 = vmatpush.msra.mxu0 0.0
      %1143 = vmatpush.msra.mxu0 0.0
      %1144 = vmatpush.msra.mxu0 0.0
      %1145 = vmatpush.msra.mxu0 0.0
      %1146 = vmatpush.msra.mxu0 0.0
      %1147 = vmatpush.msra.mxu0 0.0
      %1148 = vmatpush.msra.mxu0 0.0
      %1149 = vmatpush.msra.mxu0 0.0
      %1150 = vmatpush.msra.mxu0 0.0
      %v1151 = vand.u32 %v1079, 4294901760
      %v1152 = vsub.f32 %v1079, %v1151
      %1153 = vmatpush.msra.mxu0 %v1152
      %v1154 = vand.u32 %v1082, 4294901760
      %v1155 = vsub.f32 %v1082, %v1154
      %1156 = vmatmul.f32.gmra.mxu0 %v1155
      %v1157 = vpop.f32.mrf.mxu0
      %v1158 = vadd.f32 %v1134, %v1157
      %1159 = vdwg.mxu0
      %1160 = vmatpush.msra.mxu0 0.0
      %1161 = vmatpush.msra.mxu0 0.0
      %1162 = vmatpush.msra.mxu0 0.0
      %1163 = vmatpush.msra.mxu0 0.0
      %1164 = vmatpush.msra.mxu0 0.0
      %1165 = vmatpush.msra.mxu0 0.0
      %1166 = vmatpush.msra.mxu0 0.0
      %1167 = vmatpush.msra.mxu0 0.0
      %1168 = vmatpush.msra.mxu0 0.0
      %1169 = vmatpush.msra.mxu0 0.0
      %1170 = vmatpush.msra.mxu0 0.0
      %1171 = vmatpush.msra.mxu0 0.0
      %1172 = vmatpush.msra.mxu0 0.0
      %1173 = vmatpush.msra.mxu0 0.0
      %1174 = vmatpush.msra.mxu0 0.0
      %v1175 = vand.u32 %v1079, 4294901760
      %1176 = vmatpush.msra.mxu0 %v1175
      %v1177 = vand.u32 %v1082, 4294901760
      %v1178 = vsub.f32 %v1082, %v1177
      %v1179 = vand.u32 %v1178, 4294901760
      %1180 = vmatmul.f32.gmra.mxu0 %v1179
      %v1181 = vpop.f32.mrf.mxu0
      %v1182 = vadd.f32 %v1158, %v1181
      %1183 = vdwg.mxu0
      %1184 = vmatpush.msra.mxu0 0.0
      %1185 = vmatpush.msra.mxu0 0.0
      %1186 = vmatpush.msra.mxu0 0.0
      %1187 = vmatpush.msra.mxu0 0.0
      %1188 = vmatpush.msra.mxu0 0.0
      %1189 = vmatpush.msra.mxu0 0.0
      %1190 = vmatpush.msra.mxu0 0.0
      %1191 = vmatpush.msra.mxu0 0.0
      %1192 = vmatpush.msra.mxu0 0.0
      %1193 = vmatpush.msra.mxu0 0.0
      %1194 = vmatpush.msra.mxu0 0.0
      %1195 = vmatpush.msra.mxu0 0.0
      %1196 = vmatpush.msra.mxu0 0.0
      %1197 = vmatpush.msra.mxu0 0.0
      %1198 = vmatpush.msra.mxu0 0.0
      %v1199 = vand.u32 %v1079, 4294901760
      %v1200 = vsub.f32 %v1079, %v1199
      %v1201 = vand.u32 %v1200, 4294901760
      %1202 = vmatpush.msra.mxu0 %v1201
      %v1203 = vand.u32 %v1082, 4294901760
      %1204 = vmatmul.f32.gmra.mxu0 %v1203
      %v1205 = vpop.f32.mrf.mxu0
      %v1206 = vadd.f32 %v1182, %v1205
      %1207 = vdwg.mxu0
      %1208 = vmatpush.msra.mxu0 0.0
      %1209 = vmatpush.msra.mxu0 0.0
      %1210 = vmatpush.msra.mxu0 0.0
      %1211 = vmatpush.msra.mxu0 0.0
      %1212 = vmatpush.msra.mxu0 0.0
      %1213 = vmatpush.msra.mxu0 0.0
      %1214 = vmatpush.msra.mxu0 0.0
      %1215 = vmatpush.msra.mxu0 0.0
      %1216 = vmatpush.msra.mxu0 0.0
      %1217 = vmatpush.msra.mxu0 0.0
      %1218 = vmatpush.msra.mxu0 0.0
      %1219 = vmatpush.msra.mxu0 0.0
      %1220 = vmatpush.msra.mxu0 0.0
      %1221 = vmatpush.msra.mxu0 0.0
      %1222 = vmatpush.msra.mxu0 0.0
      %v1223 = vand.u32 %v1079, 4294901760
      %1224 = vmatpush.msra.mxu0 %v1223
      %v1225 = vand.u32 %v1082, 4294901760
      %1226 = vmatmul.f32.gmra.mxu0 %v1225
      %v1227 = vpop.f32.mrf.mxu0
      %v1228 = vadd.f32 %v1206, %v1227
      %1229 = vdwg.mxu0
      %v1230 = vmul.f32 %v1228, %v1228
      %1232 = vrot.lane.b32.xlu0 %v1230, 1
      %v1233 = vpop.permute.xlu0 %1232
      %v1235 = vsub.f32 %v1228, %v1233
      %v1236 = vmax.f32 %v1235, 0.0
      %v1237 = vadd.f32 %v1236, 1e-05
      %v1238 = vrsqrt.pop %v1237
      %v1239 = vmul.f32 %v1238, %v1237
      %v1240 = vmul.f32 %v1239, %v1238
      %v1241 = vmul.f32 0.5, %v1240
      %v1242 = vsub.f32 1.5, %v1241
      %v1243 = vmul.f32 %v1238, %v1242
      %vm1244 = vweird.f32 %v1237
      %vm1245 = vweird.f32 %v1238
      %vm1246 = vmor %vm1244, %vm1245
      %v1247 = vsel %vm1246, %v1238, %v1243
      %v1248 = vld [vmem:[%s8] sm:$0xff]
      %1250 = vset.pattern.permute.xlu0 0
      %1251 = vperm.xlu0 %1250, %v1228
      %v1252 = vpop.permute.xlu0 %1251
      %v1254 = vsub.f32 %v1067, %v1252
      %v1255 = vsub.f32 %v1068, %v1252
      %1257 = vrot.lane.b32.xlu0 %v1248, 1
      %v1258 = vpop.permute.xlu0 %1257
      %v1260 = vmul.f32 %v1247, %v1258
      %1262 = vset.pattern.permute.xlu0 1
      %1263 = vperm.xlu0 %1262, %v1260
      %v1264 = vpop.permute.xlu0 %1263
      %v1266 = vmul.f32 %v1254, %v1264
      %v1267 = vmul.f32 %v1255, %v1264
      %1268 = vset.pattern.permute.xlu0 1
      %1269 = vperm.xlu0 %1268, %v1248
      %v1270 = vpop.permute.xlu0 %1269
      %v1272 = vadd.f32 %v1266, %v1270
      %v1273 = vadd.f32 %v1267, %v1270
      %v1274 = vxor.u32 %v1272, 2147483648
      %v1275 = vxor.u32 %v1273, 2147483648
      %v1276 = vmul.f32 %v1274, 1.442695
      %v1277 = vpow.pop %v1276
      %v1278 = vmul.f32 %v1275, 1.442695
      %v1279 = vpow.pop %v1278
      %v1280 = vadd.f32 %v1277, 1.0
      %v1281 = vadd.f32 %v1279, 1.0
      %v1282 = vrcp.pop %v1280
      %v1283 = vmul.f32 %v1280, %v1282
      %v1284 = vsub.f32 1.0, %v1283
      %v1285 = vmul.f32 %v1282, %v1284
      %v1286 = vadd.f32 %v1282, %v1285
      %vm1287 = vweird.f32 %v1280
      %vm1288 = vweird.f32 %v1282
      %vm1289 = vmor %vm1287, %vm1288
      %v1290 = vsel %vm1289, %v1282, %v1286
      %v1291 = vand.u32 2147483647, %v1280
      %vm1292 = vcmp.eq.f32.partialorder %v1291, 8.507059e+37
      %v1293 = vand.u32 %v1280, 2147483648
      %v1294 = vor.u32 1.1754944e-38, %v1293
      %v1295 = vsel %vm1292, %v1294, %v1290
      %v1296 = vmul.f32 1.0, %v1295
      %v1297 = vrcp.pop %v1281
      %v1298 = vmul.f32 %v1281, %v1297
      %v1299 = vsub.f32 1.0, %v1298
      %v1300 = vmul.f32 %v1297, %v1299
      %v1301 = vadd.f32 %v1297, %v1300
      %vm1302 = vweird.f32 %v1281
      %vm1303 = vweird.f32 %v1297
      %vm1304 = vmor %vm1302, %vm1303
      %v1305 = vsel %vm1304, %v1297, %v1301
      %v1306 = vand.u32 2147483647, %v1281
      %vm1307 = vcmp.eq.f32.partialorder %v1306, 8.507059e+37
      %v1308 = vand.u32 %v1281, 2147483648
      %v1309 = vor.u32 1.1754944e-38, %v1308
      %v1310 = vsel %vm1307, %v1309, %v1305
      %v1311 = vmul.f32 1.0, %v1310
      %v1312 = vmul.f32 %v1272, %v1296
      %v1313 = vmul.f32 %v1273, %v1311
      %1314 = vrot.lane.b32.xlu0 %v1312, 17
      %v1315 = vpop.permute.xlu0 %1314
      %1316 = vrot.lane.b32.xlu0 %v1313, 17
      %v1317 = vpop.permute.xlu0 %1316
      %v1318 = vlaneseq
      %v1319 = vand.u32 %v1318, 127
      %vm1320 = vcmp.lt.s32.totalorder %v1319, 17
      %v1321 = vsel %vm1320, %v1315, %v1317
      %v1322 = vsel %vm1320, %v1317, %v1315
      %1323 = vrot.lane.b32.xlu0 %v1312, 16
      %v1324 = vpop.permute.xlu0 %1323
      %1325 = vrot.lane.b32.xlu0 %v1313, 16
      %v1326 = vpop.permute.xlu0 %1325
      %vm1327 = vcmp.lt.s32.totalorder %v1319, 16
      %v1328 = vsel %vm1327, %v1324, %v1326
      %v1329 = vsel %vm1327, %v1326, %v1324
      %1330 = vrot.lane.b32.xlu0 %v1312, 15
      %v1331 = vpop.permute.xlu0 %1330
      %1332 = vrot.lane.b32.xlu0 %v1313, 15
      %v1333 = vpop.permute.xlu0 %1332
      %vm1334 = vcmp.lt.s32.totalorder %v1319, 15
      %v1335 = vsel %vm1334, %v1331, %v1333
      %v1336 = vsel %vm1334, %v1333, %v1331
      %1337 = vrot.lane.b32.xlu0 %v1312, 1
      %v1338 = vpop.permute.xlu0 %1337
      %1339 = vrot.lane.b32.xlu0 %v1313, 1
      %v1340 = vpop.permute.xlu0 %1339
      %vm1341 = vcmp.lt.s32.totalorder %v1319, 1
      %v1342 = vsel %vm1341, %v1338, %v1340
      %v1343 = vsel %vm1341, %v1340, %v1338
      %1344 = vrot.lane.b32.xlu0 %v1312, 127
      %v1345 = vpop.permute.xlu0 %1344
      %1346 = vrot.lane.b32.xlu0 %v1313, 127
      %v1347 = vpop.permute.xlu0 %1346
      %vm1348 = vcmp.lt.s32.totalorder %v1319, 127
      %v1349 = vsel %vm1348, %v1345, %v1347
      %v1350 = vsel %vm1348, %v1347, %v1345
      %1351 = vrot.lane.b32.xlu0 %v1312, 113
      %v1352 = vpop.permute.xlu0 %1351
      %1353 = vrot.lane.b32.xlu0 %v1313, 113
      %v1354 = vpop.permute.xlu0 %1353
      %vm1355 = vcmp.lt.s32.totalorder %v1319, 113
      %v1356 = vsel %vm1355, %v1352, %v1354
      %v1357 = vsel %vm1355, %v1354, %v1352
      %1358 = vrot.lane.b32.xlu0 %v1312, 112
      %v1359 = vpop.permute.xlu0 %1358
      %1360 = vrot.lane.b32.xlu0 %v1313, 112
      %v1361 = vpop.permute.xlu0 %1360
      %vm1362 = vcmp.lt.s32.totalorder %v1319, 112
      %v1363 = vsel %vm1362, %v1359, %v1361
      %v1364 = vsel %vm1362, %v1361, %v1359
      %1365 = vrot.lane.b32.xlu0 %v1312, 111
      %v1366 = vpop.permute.xlu0 %1365
      %1367 = vrot.lane.b32.xlu0 %v1313, 111
      %v1368 = vpop.permute.xlu0 %1367
      %vm1369 = vcmp.lt.s32.totalorder %v1319, 111
      %v1370 = vsel %vm1369, %v1366, %v1368
      %v1371 = vsel %vm1369, %v1368, %v1366
      %v1372 = vmul.f32 %v1322, %v837
      %v1373 = vmul.f32 %v1321, %v838
      %v1374 = vmul.f32 %v1329, %v839
      %v1375 = vmul.f32 %v1328, %v840
      %v1376 = vmul.f32 %v1336, %v841
      %v1377 = vmul.f32 %v1335, %v842
      %v1378 = vmul.f32 %v1343, %v843
      %v1379 = vmul.f32 %v1342, %v844
      %v1380 = vmul.f32 %v1312, %v845
      %v1381 = vmul.f32 %v1313, %v846
      %v1382 = vmul.f32 %v1349, %v847
      %v1383 = vmul.f32 %v1350, %v848
      %v1384 = vmul.f32 %v1356, %v849
      %v1385 = vmul.f32 %v1357, %v850
      %v1386 = vmul.f32 %v1363, %v851
      %v1387 = vmul.f32 %v1364, %v852
      %v1388 = vmul.f32 %v1370, %v853
      %v1389 = vmul.f32 %v1371, %v854
      %v1390 = vld [vmem:[%s9] sm:$0xf]
      %v1391 = vpack.c.bf16 %v1374, %v1372
      %v1392 = vpack.c.bf16 %v1375, %v1373
      %v1393 = vpack.c.bf16 %v1378, %v1376
      %v1394 = vpack.c.bf16 %v1379, %v1377
      %v1395 = vpack.c.bf16 %v1382, %v1380
      %v1396 = vpack.c.bf16 %v1383, %v1381
      %v1397 = vpack.c.bf16 %v1386, %v1384
      %v1398 = vpack.c.bf16 %v1387, %v1385
      %v1399 = vpack.c.bf16 %v1388, %v1388
      %v1400 = vpack.c.bf16 %v1389, %v1389
      %v1401 = vld [vmem:[%s10] sm:$0xff]
      %1403 = vset.pattern.permute.xlu0 0
      %1404 = vperm.xlu0 %1403, %v1401
      %v1405 = vpop.permute.xlu0 %1404
      %vm1407 = vcmask 588800
      %v1409 = vsel %vm1407, %v1390, 0
      %v1412 = vsel %vm1066, %v1399, 0
      %v1415 = vsel %vm1066, %v1400, 0
      %1417 = vmatpush.bf16.msra.mxu0 0
      %1418 = vmatpush.bf16.msra.mxu0 0
      %1419 = vmatpush.bf16.msra.mxu0 0
      %1420 = vmatpush.bf16.msra.mxu0 %v1412
      %1421 = vmatpush.bf16.msra.mxu0 %v1397
      %1422 = vmatpush.bf16.msra.mxu0 %v1395
      %1423 = vmatpush.bf16.msra.mxu0 %v1393
      %1424 = vmatpush.bf16.msra.mxu0 %v1391
      %1425 = vmatmul.bf16.gmra.mxu0 %v1409
      %v1426 = vpop.f32.mrf.mxu0
      %v1427 = vadd.f32 %v1405, %v1426
      %v1428 = vpop.f32.mrf.mxu0
      %1429 = vdwg.mxu0
      %1430 = vmatpush.bf16.msra.mxu0 0
      %1431 = vmatpush.bf16.msra.mxu0 0
      %1432 = vmatpush.bf16.msra.mxu0 0
      %1433 = vmatpush.bf16.msra.mxu0 %v1415
      %1434 = vmatpush.bf16.msra.mxu0 %v1398
      %1435 = vmatpush.bf16.msra.mxu0 %v1396
      %1436 = vmatpush.bf16.msra.mxu0 %v1394
      %1437 = vmatpush.bf16.msra.mxu0 %v1392
      %1438 = vmatmul.bf16.gmra.mxu0 %v1409
      %v1439 = vpop.f32.mrf.mxu0
      %v1440 = vadd.f32 %v1405, %v1439
      %v1441 = vpop.f32.mrf.mxu0
      %1442 = vdwg.mxu0
      %v1443 = vld [vmem:[%s796] sm:$0xff]
      %1445 = vset.pattern.permute.xlu0 0
      %1446 = vperm.xlu0 %1445, %v1443
      %v1447 = vpop.permute.xlu0 %1446
      %v1449 = vadd.f32 %v1427, %v1447
      %v1450 = vadd.f32 %v1440, %v1447
      %v1451 = vadd.f32 %v1449, %v1450
      %1452 = vadd.xlane.f32.xlu0 %v1451
      %v1453 = vpop.xlane.xlu0 %1452
      %v1454 = vmul.f32 %v1449, %v1449
      %v1455 = vmul.f32 %v1450, %v1450
      %v1456 = vadd.f32 %v1454, %v1455
      %1457 = vadd.xlane.f32.xlu0 %v1456
      %v1458 = vpop.xlane.xlu0 %1457
      %v1459 = vld [vmem:[%s6] sm:$0xff]
      %v1460 = vsel %vm1078, %v1453, %v1458
      %v1462 = vsel %vm1080, %v1459, 0
      %1464 = vmatpush.msra.mxu0 0.0
      %1465 = vmatpush.msra.mxu0 0.0
      %1466 = vmatpush.msra.mxu0 0.0
      %1467 = vmatpush.msra.mxu0 0.0
      %1468 = vmatpush.msra.mxu0 0.0
      %1469 = vmatpush.msra.mxu0 0.0
      %1470 = vmatpush.msra.mxu0 0.0
      %1471 = vmatpush.msra.mxu0 0.0
      %1472 = vmatpush.msra.mxu0 0.0
      %1473 = vmatpush.msra.mxu0 0.0
      %1474 = vmatpush.msra.mxu0 0.0
      %1475 = vmatpush.msra.mxu0 0.0
      %1476 = vmatpush.msra.mxu0 0.0
      %1477 = vmatpush.msra.mxu0 0.0
      %1478 = vmatpush.msra.mxu0 0.0
      %v1479 = vand.u32 %v1460, 4294901760
      %1480 = vmatpush.msra.mxu0 %v1479
      %v1481 = vand.u32 %v1462, 4294901760
      %v1482 = vsub.f32 %v1462, %v1481
      %v1483 = vand.u32 %v1482, 4294901760
      %v1484 = vsub.f32 %v1482, %v1483
      %v1485 = vand.u32 %v1484, 4294901760
      %1486 = vmatmul.f32.gmra.mxu0 %v1485
      %v1487 = vpop.f32.mrf.mxu0
      %v1488 = vadd.f32 0.0, %v1487
      %1489 = vdwg.mxu0
      %1490 = vmatpush.msra.mxu0 0.0
      %1491 = vmatpush.msra.mxu0 0.0
      %1492 = vmatpush.msra.mxu0 0.0
      %1493 = vmatpush.msra.mxu0 0.0
      %1494 = vmatpush.msra.mxu0 0.0
      %1495 = vmatpush.msra.mxu0 0.0
      %1496 = vmatpush.msra.mxu0 0.0
      %1497 = vmatpush.msra.mxu0 0.0
      %1498 = vmatpush.msra.mxu0 0.0
      %1499 = vmatpush.msra.mxu0 0.0
      %1500 = vmatpush.msra.mxu0 0.0
      %1501 = vmatpush.msra.mxu0 0.0
      %1502 = vmatpush.msra.mxu0 0.0
      %1503 = vmatpush.msra.mxu0 0.0
      %1504 = vmatpush.msra.mxu0 0.0
      %v1505 = vand.u32 %v1460, 4294901760
      %v1506 = vsub.f32 %v1460, %v1505
      %v1507 = vand.u32 %v1506, 4294901760
      %v1508 = vsub.f32 %v1506, %v1507
      %v1509 = vand.u32 %v1508, 4294901760
      %1510 = vmatpush.msra.mxu0 %v1509
      %v1511 = vand.u32 %v1462, 4294901760
      %1512 = vmatmul.f32.gmra.mxu0 %v1511
      %v1513 = vpop.f32.mrf.mxu0
      %v1514 = vadd.f32 %v1488, %v1513
      %1515 = vdwg.mxu0
      %1516 = vmatpush.msra.mxu0 0.0
      %1517 = vmatpush.msra.mxu0 0.0
      %1518 = vmatpush.msra.mxu0 0.0
      %1519 = vmatpush.msra.mxu0 0.0
      %1520 = vmatpush.msra.mxu0 0.0
      %1521 = vmatpush.msra.mxu0 0.0
      %1522 = vmatpush.msra.mxu0 0.0
      %1523 = vmatpush.msra.mxu0 0.0
      %1524 = vmatpush.msra.mxu0 0.0
      %1525 = vmatpush.msra.mxu0 0.0
      %1526 = vmatpush.msra.mxu0 0.0
      %1527 = vmatpush.msra.mxu0 0.0
      %1528 = vmatpush.msra.mxu0 0.0
      %1529 = vmatpush.msra.mxu0 0.0
      %1530 = vmatpush.msra.mxu0 0.0
      %v1531 = vand.u32 %v1460, 4294901760
      %v1532 = vsub.f32 %v1460, %v1531
      %1533 = vmatpush.msra.mxu0 %v1532
      %v1534 = vand.u32 %v1462, 4294901760
      %v1535 = vsub.f32 %v1462, %v1534
      %1536 = vmatmul.f32.gmra.mxu0 %v1535
      %v1537 = vpop.f32.mrf.mxu0
      %v1538 = vadd.f32 %v1514, %v1537
      %1539 = vdwg.mxu0
      %1540 = vmatpush.msra.mxu0 0.0
      %1541 = vmatpush.msra.mxu0 0.0
      %1542 = vmatpush.msra.mxu0 0.0
      %1543 = vmatpush.msra.mxu0 0.0
      %1544 = vmatpush.msra.mxu0 0.0
      %1545 = vmatpush.msra.mxu0 0.0
      %1546 = vmatpush.msra.mxu0 0.0
      %1547 = vmatpush.msra.mxu0 0.0
      %1548 = vmatpush.msra.mxu0 0.0
      %1549 = vmatpush.msra.mxu0 0.0
      %1550 = vmatpush.msra.mxu0 0.0
      %1551 = vmatpush.msra.mxu0 0.0
      %1552 = vmatpush.msra.mxu0 0.0
      %1553 = vmatpush.msra.mxu0 0.0
      %1554 = vmatpush.msra.mxu0 0.0
      %v1555 = vand.u32 %v1460, 4294901760
      %1556 = vmatpush.msra.mxu0 %v1555
      %v1557 = vand.u32 %v1462, 4294901760
      %v1558 = vsub.f32 %v1462, %v1557
      %v1559 = vand.u32 %v1558, 4294901760
      %1560 = vmatmul.f32.gmra.mxu0 %v1559
      %v1561 = vpop.f32.mrf.mxu0
      %v1562 = vadd.f32 %v1538, %v1561
      %1563 = vdwg.mxu0
      %1564 = vmatpush.msra.mxu0 0.0
      %1565 = vmatpush.msra.mxu0 0.0
      %1566 = vmatpush.msra.mxu0 0.0
      %1567 = vmatpush.msra.mxu0 0.0
      %1568 = vmatpush.msra.mxu0 0.0
      %1569 = vmatpush.msra.mxu0 0.0
      %1570 = vmatpush.msra.mxu0 0.0
      %1571 = vmatpush.msra.mxu0 0.0
      %1572 = vmatpush.msra.mxu0 0.0
      %1573 = vmatpush.msra.mxu0 0.0
      %1574 = vmatpush.msra.mxu0 0.0
      %1575 = vmatpush.msra.mxu0 0.0
      %1576 = vmatpush.msra.mxu0 0.0
      %1577 = vmatpush.msra.mxu0 0.0
      %1578 = vmatpush.msra.mxu0 0.0
      %v1579 = vand.u32 %v1460, 4294901760
      %v1580 = vsub.f32 %v1460, %v1579
      %v1581 = vand.u32 %v1580, 4294901760
      %1582 = vmatpush.msra.mxu0 %v1581
      %v1583 = vand.u32 %v1462, 4294901760
      %1584 = vmatmul.f32.gmra.mxu0 %v1583
      %v1585 = vpop.f32.mrf.mxu0
      %v1586 = vadd.f32 %v1562, %v1585
      %1587 = vdwg.mxu0
      %1588 = vmatpush.msra.mxu0 0.0
      %1589 = vmatpush.msra.mxu0 0.0
      %1590 = vmatpush.msra.mxu0 0.0
      %1591 = vmatpush.msra.mxu0 0.0
      %1592 = vmatpush.msra.mxu0 0.0
      %1593 = vmatpush.msra.mxu0 0.0
      %1594 = vmatpush.msra.mxu0 0.0
      %1595 = vmatpush.msra.mxu0 0.0
      %1596 = vmatpush.msra.mxu0 0.0
      %1597 = vmatpush.msra.mxu0 0.0
      %1598 = vmatpush.msra.mxu0 0.0
      %1599 = vmatpush.msra.mxu0 0.0
      %1600 = vmatpush.msra.mxu0 0.0
      %1601 = vmatpush.msra.mxu0 0.0
      %1602 = vmatpush.msra.mxu0 0.0
      %v1603 = vand.u32 %v1460, 4294901760
      %1604 = vmatpush.msra.mxu0 %v1603
      %v1605 = vand.u32 %v1462, 4294901760
      %1606 = vmatmul.f32.gmra.mxu0 %v1605
      %v1607 = vpop.f32.mrf.mxu0
      %v1608 = vadd.f32 %v1586, %v1607
      %1609 = vdwg.mxu0
      %v1610 = vmul.f32 %v1608, %v1608
      %1612 = vrot.lane.b32.xlu0 %v1610, 1
      %v1613 = vpop.permute.xlu0 %1612
      %v1615 = vsub.f32 %v1608, %v1613
      %v1616 = vmax.f32 %v1615, 0.0
      %v1617 = vadd.f32 %v1616, 1e-05
      %v1618 = vrsqrt.pop %v1617
      %v1619 = vmul.f32 %v1618, %v1617
      %v1620 = vmul.f32 %v1619, %v1618
      %v1621 = vmul.f32 0.5, %v1620
      %v1622 = vsub.f32 1.5, %v1621
      %v1623 = vmul.f32 %v1618, %v1622
      %vm1624 = vweird.f32 %v1617
      %vm1625 = vweird.f32 %v1618
      %vm1626 = vmor %vm1624, %vm1625
      %v1627 = vsel %vm1626, %v1618, %v1623
      %v1628 = vld [vmem:[%s12] sm:$0xff]
      %1630 = vset.pattern.permute.xlu0 0
      %1631 = vperm.xlu0 %1630, %v1608
      %v1632 = vpop.permute.xlu0 %1631
      %v1634 = vsub.f32 %v1449, %v1632
      %v1635 = vsub.f32 %v1450, %v1632
      %1637 = vrot.lane.b32.xlu0 %v1628, 1
      %v1638 = vpop.permute.xlu0 %1637
      %v1640 = vmul.f32 %v1627, %v1638
      %1642 = vset.pattern.permute.xlu0 1
      %1643 = vperm.xlu0 %1642, %v1640
      %v1644 = vpop.permute.xlu0 %1643
      %v1646 = vmul.f32 %v1634, %v1644
      %v1647 = vmul.f32 %v1635, %v1644
      %1648 = vset.pattern.permute.xlu0 1
      %1649 = vperm.xlu0 %1648, %v1628
      %v1650 = vpop.permute.xlu0 %1649
      %v1652 = vadd.f32 %v1646, %v1650
      %v1653 = vadd.f32 %v1647, %v1650
      %v1654 = vxor.u32 %v1652, 2147483648
      %v1655 = vxor.u32 %v1653, 2147483648
      %v1656 = vmul.f32 %v1654, 1.442695
      %v1657 = vpow.pop %v1656
      %v1658 = vmul.f32 %v1655, 1.442695
      %v1659 = vpow.pop %v1658
      %v1660 = vadd.f32 %v1657, 1.0
      %v1661 = vadd.f32 %v1659, 1.0
      %v1662 = vrcp.pop %v1660
      %v1663 = vmul.f32 %v1660, %v1662
      %v1664 = vsub.f32 1.0, %v1663
      %v1665 = vmul.f32 %v1662, %v1664
      %v1666 = vadd.f32 %v1662, %v1665
      %vm1667 = vweird.f32 %v1660
      %vm1668 = vweird.f32 %v1662
      %vm1669 = vmor %vm1667, %vm1668
      %v1670 = vsel %vm1669, %v1662, %v1666
      %v1671 = vand.u32 2147483647, %v1660
      %vm1672 = vcmp.eq.f32.partialorder %v1671, 8.507059e+37
      %v1673 = vand.u32 %v1660, 2147483648
      %v1674 = vor.u32 1.1754944e-38, %v1673
      %v1675 = vsel %vm1672, %v1674, %v1670
      %v1676 = vmul.f32 1.0, %v1675
      %v1677 = vrcp.pop %v1661
      %v1678 = vmul.f32 %v1661, %v1677
      %v1679 = vsub.f32 1.0, %v1678
      %v1680 = vmul.f32 %v1677, %v1679
      %v1681 = vadd.f32 %v1677, %v1680
      %vm1682 = vweird.f32 %v1661
      %vm1683 = vweird.f32 %v1677
      %vm1684 = vmor %vm1682, %vm1683
      %v1685 = vsel %vm1684, %v1677, %v1681
      %v1686 = vand.u32 2147483647, %v1661
      %vm1687 = vcmp.eq.f32.partialorder %v1686, 8.507059e+37
      %v1688 = vand.u32 %v1661, 2147483648
      %v1689 = vor.u32 1.1754944e-38, %v1688
      %v1690 = vsel %vm1687, %v1689, %v1685
      %v1691 = vmul.f32 1.0, %v1690
      %v1692 = vmul.f32 %v1652, %v1676
      %v1693 = vmul.f32 %v1653, %v1691
      %1694 = vrot.lane.b32.xlu0 %v1692, 17
      %v1695 = vpop.permute.xlu0 %1694
      %1696 = vrot.lane.b32.xlu0 %v1693, 17
      %v1697 = vpop.permute.xlu0 %1696
      %v1698 = vsel %vm1320, %v1695, %v1697
      %v1699 = vsel %vm1320, %v1697, %v1695
      %1700 = vrot.lane.b32.xlu0 %v1692, 16
      %v1701 = vpop.permute.xlu0 %1700
      %1702 = vrot.lane.b32.xlu0 %v1693, 16
      %v1703 = vpop.permute.xlu0 %1702
      %v1704 = vsel %vm1327, %v1701, %v1703
      %v1705 = vsel %vm1327, %v1703, %v1701
      %1706 = vrot.lane.b32.xlu0 %v1692, 15
      %v1707 = vpop.permute.xlu0 %1706
      %1708 = vrot.lane.b32.xlu0 %v1693, 15
      %v1709 = vpop.permute.xlu0 %1708
      %v1710 = vsel %vm1334, %v1707, %v1709
      %v1711 = vsel %vm1334, %v1709, %v1707
      %1712 = vrot.lane.b32.xlu0 %v1692, 1
      %v1713 = vpop.permute.xlu0 %1712
      %1714 = vrot.lane.b32.xlu0 %v1693, 1
      %v1715 = vpop.permute.xlu0 %1714
      %v1716 = vsel %vm1341, %v1713, %v1715
      %v1717 = vsel %vm1341, %v1715, %v1713
      %1718 = vrot.lane.b32.xlu0 %v1692, 127
      %v1719 = vpop.permute.xlu0 %1718
      %1720 = vrot.lane.b32.xlu0 %v1693, 127
      %v1721 = vpop.permute.xlu0 %1720
      %v1722 = vsel %vm1348, %v1719, %v1721
      %v1723 = vsel %vm1348, %v1721, %v1719
      %1724 = vrot.lane.b32.xlu0 %v1692, 113
      %v1725 = vpop.permute.xlu0 %1724
      %1726 = vrot.lane.b32.xlu0 %v1693, 113
      %v1727 = vpop.permute.xlu0 %1726
      %v1728 = vsel %vm1355, %v1725, %v1727
      %v1729 = vsel %vm1355, %v1727, %v1725
      %1730 = vrot.lane.b32.xlu0 %v1692, 112
      %v1731 = vpop.permute.xlu0 %1730
      %1732 = vrot.lane.b32.xlu0 %v1693, 112
      %v1733 = vpop.permute.xlu0 %1732
      %v1734 = vsel %vm1362, %v1731, %v1733
      %v1735 = vsel %vm1362, %v1733, %v1731
      %1736 = vrot.lane.b32.xlu0 %v1692, 111
      %v1737 = vpop.permute.xlu0 %1736
      %1738 = vrot.lane.b32.xlu0 %v1693, 111
      %v1739 = vpop.permute.xlu0 %1738
      %v1740 = vsel %vm1369, %v1737, %v1739
      %v1741 = vsel %vm1369, %v1739, %v1737
      %v1742 = vmul.f32 %v1699, %v837
      %v1743 = vmul.f32 %v1698, %v838
      %v1744 = vmul.f32 %v1705, %v839
      %v1745 = vmul.f32 %v1704, %v840
      %v1746 = vmul.f32 %v1711, %v841
      %v1747 = vmul.f32 %v1710, %v842
      %v1748 = vmul.f32 %v1717, %v843
      %v1749 = vmul.f32 %v1716, %v844
      %v1750 = vmul.f32 %v1692, %v845
      %v1751 = vmul.f32 %v1693, %v846
      %v1752 = vmul.f32 %v1722, %v847
      %v1753 = vmul.f32 %v1723, %v848
      %v1754 = vmul.f32 %v1728, %v849
      %v1755 = vmul.f32 %v1729, %v850
      %v1756 = vmul.f32 %v1734, %v851
      %v1757 = vmul.f32 %v1735, %v852
      %v1758 = vmul.f32 %v1740, %v853
      %v1759 = vmul.f32 %v1741, %v854
      %v1760 = vld [vmem:[%s13] sm:$0xf]
      %v1761 = vpack.c.bf16 %v1744, %v1742
      %v1762 = vpack.c.bf16 %v1745, %v1743
      %v1763 = vpack.c.bf16 %v1748, %v1746
      %v1764 = vpack.c.bf16 %v1749, %v1747
      %v1765 = vpack.c.bf16 %v1752, %v1750
      %v1766 = vpack.c.bf16 %v1753, %v1751
      %v1767 = vpack.c.bf16 %v1756, %v1754
      %v1768 = vpack.c.bf16 %v1757, %v1755
      %v1769 = vpack.c.bf16 %v1758, %v1758
      %v1770 = vpack.c.bf16 %v1759, %v1759
      %v1771 = vld [vmem:[%s14] sm:$0xff]
      %1773 = vset.pattern.permute.xlu0 0
      %1774 = vperm.xlu0 %1773, %v1771
      %v1775 = vpop.permute.xlu0 %1774
      %v1778 = vsel %vm1407, %v1760, 0
      %v1781 = vsel %vm1066, %v1769, 0
      %v1784 = vsel %vm1066, %v1770, 0
      %1786 = vmatpush.bf16.msra.mxu0 0
      %1787 = vmatpush.bf16.msra.mxu0 0
      %1788 = vmatpush.bf16.msra.mxu0 0
      %1789 = vmatpush.bf16.msra.mxu0 %v1781
      %1790 = vmatpush.bf16.msra.mxu0 %v1767
      %1791 = vmatpush.bf16.msra.mxu0 %v1765
      %1792 = vmatpush.bf16.msra.mxu0 %v1763
      %1793 = vmatpush.bf16.msra.mxu0 %v1761
      %1794 = vmatmul.bf16.gmra.mxu0 %v1778
      %v1795 = vpop.f32.mrf.mxu0
      %v1796 = vadd.f32 %v1775, %v1795
      %v1797 = vpop.f32.mrf.mxu0
      %1798 = vdwg.mxu0
      %1799 = vmatpush.bf16.msra.mxu0 0
      %1800 = vmatpush.bf16.msra.mxu0 0
      %1801 = vmatpush.bf16.msra.mxu0 0
      %1802 = vmatpush.bf16.msra.mxu0 %v1784
      %1803 = vmatpush.bf16.msra.mxu0 %v1768
      %1804 = vmatpush.bf16.msra.mxu0 %v1766
      %1805 = vmatpush.bf16.msra.mxu0 %v1764
      %1806 = vmatpush.bf16.msra.mxu0 %v1762
      %1807 = vmatmul.bf16.gmra.mxu0 %v1778
      %v1808 = vpop.f32.mrf.mxu0
      %v1809 = vadd.f32 %v1775, %v1808
      %v1810 = vpop.f32.mrf.mxu0
      %1811 = vdwg.mxu0
      %v1812 = vld [vmem:[%s15] sm:$0xf]
      %v1813 = vpack.c.bf16 %v1067, %v1067
      %v1814 = vpack.c.bf16 %v1068, %v1068
      %v1816 = vsel %vm1080, %v1812, 0
      %v1819 = vsel %vm1066, %v1813, 0
      %v1822 = vsel %vm1066, %v1814, 0
      %1824 = vmatpush.bf16.msra.mxu0 0
      %1825 = vmatpush.bf16.msra.mxu0 0
      %1826 = vmatpush.bf16.msra.mxu0 0
      %1827 = vmatpush.bf16.msra.mxu0 0
      %1828 = vmatpush.bf16.msra.mxu0 0
      %1829 = vmatpush.bf16.msra.mxu0 0
      %1830 = vmatpush.bf16.msra.mxu0 0
      %1831 = vmatpush.bf16.msra.mxu0 %v1819
      %1832 = vmatmul.bf16.gmra.mxu0 %v1816
      %v1833 = vpop.f32.mrf.mxu0
      %v1834 = vadd.f32 0.0, %v1833
      %v1835 = vpop.f32.mrf.mxu0
      %1836 = vdwg.mxu0
      %1837 = vmatpush.bf16.msra.mxu0 0
      %1838 = vmatpush.bf16.msra.mxu0 0
      %1839 = vmatpush.bf16.msra.mxu0 0
      %1840 = vmatpush.bf16.msra.mxu0 0
      %1841 = vmatpush.bf16.msra.mxu0 0
      %1842 = vmatpush.bf16.msra.mxu0 0
      %1843 = vmatpush.bf16.msra.mxu0 0
      %1844 = vmatpush.bf16.msra.mxu0 %v1822
      %1845 = vmatmul.bf16.gmra.mxu0 %v1816
      %v1846 = vpop.f32.mrf.mxu0
      %v1847 = vadd.f32 0.0, %v1846
      %v1848 = vpop.f32.mrf.mxu0
      %1849 = vdwg.mxu0
      %v1850 = vadd.f32 %v1796, %v1834
      %v1851 = vadd.f32 %v1809, %v1847
      %v1852 = vld [vmem:[%s16] sm:$0xff]
      %1854 = vset.pattern.permute.xlu0 0
      %1855 = vperm.xlu0 %1854, %v1852
      %v1856 = vpop.permute.xlu0 %1855
      %v1858 = vadd.f32 %v1850, %v1856
      %v1859 = vadd.f32 %v1851, %v1856
      %v1860 = vadd.f32 %v1858, %v1859
      %1861 = vadd.xlane.f32.xlu0 %v1860
      %v1862 = vpop.xlane.xlu0 %1861
      %v1863 = vmul.f32 %v1858, %v1858
      %v1864 = vmul.f32 %v1859, %v1859
      %v1865 = vadd.f32 %v1863, %v1864
      %1866 = vadd.xlane.f32.xlu0 %v1865
      %v1867 = vpop.xlane.xlu0 %1866
      %v1868 = vsel %vm1078, %v1862, %v1867
      %1869 = vmatpush.msra.mxu0 0.0
      %1870 = vmatpush.msra.mxu0 0.0
      %1871 = vmatpush.msra.mxu0 0.0
      %1872 = vmatpush.msra.mxu0 0.0
      %1873 = vmatpush.msra.mxu0 0.0
      %1874 = vmatpush.msra.mxu0 0.0
      %1875 = vmatpush.msra.mxu0 0.0
      %1876 = vmatpush.msra.mxu0 0.0
      %1877 = vmatpush.msra.mxu0 0.0
      %1878 = vmatpush.msra.mxu0 0.0
      %1879 = vmatpush.msra.mxu0 0.0
      %1880 = vmatpush.msra.mxu0 0.0
      %1881 = vmatpush.msra.mxu0 0.0
      %1882 = vmatpush.msra.mxu0 0.0
      %1883 = vmatpush.msra.mxu0 0.0
      %v1884 = vand.u32 %v1868, 4294901760
      %1885 = vmatpush.msra.mxu0 %v1884
      %v1886 = vand.u32 %v1462, 4294901760
      %v1887 = vsub.f32 %v1462, %v1886
      %v1888 = vand.u32 %v1887, 4294901760
      %v1889 = vsub.f32 %v1887, %v1888
      %v1890 = vand.u32 %v1889, 4294901760
      %1891 = vmatmul.f32.gmra.mxu0 %v1890
      %v1892 = vpop.f32.mrf.mxu0
      %v1893 = vadd.f32 0.0, %v1892
      %1894 = vdwg.mxu0
      %1895 = vmatpush.msra.mxu0 0.0
      %1896 = vmatpush.msra.mxu0 0.0
      %1897 = vmatpush.msra.mxu0 0.0
      %1898 = vmatpush.msra.mxu0 0.0
      %1899 = vmatpush.msra.mxu0 0.0
      %1900 = vmatpush.msra.mxu0 0.0
      %1901 = vmatpush.msra.mxu0 0.0
      %1902 = vmatpush.msra.mxu0 0.0
      %1903 = vmatpush.msra.mxu0 0.0
      %1904 = vmatpush.msra.mxu0 0.0
      %1905 = vmatpush.msra.mxu0 0.0
      %1906 = vmatpush.msra.mxu0 0.0
      %1907 = vmatpush.msra.mxu0 0.0
      %1908 = vmatpush.msra.mxu0 0.0
      %1909 = vmatpush.msra.mxu0 0.0
      %v1910 = vand.u32 %v1868, 4294901760
      %v1911 = vsub.f32 %v1868, %v1910
      %v1912 = vand.u32 %v1911, 4294901760
      %v1913 = vsub.f32 %v1911, %v1912
      %v1914 = vand.u32 %v1913, 4294901760
      %1915 = vmatpush.msra.mxu0 %v1914
      %v1916 = vand.u32 %v1462, 4294901760
      %1917 = vmatmul.f32.gmra.mxu0 %v1916
      %v1918 = vpop.f32.mrf.mxu0
      %v1919 = vadd.f32 %v1893, %v1918
      %1920 = vdwg.mxu0
      %1921 = vmatpush.msra.mxu0 0.0
      %1922 = vmatpush.msra.mxu0 0.0
      %1923 = vmatpush.msra.mxu0 0.0
      %1924 = vmatpush.msra.mxu0 0.0
      %1925 = vmatpush.msra.mxu0 0.0
      %1926 = vmatpush.msra.mxu0 0.0
      %1927 = vmatpush.msra.mxu0 0.0
      %1928 = vmatpush.msra.mxu0 0.0
      %1929 = vmatpush.msra.mxu0 0.0
      %1930 = vmatpush.msra.mxu0 0.0
      %1931 = vmatpush.msra.mxu0 0.0
      %1932 = vmatpush.msra.mxu0 0.0
      %1933 = vmatpush.msra.mxu0 0.0
      %1934 = vmatpush.msra.mxu0 0.0
      %1935 = vmatpush.msra.mxu0 0.0
      %v1936 = vand.u32 %v1868, 4294901760
      %v1937 = vsub.f32 %v1868, %v1936
      %1938 = vmatpush.msra.mxu0 %v1937
      %v1939 = vand.u32 %v1462, 4294901760
      %v1940 = vsub.f32 %v1462, %v1939
      %1941 = vmatmul.f32.gmra.mxu0 %v1940
      %v1942 = vpop.f32.mrf.mxu0
      %v1943 = vadd.f32 %v1919, %v1942
      %1944 = vdwg.mxu0
      %1945 = vmatpush.msra.mxu0 0.0
      %1946 = vmatpush.msra.mxu0 0.0
      %1947 = vmatpush.msra.mxu0 0.0
      %1948 = vmatpush.msra.mxu0 0.0
      %1949 = vmatpush.msra.mxu0 0.0
      %1950 = vmatpush.msra.mxu0 0.0
      %1951 = vmatpush.msra.mxu0 0.0
      %1952 = vmatpush.msra.mxu0 0.0
      %1953 = vmatpush.msra.mxu0 0.0
      %1954 = vmatpush.msra.mxu0 0.0
      %1955 = vmatpush.msra.mxu0 0.0
      %1956 = vmatpush.msra.mxu0 0.0
      %1957 = vmatpush.msra.mxu0 0.0
      %1958 = vmatpush.msra.mxu0 0.0
      %1959 = vmatpush.msra.mxu0 0.0
      %v1960 = vand.u32 %v1868, 4294901760
      %1961 = vmatpush.msra.mxu0 %v1960
      %v1962 = vand.u32 %v1462, 4294901760
      %v1963 = vsub.f32 %v1462, %v1962
      %v1964 = vand.u32 %v1963, 4294901760
      %1965 = vmatmul.f32.gmra.mxu0 %v1964
      %v1966 = vpop.f32.mrf.mxu0
      %v1967 = vadd.f32 %v1943, %v1966
      %1968 = vdwg.mxu0
      %1969 = vmatpush.msra.mxu0 0.0
      %1970 = vmatpush.msra.mxu0 0.0
      %1971 = vmatpush.msra.mxu0 0.0
      %1972 = vmatpush.msra.mxu0 0.0
      %1973 = vmatpush.msra.mxu0 0.0
      %1974 = vmatpush.msra.mxu0 0.0
      %1975 = vmatpush.msra.mxu0 0.0
      %1976 = vmatpush.msra.mxu0 0.0
      %1977 = vmatpush.msra.mxu0 0.0
      %1978 = vmatpush.msra.mxu0 0.0
      %1979 = vmatpush.msra.mxu0 0.0
      %1980 = vmatpush.msra.mxu0 0.0
      %1981 = vmatpush.msra.mxu0 0.0
      %1982 = vmatpush.msra.mxu0 0.0
      %1983 = vmatpush.msra.mxu0 0.0
      %v1984 = vand.u32 %v1868, 4294901760
      %v1985 = vsub.f32 %v1868, %v1984
      %v1986 = vand.u32 %v1985, 4294901760
      %1987 = vmatpush.msra.mxu0 %v1986
      %v1988 = vand.u32 %v1462, 4294901760
      %1989 = vmatmul.f32.gmra.mxu0 %v1988
      %v1990 = vpop.f32.mrf.mxu0
      %v1991 = vadd.f32 %v1967, %v1990
      %1992 = vdwg.mxu0
      %1993 = vmatpush.msra.mxu0 0.0
      %1994 = vmatpush.msra.mxu0 0.0
      %1995 = vmatpush.msra.mxu0 0.0
      %1996 = vmatpush.msra.mxu0 0.0
      %1997 = vmatpush.msra.mxu0 0.0
      %1998 = vmatpush.msra.mxu0 0.0
      %1999 = vmatpush.msra.mxu0 0.0
      %2000 = vmatpush.msra.mxu0 0.0
      %2001 = vmatpush.msra.mxu0 0.0
      %2002 = vmatpush.msra.mxu0 0.0
      %2003 = vmatpush.msra.mxu0 0.0
      %2004 = vmatpush.msra.mxu0 0.0
      %2005 = vmatpush.msra.mxu0 0.0
      %2006 = vmatpush.msra.mxu0 0.0
      %2007 = vmatpush.msra.mxu0 0.0
      %v2008 = vand.u32 %v1868, 4294901760
      %2009 = vmatpush.msra.mxu0 %v2008
      %v2010 = vand.u32 %v1462, 4294901760
      %2011 = vmatmul.f32.gmra.mxu0 %v2010
      %v2012 = vpop.f32.mrf.mxu0
      %v2013 = vadd.f32 %v1991, %v2012
      %2014 = vdwg.mxu0
      %v2015 = vmul.f32 %v2013, %v2013
      %2017 = vrot.lane.b32.xlu0 %v2015, 1
      %v2018 = vpop.permute.xlu0 %2017
      %v2020 = vsub.f32 %v2013, %v2018
      %v2021 = vmax.f32 %v2020, 0.0
      %v2022 = vadd.f32 %v2021, 1e-05
      %v2023 = vrsqrt.pop %v2022
      %v2024 = vmul.f32 %v2023, %v2022
      %v2025 = vmul.f32 %v2024, %v2023
      %v2026 = vmul.f32 0.5, %v2025
      %v2027 = vsub.f32 1.5, %v2026
      %v2028 = vmul.f32 %v2023, %v2027
      %vm2029 = vweird.f32 %v2022
      %vm2030 = vweird.f32 %v2023
      %vm2031 = vmor %vm2029, %vm2030
      %v2032 = vsel %vm2031, %v2023, %v2028
      %v2033 = vld [vmem:[%s17] sm:$0xff]
      %2035 = vset.pattern.permute.xlu0 0
      %2036 = vperm.xlu0 %2035, %v2013
      %v2037 = vpop.permute.xlu0 %2036
      %v2039 = vsub.f32 %v1858, %v2037
      %v2040 = vsub.f32 %v1859, %v2037
      %2042 = vrot.lane.b32.xlu0 %v2033, 1
      %v2043 = vpop.permute.xlu0 %2042
      %v2045 = vmul.f32 %v2032, %v2043
      %2047 = vset.pattern.permute.xlu0 1
      %2048 = vperm.xlu0 %2047, %v2045
      %v2049 = vpop.permute.xlu0 %2048
      %v2051 = vmul.f32 %v2039, %v2049
      %v2052 = vmul.f32 %v2040, %v2049
      %2053 = vset.pattern.permute.xlu0 1
      %2054 = vperm.xlu0 %2053, %v2033
      %v2055 = vpop.permute.xlu0 %2054
      %v2057 = vadd.f32 %v2051, %v2055
      %v2058 = vadd.f32 %v2052, %v2055
      %v2059 = vpack.c.bf16 %v2057, %v2057
      %v2060 = vpack.c.bf16 %v2058, %v2058
      %v2061 = vld [vmem:[%s18] sm:$0x3]
      %v2062 = vld [vmem:[%s19] sm:$0xf]
      %2064 = vset.pattern.permute.xlu0 0
      %2065 = vperm.xlu0 %2064, %v2062
      %v2066 = vpop.permute.xlu0 %2065
      %v2069 = vsel %vm1080, %v2061, 0
      %v2072 = vsel %vm1066, %v2059, 0
      %v2075 = vsel %vm1066, %v2060, 0
      %2077 = vmatpush.bf16.msra.mxu0 0
      %2078 = vmatpush.bf16.msra.mxu0 0
      %2079 = vmatpush.bf16.msra.mxu0 0
      %2080 = vmatpush.bf16.msra.mxu0 0
      %2081 = vmatpush.bf16.msra.mxu0 0
      %2082 = vmatpush.bf16.msra.mxu0 0
      %2083 = vmatpush.bf16.msra.mxu0 0
      %2084 = vmatpush.bf16.msra.mxu0 %v2072
      %2085 = vmatmul.bf16.gmra.mxu0 %v2069
      %v2086 = vpop.f32.mrf.mxu0
      %v2087 = vadd.f32 %v2066, %v2086
      %v2088 = vpop.f32.mrf.mxu0
      %2089 = vdwg.mxu0
      %2090 = vmatpush.bf16.msra.mxu0 0
      %2091 = vmatpush.bf16.msra.mxu0 0
      %2092 = vmatpush.bf16.msra.mxu0 0
      %2093 = vmatpush.bf16.msra.mxu0 0
      %2094 = vmatpush.bf16.msra.mxu0 0
      %2095 = vmatpush.bf16.msra.mxu0 0
      %2096 = vmatpush.bf16.msra.mxu0 0
      %2097 = vmatpush.bf16.msra.mxu0 %v2075
      %2098 = vmatmul.bf16.gmra.mxu0 %v2069
      %v2099 = vpop.f32.mrf.mxu0
      %v2100 = vadd.f32 %v2066, %v2099
      %v2101 = vpop.f32.mrf.mxu0
      %2102 = vdwg.mxu0
      %v2103 = vld [vmem:[%s20] sm:$0x3]
      %v2104 = vld [vmem:[%s21] sm:$0xf]
      %2106 = vset.pattern.permute.xlu0 0
      %2107 = vperm.xlu0 %2106, %v2104
      %v2108 = vpop.permute.xlu0 %2107
      %v2111 = vsel %vm1080, %v2103, 0
      %2113 = vmatpush.bf16.msra.mxu0 0
      %2114 = vmatpush.bf16.msra.mxu0 0
      %2115 = vmatpush.bf16.msra.mxu0 0
      %2116 = vmatpush.bf16.msra.mxu0 0
      %2117 = vmatpush.bf16.msra.mxu0 0
      %2118 = vmatpush.bf16.msra.mxu0 0
      %2119 = vmatpush.bf16.msra.mxu0 0
      %2120 = vmatpush.bf16.msra.mxu0 %v2072
      %2121 = vmatmul.bf16.gmra.mxu0 %v2111
      %v2122 = vpop.f32.mrf.mxu0
      %v2123 = vadd.f32 %v2108, %v2122
      %v2124 = vpop.f32.mrf.mxu0
      %2125 = vdwg.mxu0
      %2126 = vmatpush.bf16.msra.mxu0 0
      %2127 = vmatpush.bf16.msra.mxu0 0
      %2128 = vmatpush.bf16.msra.mxu0 0
      %2129 = vmatpush.bf16.msra.mxu0 0
      %2130 = vmatpush.bf16.msra.mxu0 0
      %2131 = vmatpush.bf16.msra.mxu0 0
      %2132 = vmatpush.bf16.msra.mxu0 0
      %2133 = vmatpush.bf16.msra.mxu0 %v2075
      %2134 = vmatmul.bf16.gmra.mxu0 %v2111
      %v2135 = vpop.f32.mrf.mxu0
      %v2136 = vadd.f32 %v2108, %v2135
      %v2137 = vpop.f32.mrf.mxu0
      %2138 = vdwg.mxu0
      %v2139 = vld [vmem:[%s22] sm:$0xf]
      %v2140 = vld [vmem:[%s23] sm:$0xff]
      %2142 = vset.pattern.permute.xlu0 0
      %2143 = vperm.xlu0 %2142, %v2140
      %v2144 = vpop.permute.xlu0 %2143
      %v2147 = vsel %vm1080, %v2139, 0
      %2149 = vmatpush.bf16.msra.mxu0 0
      %2150 = vmatpush.bf16.msra.mxu0 0
      %2151 = vmatpush.bf16.msra.mxu0 0
      %2152 = vmatpush.bf16.msra.mxu0 0
      %2153 = vmatpush.bf16.msra.mxu0 0
      %2154 = vmatpush.bf16.msra.mxu0 0
      %2155 = vmatpush.bf16.msra.mxu0 0
      %2156 = vmatpush.bf16.msra.mxu0 %v2072
      %2157 = vmatmul.bf16.gmra.mxu0 %v2147
      %v2158 = vpop.f32.mrf.mxu0
      %v2159 = vadd.f32 %v2144, %v2158
      %v2160 = vpop.f32.mrf.mxu0
      %2161 = vdwg.mxu0
      %2162 = vmatpush.bf16.msra.mxu0 0
      %2163 = vmatpush.bf16.msra.mxu0 0
      %2164 = vmatpush.bf16.msra.mxu0 0
      %2165 = vmatpush.bf16.msra.mxu0 0
      %2166 = vmatpush.bf16.msra.mxu0 0
      %2167 = vmatpush.bf16.msra.mxu0 0
      %2168 = vmatpush.bf16.msra.mxu0 0
      %2169 = vmatpush.bf16.msra.mxu0 %v2075
      %2170 = vmatmul.bf16.gmra.mxu0 %v2147
      %v2171 = vpop.f32.mrf.mxu0
      %v2172 = vadd.f32 %v2144, %v2171
      %v2173 = vpop.f32.mrf.mxu0
      %2174 = vdwg.mxu0
      %v2175 = vpack.c.bf16 %v2100, %v2087
      %2176 = vxpose.xlu0.b32.start [1/16] %v2123, 128
      %2177 = vxpose.xlu0.b32.cont [2/16] 0.0, 128
      %2178 = vxpose.xlu0.b32.cont [3/16] 0.0, 128
      %2179 = vxpose.xlu0.b32.cont [4/16] 0.0, 128
      %2180 = vxpose.xlu0.b32.cont [5/16] 0.0, 128
      %2181 = vxpose.xlu0.b32.cont [6/16] 0.0, 128
      %2182 = vxpose.xlu0.b32.cont [7/16] 0.0, 128
      %2183 = vxpose.xlu0.b32.cont [8/16] 0.0, 128
      %2184 = vxpose.xlu0.b32.cont [9/16] 0.0, 128
      %2185 = vxpose.xlu0.b32.cont [10/16] 0.0, 128
      %2186 = vxpose.xlu0.b32.cont [11/16] 0.0, 128
      %2187 = vxpose.xlu0.b32.cont [12/16] 0.0, 128
      %2188 = vxpose.xlu0.b32.cont [13/16] 0.0, 128
      %2189 = vxpose.xlu0.b32.cont [14/16] 0.0, 128
      %2190 = vxpose.xlu0.b32.cont [15/16] 0.0, 128
      %2191 = vxpose.xlu0.b32.end [16/16] 0.0, 128
      %v2192 = vpop.trf.xlu0
      %v2193 = vpop.trf.xlu0
      %v2194 = vpop.trf.xlu0
      %v2195 = vpop.trf.xlu0
      %v2196 = vpop.trf.xlu0
      %v2197 = vpop.trf.xlu0
      %v2198 = vpop.trf.xlu0
      %v2199 = vpop.trf.xlu0
      %v2200 = vpop.trf.xlu0
      %v2201 = vpop.trf.xlu0
      %v2202 = vpop.trf.xlu0
      %v2203 = vpop.trf.xlu0
      %v2204 = vpop.trf.xlu0
      %v2205 = vpop.trf.xlu0
      %v2206 = vpop.trf.xlu0
      %v2207 = vpop.trf.xlu0
      %2208 = vxpose.xlu0.b32.start [1/16] %v2136, 128
      %2209 = vxpose.xlu0.b32.cont [2/16] 0.0, 128
      %2210 = vxpose.xlu0.b32.cont [3/16] 0.0, 128
      %2211 = vxpose.xlu0.b32.cont [4/16] 0.0, 128
      %2212 = vxpose.xlu0.b32.cont [5/16] 0.0, 128
      %2213 = vxpose.xlu0.b32.cont [6/16] 0.0, 128
      %2214 = vxpose.xlu0.b32.cont [7/16] 0.0, 128
      %2215 = vxpose.xlu0.b32.cont [8/16] 0.0, 128
      %2216 = vxpose.xlu0.b32.cont [9/16] 0.0, 128
      %2217 = vxpose.xlu0.b32.cont [10/16] 0.0, 128
      %2218 = vxpose.xlu0.b32.cont [11/16] 0.0, 128
      %2219 = vxpose.xlu0.b32.cont [12/16] 0.0, 128
      %2220 = vxpose.xlu0.b32.cont [13/16] 0.0, 128
      %2221 = vxpose.xlu0.b32.cont [14/16] 0.0, 128
      %2222 = vxpose.xlu0.b32.cont [15/16] 0.0, 128
      %2223 = vxpose.xlu0.b32.end [16/16] 0.0, 128
      %v2224 = vpop.trf.xlu0
      %v2225 = vpop.trf.xlu0
      %v2226 = vpop.trf.xlu0
      %v2227 = vpop.trf.xlu0
      %v2228 = vpop.trf.xlu0
      %v2229 = vpop.trf.xlu0
      %v2230 = vpop.trf.xlu0
      %v2231 = vpop.trf.xlu0
      %v2232 = vpop.trf.xlu0
      %v2233 = vpop.trf.xlu0
      %v2234 = vpop.trf.xlu0
      %v2235 = vpop.trf.xlu0
      %v2236 = vpop.trf.xlu0
      %v2237 = vpop.trf.xlu0
      %v2238 = vpop.trf.xlu0
      %v2239 = vpop.trf.xlu0
      %v2240 = vpack.c.bf16 %v2193, %v2192
      %v2241 = vpack.c.bf16 %v2195, %v2194
      %v2242 = vpack.c.bf16 %v2197, %v2196
      %v2243 = vpack.c.bf16 %v2199, %v2198
      %v2244 = vpack.c.bf16 %v2201, %v2200
      %v2245 = vpack.c.bf16 %v2203, %v2202
      %v2246 = vpack.c.bf16 %v2205, %v2204
      %v2247 = vpack.c.bf16 %v2207, %v2206
      %v2248 = vpack.c.bf16 %v2225, %v2224
      %v2249 = vpack.c.bf16 %v2227, %v2226
      %v2250 = vpack.c.bf16 %v2229, %v2228
      %v2251 = vpack.c.bf16 %v2231, %v2230
      %v2252 = vpack.c.bf16 %v2233, %v2232
      %v2253 = vpack.c.bf16 %v2235, %v2234
      %v2254 = vpack.c.bf16 %v2237, %v2236
      %v2255 = vpack.c.bf16 %v2239, %v2238
      %v2256 = vpack.c.bf16 %v2159, %v2159
      %v2257 = vpack.c.bf16 %v2172, %v2172
      %s2258 = scalar_lea.vmem %s18, 2
      %v2259 = vld [vmem:[%s2258] sm:$0x3]
      %s2260 = scalar_lea.vmem %s19, 4
      %v2261 = vld [vmem:[%s2260] sm:$0xf]
      %2263 = vset.pattern.permute.xlu0 0
      %2264 = vperm.xlu0 %2263, %v2261
      %v2265 = vpop.permute.xlu0 %2264
      %v2268 = vsel %vm1080, %v2259, 0
      %2270 = vmatpush.bf16.msra.mxu0 0
      %2271 = vmatpush.bf16.msra.mxu0 0
      %2272 = vmatpush.bf16.msra.mxu0 0
      %2273 = vmatpush.bf16.msra.mxu0 0
      %2274 = vmatpush.bf16.msra.mxu0 0
      %2275 = vmatpush.bf16.msra.mxu0 0
      %2276 = vmatpush.bf16.msra.mxu0 0
      %2277 = vmatpush.bf16.msra.mxu0 %v2072
      %2278 = vmatmul.bf16.gmra.mxu0 %v2268
      %v2279 = vpop.f32.mrf.mxu0
      %v2280 = vadd.f32 %v2265, %v2279
      %v2281 = vpop.f32.mrf.mxu0
      %2282 = vdwg.mxu0
      %2283 = vmatpush.bf16.msra.mxu0 0
      %2284 = vmatpush.bf16.msra.mxu0 0
      %2285 = vmatpush.bf16.msra.mxu0 0
      %2286 = vmatpush.bf16.msra.mxu0 0
      %2287 = vmatpush.bf16.msra.mxu0 0
      %2288 = vmatpush.bf16.msra.mxu0 0
      %2289 = vmatpush.bf16.msra.mxu0 0
      %2290 = vmatpush.bf16.msra.mxu0 %v2075
      %2291 = vmatmul.bf16.gmra.mxu0 %v2268
      %v2292 = vpop.f32.mrf.mxu0
      %v2293 = vadd.f32 %v2265, %v2292
      %v2294 = vpop.f32.mrf.mxu0
      %2295 = vdwg.mxu0
      %s2296 = scalar_lea.vmem %s20, 2
      %v2297 = vld [vmem:[%s2296] sm:$0x3]
      %s2298 = scalar_lea.vmem %s21, 4
      %v2299 = vld [vmem:[%s2298] sm:$0xf]
      %2301 = vset.pattern.permute.xlu0 0
      %2302 = vperm.xlu0 %2301, %v2299
      %v2303 = vpop.permute.xlu0 %2302
      %v2306 = vsel %vm1080, %v2297, 0
      %2308 = vmatpush.bf16.msra.mxu0 0
      %2309 = vmatpush.bf16.msra.mxu0 0
      %2310 = vmatpush.bf16.msra.mxu0 0
      %2311 = vmatpush.bf16.msra.mxu0 0
      %2312 = vmatpush.bf16.msra.mxu0 0
      %2313 = vmatpush.bf16.msra.mxu0 0
      %2314 = vmatpush.bf16.msra.mxu0 0
      %2315 = vmatpush.bf16.msra.mxu0 %v2072
      %2316 = vmatmul.bf16.gmra.mxu0 %v2306
      %v2317 = vpop.f32.mrf.mxu0
      %v2318 = vadd.f32 %v2303, %v2317
      %v2319 = vpop.f32.mrf.mxu0
      %2320 = vdwg.mxu0
      %2321 = vmatpush.bf16.msra.mxu0 0
      %2322 = vmatpush.bf16.msra.mxu0 0
      %2323 = vmatpush.bf16.msra.mxu0 0
      %2324 = vmatpush.bf16.msra.mxu0 0
      %2325 = vmatpush.bf16.msra.mxu0 0
      %2326 = vmatpush.bf16.msra.mxu0 0
      %2327 = vmatpush.bf16.msra.mxu0 0
      %2328 = vmatpush.bf16.msra.mxu0 %v2075
      %2329 = vmatmul.bf16.gmra.mxu0 %v2306
      %v2330 = vpop.f32.mrf.mxu0
      %v2331 = vadd.f32 %v2303, %v2330
      %v2332 = vpop.f32.mrf.mxu0
      %2333 = vdwg.mxu0
      %s2334 = scalar_lea.vmem %s22, 4
      %v2335 = vld [vmem:[%s2334] sm:$0xf]
      %s2336 = scalar_lea.vmem %s23, 8
      %v2337 = vld [vmem:[%s2336] sm:$0xff]
      %2339 = vset.pattern.permute.xlu0 0
      %2340 = vperm.xlu0 %2339, %v2337
      %v2341 = vpop.permute.xlu0 %2340
      %v2344 = vsel %vm1080, %v2335, 0
      %2346 = vmatpush.bf16.msra.mxu0 0
      %2347 = vmatpush.bf16.msra.mxu0 0
      %2348 = vmatpush.bf16.msra.mxu0 0
      %2349 = vmatpush.bf16.msra.mxu0 0
      %2350 = vmatpush.bf16.msra.mxu0 0
      %2351 = vmatpush.bf16.msra.mxu0 0
      %2352 = vmatpush.bf16.msra.mxu0 0
      %2353 = vmatpush.bf16.msra.mxu0 %v2072
      %2354 = vmatmul.bf16.gmra.mxu0 %v2344
      %v2355 = vpop.f32.mrf.mxu0
      %v2356 = vadd.f32 %v2341, %v2355
      %v2357 = vpop.f32.mrf.mxu0
      %2358 = vdwg.mxu0
      %2359 = vmatpush.bf16.msra.mxu0 0
      %2360 = vmatpush.bf16.msra.mxu0 0
      %2361 = vmatpush.bf16.msra.mxu0 0
      %2362 = vmatpush.bf16.msra.mxu0 0
      %2363 = vmatpush.bf16.msra.mxu0 0
      %2364 = vmatpush.bf16.msra.mxu0 0
      %2365 = vmatpush.bf16.msra.mxu0 0
      %2366 = vmatpush.bf16.msra.mxu0 %v2075
      %2367 = vmatmul.bf16.gmra.mxu0 %v2344
      %v2368 = vpop.f32.mrf.mxu0
      %v2369 = vadd.f32 %v2341, %v2368
      %v2370 = vpop.f32.mrf.mxu0
      %2371 = vdwg.mxu0
      %v2372 = vpack.c.bf16 %v2293, %v2280
      %2373 = vxpose.xlu0.b32.start [1/16] %v2318, 128
      %2374 = vxpose.xlu0.b32.cont [2/16] 0.0, 128
      %2375 = vxpose.xlu0.b32.cont [3/16] 0.0, 128
      %2376 = vxpose.xlu0.b32.cont [4/16] 0.0, 128
      %2377 = vxpose.xlu0.b32.cont [5/16] 0.0, 128
      %2378 = vxpose.xlu0.b32.cont [6/16] 0.0, 128
      %2379 = vxpose.xlu0.b32.cont [7/16] 0.0, 128
      %2380 = vxpose.xlu0.b32.cont [8/16] 0.0, 128
      %2381 = vxpose.xlu0.b32.cont [9/16] 0.0, 128
      %2382 = vxpose.xlu0.b32.cont [10/16] 0.0, 128
      %2383 = vxpose.xlu0.b32.cont [11/16] 0.0, 128
      %2384 = vxpose.xlu0.b32.cont [12/16] 0.0, 128
      %2385 = vxpose.xlu0.b32.cont [13/16] 0.0, 128
      %2386 = vxpose.xlu0.b32.cont [14/16] 0.0, 128
      %2387 = vxpose.xlu0.b32.cont [15/16] 0.0, 128
      %2388 = vxpose.xlu0.b32.end [16/16] 0.0, 128
      %v2389 = vpop.trf.xlu0
      %v2390 = vpop.trf.xlu0
      %v2391 = vpop.trf.xlu0
      %v2392 = vpop.trf.xlu0
      %v2393 = vpop.trf.xlu0
      %v2394 = vpop.trf.xlu0
      %v2395 = vpop.trf.xlu0
      %v2396 = vpop.trf.xlu0
      %v2397 = vpop.trf.xlu0
      %v2398 = vpop.trf.xlu0
      %v2399 = vpop.trf.xlu0
      %v2400 = vpop.trf.xlu0
      %v2401 = vpop.trf.xlu0
      %v2402 = vpop.trf.xlu0
      %v2403 = vpop.trf.xlu0
      %v2404 = vpop.trf.xlu0
      %2405 = vxpose.xlu0.b32.start [1/16] %v2331, 128
      %2406 = vxpose.xlu0.b32.cont [2/16] 0.0, 128
      %2407 = vxpose.xlu0.b32.cont [3/16] 0.0, 128
      %2408 = vxpose.xlu0.b32.cont [4/16] 0.0, 128
      %2409 = vxpose.xlu0.b32.cont [5/16] 0.0, 128
      %2410 = vxpose.xlu0.b32.cont [6/16] 0.0, 128
      %2411 = vxpose.xlu0.b32.cont [7/16] 0.0, 128
      %2412 = vxpose.xlu0.b32.cont [8/16] 0.0, 128
      %2413 = vxpose.xlu0.b32.cont [9/16] 0.0, 128
      %2414 = vxpose.xlu0.b32.cont [10/16] 0.0, 128
      %2415 = vxpose.xlu0.b32.cont [11/16] 0.0, 128
      %2416 = vxpose.xlu0.b32.cont [12/16] 0.0, 128
      %2417 = vxpose.xlu0.b32.cont [13/16] 0.0, 128
      %2418 = vxpose.xlu0.b32.cont [14/16] 0.0, 128
      %2419 = vxpose.xlu0.b32.cont [15/16] 0.0, 128
      %2420 = vxpose.xlu0.b32.end [16/16] 0.0, 128
      %v2421 = vpop.trf.xlu0
      %v2422 = vpop.trf.xlu0
      %v2423 = vpop.trf.xlu0
      %v2424 = vpop.trf.xlu0
      %v2425 = vpop.trf.xlu0
      %v2426 = vpop.trf.xlu0
      %v2427 = vpop.trf.xlu0
      %v2428 = vpop.trf.xlu0
      %v2429 = vpop.trf.xlu0
      %v2430 = vpop.trf.xlu0
      %v2431 = vpop.trf.xlu0
      %v2432 = vpop.trf.xlu0
      %v2433 = vpop.trf.xlu0
      %v2434 = vpop.trf.xlu0
      %v2435 = vpop.trf.xlu0
      %v2436 = vpop.trf.xlu0
      %v2437 = vpack.c.bf16 %v2390, %v2389
      %v2438 = vpack.c.bf16 %v2392, %v2391
      %v2439 = vpack.c.bf16 %v2394, %v2393
      %v2440 = vpack.c.bf16 %v2396, %v2395
      %v2441 = vpack.c.bf16 %v2398, %v2397
      %v2442 = vpack.c.bf16 %v2400, %v2399
      %v2443 = vpack.c.bf16 %v2402, %v2401
      %v2444 = vpack.c.bf16 %v2404, %v2403
      %v2445 = vpack.c.bf16 %v2422, %v2421
      %v2446 = vpack.c.bf16 %v2424, %v2423
      %v2447 = vpack.c.bf16 %v2426, %v2425
      %v2448 = vpack.c.bf16 %v2428, %v2427
      %v2449 = vpack.c.bf16 %v2430, %v2429
      %v2450 = vpack.c.bf16 %v2432, %v2431
      %v2451 = vpack.c.bf16 %v2434, %v2433
      %v2452 = vpack.c.bf16 %v2436, %v2435
      %v2453 = vpack.c.bf16 %v2356, %v2356
      %v2454 = vpack.c.bf16 %v2369, %v2369
      %vm2455 = vcmask 31744
      %v2457 = vsel %vm2455, %v2240, 0
      %v2460 = vsel %vm2455, %v2241, 0
      %v2463 = vsel %vm2455, %v2242, 0
      %v2466 = vsel %vm2455, %v2243, 0
      %v2469 = vsel %vm2455, %v2244, 0
      %v2472 = vsel %vm2455, %v2245, 0
      %v2475 = vsel %vm2455, %v2246, 0
      %v2478 = vsel %vm2455, %v2247, 0
      %v2481 = vsel %vm2455, %v2248, 0
      %v2484 = vsel %vm2455, %v2249, 0
      %v2487 = vsel %vm2455, %v2250, 0
      %v2490 = vsel %vm2455, %v2251, 0
      %v2493 = vsel %vm2455, %v2252, 0
      %v2496 = vsel %vm2455, %v2253, 0
      %v2499 = vsel %vm2455, %v2254, 0
      %v2502 = vsel %vm2455, %v2255, 0
      %vm2504 = vcmask 1041408
      %v2506 = vsel %vm2504, %v2175, 0
      %2508 = vmatpush.bf16.msra.mxu0 0
      %2509 = vmatpush.bf16.msra.mxu0 0
      %2510 = vmatpush.bf16.msra.mxu0 0
      %2511 = vmatpush.bf16.msra.mxu0 0
      %2512 = vmatpush.bf16.msra.mxu0 0
      %2513 = vmatpush.bf16.msra.mxu0 0
      %2514 = vmatpush.bf16.msra.mxu0 0
      %2515 = vmatpush.bf16.msra.mxu0 %v2506
      %2516 = vmatmul.bf16.gmra.mxu0 %v2457
      %v2517 = vpop.f32.mrf.mxu0
      %v2518 = vadd.f32 0.0, %v2517
      %v2519 = vpop.f32.mrf.mxu0
      %v2520 = vadd.f32 0.0, %v2519
      %2521 = vmatmul.bf16.gmra.mxu0 %v2460
      %v2522 = vpop.f32.mrf.mxu0
      %v2523 = vadd.f32 0.0, %v2522
      %v2524 = vpop.f32.mrf.mxu0
      %v2525 = vadd.f32 0.0, %v2524
      %2526 = vmatmul.bf16.gmra.mxu0 %v2463
      %v2527 = vpop.f32.mrf.mxu0
      %v2528 = vadd.f32 0.0, %v2527
      %v2529 = vpop.f32.mrf.mxu0
      %v2530 = vadd.f32 0.0, %v2529
      %2531 = vmatmul.bf16.gmra.mxu0 %v2466
      %v2532 = vpop.f32.mrf.mxu0
      %v2533 = vadd.f32 0.0, %v2532
      %v2534 = vpop.f32.mrf.mxu0
      %v2535 = vadd.f32 0.0, %v2534
      %2536 = vmatmul.bf16.gmra.mxu0 %v2469
      %v2537 = vpop.f32.mrf.mxu0
      %v2538 = vadd.f32 0.0, %v2537
      %v2539 = vpop.f32.mrf.mxu0
      %v2540 = vadd.f32 0.0, %v2539
      %2541 = vmatmul.bf16.gmra.mxu0 %v2472
      %v2542 = vpop.f32.mrf.mxu0
      %v2543 = vadd.f32 0.0, %v2542
      %v2544 = vpop.f32.mrf.mxu0
      %v2545 = vadd.f32 0.0, %v2544
      %2546 = vmatmul.bf16.gmra.mxu0 %v2475
      %v2547 = vpop.f32.mrf.mxu0
      %v2548 = vadd.f32 0.0, %v2547
      %v2549 = vpop.f32.mrf.mxu0
      %v2550 = vadd.f32 0.0, %v2549
      %2551 = vmatmul.bf16.gmra.mxu0 %v2478
      %v2552 = vpop.f32.mrf.mxu0
      %v2553 = vadd.f32 0.0, %v2552
      %v2554 = vpop.f32.mrf.mxu0
      %v2555 = vadd.f32 0.0, %v2554
      %2556 = vmatmul.bf16.gmra.mxu0 %v2481
      %v2557 = vpop.f32.mrf.mxu0
      %v2558 = vadd.f32 0.0, %v2557
      %v2559 = vpop.f32.mrf.mxu0
      %v2560 = vadd.f32 0.0, %v2559
      %2561 = vmatmul.bf16.gmra.mxu0 %v2484
      %v2562 = vpop.f32.mrf.mxu0
      %v2563 = vadd.f32 0.0, %v2562
      %v2564 = vpop.f32.mrf.mxu0
      %v2565 = vadd.f32 0.0, %v2564
      %2566 = vmatmul.bf16.gmra.mxu0 %v2487
      %v2567 = vpop.f32.mrf.mxu0
      %v2568 = vadd.f32 0.0, %v2567
      %v2569 = vpop.f32.mrf.mxu0
      %v2570 = vadd.f32 0.0, %v2569
      %2571 = vmatmul.bf16.gmra.mxu0 %v2490
      %v2572 = vpop.f32.mrf.mxu0
      %v2573 = vadd.f32 0.0, %v2572
      %v2574 = vpop.f32.mrf.mxu0
      %v2575 = vadd.f32 0.0, %v2574
      %2576 = vmatmul.bf16.gmra.mxu0 %v2493
      %v2577 = vpop.f32.mrf.mxu0
      %v2578 = vadd.f32 0.0, %v2577
      %v2579 = vpop.f32.mrf.mxu0
      %v2580 = vadd.f32 0.0, %v2579
      %2581 = vmatmul.bf16.gmra.mxu0 %v2496
      %v2582 = vpop.f32.mrf.mxu0
      %v2583 = vadd.f32 0.0, %v2582
      %v2584 = vpop.f32.mrf.mxu0
      %v2585 = vadd.f32 0.0, %v2584
      %2586 = vmatmul.bf16.gmra.mxu0 %v2499
      %v2587 = vpop.f32.mrf.mxu0
      %v2588 = vadd.f32 0.0, %v2587
      %v2589 = vpop.f32.mrf.mxu0
      %v2590 = vadd.f32 0.0, %v2589
      %2591 = vmatmul.bf16.gmra.mxu0 %v2502
      %v2592 = vpop.f32.mrf.mxu0
      %v2593 = vadd.f32 0.0, %v2592
      %v2594 = vpop.f32.mrf.mxu0
      %v2595 = vadd.f32 0.0, %v2594
      %2596 = vdwg.mxu0
      %v2597 = vmul.f32 %v2518, 0.5
      %v2598 = vmul.f32 %v2520, 0.5
      %v2599 = vmul.f32 %v2523, 0.5
      %v2600 = vmul.f32 %v2525, 0.5
      %v2601 = vmul.f32 %v2528, 0.5
      %v2602 = vmul.f32 %v2530, 0.5
      %v2603 = vmul.f32 %v2533, 0.5
      %v2604 = vmul.f32 %v2535, 0.5
      %v2605 = vmul.f32 %v2538, 0.5
      %v2606 = vmul.f32 %v2540, 0.5
      %v2607 = vmul.f32 %v2543, 0.5
      %v2608 = vmul.f32 %v2545, 0.5
      %v2609 = vmul.f32 %v2548, 0.5
      %v2610 = vmul.f32 %v2550, 0.5
      %v2611 = vmul.f32 %v2553, 0.5
      %v2612 = vmul.f32 %v2555, 0.5
      %v2613 = vmul.f32 %v2558, 0.5
      %v2614 = vmul.f32 %v2560, 0.5
      %v2615 = vmul.f32 %v2563, 0.5
      %v2616 = vmul.f32 %v2565, 0.5
      %v2617 = vmul.f32 %v2568, 0.5
      %v2618 = vmul.f32 %v2570, 0.5
      %v2619 = vmul.f32 %v2573, 0.5
      %v2620 = vmul.f32 %v2575, 0.5
      %v2621 = vmul.f32 %v2578, 0.5
      %v2622 = vmul.f32 %v2580, 0.5
      %v2623 = vmul.f32 %v2583, 0.5
      %v2624 = vmul.f32 %v2585, 0.5
      %v2625 = vmul.f32 %v2588, 0.5
      %v2626 = vmul.f32 %v2590, 0.5
      %v2627 = vmul.f32 %v2593, 0.5
      %v2628 = vmul.f32 %v2595, 0.5
      %v2629 = vmax.f32 %v2597, %v2601
      %v2630 = vmax.f32 %v2598, %v2602
      %v2631 = vmax.f32 %v2599, %v2603
      %v2632 = vmax.f32 %v2600, %v2604
      %v2633 = vmax.f32 %v2629, %v2605
      %v2634 = vmax.f32 %v2630, %v2606
      %v2635 = vmax.f32 %v2631, %v2607
      %v2636 = vmax.f32 %v2632, %v2608
      %v2637 = vmax.f32 %v2633, %v2609
      %v2638 = vmax.f32 %v2634, %v2610
      %v2639 = vmax.f32 %v2635, %v2611
      %v2640 = vmax.f32 %v2636, %v2612
      %v2641 = vmax.f32 %v2637, %v2613
      %v2642 = vmax.f32 %v2638, %v2614
      %v2643 = vmax.f32 %v2639, %v2615
      %v2644 = vmax.f32 %v2640, %v2616
      %v2645 = vmax.f32 %v2641, %v2617
      %v2646 = vmax.f32 %v2642, %v2618
      %v2647 = vmax.f32 %v2643, %v2619
      %v2648 = vmax.f32 %v2644, %v2620
      %v2649 = vmax.f32 %v2645, %v2621
      %v2650 = vmax.f32 %v2646, %v2622
      %v2651 = vmax.f32 %v2647, %v2623
      %v2652 = vmax.f32 %v2648, %v2624
      %v2653 = vmax.f32 %v2649, %v2625
      %v2654 = vmax.f32 %v2650, %v2626
      %v2655 = vmax.f32 %v2651, %v2627
      %v2656 = vmax.f32 %v2652, %v2628
      %v2657 = vmax.f32 %v2653, %v2654
      %v2658 = vmax.f32 %v2655, %v2656
      %v2659 = vmax.f32 %v2657, %v2658
      %v2660 = vrot.slane %v2659, 4
      %v2661 = vmax.f32 %v2659, %v2660
      %v2662 = vrot.slane %v2661, 2
      %v2663 = vmax.f32 %v2661, %v2662
      %v2664 = vrot.slane %v2663, 1
      %v2665 = vmax.f32 %v2663, %v2664
      %v2666 = vsub.f32 %v2597, %v2665
      %v2667 = vsub.f32 %v2598, %v2665
      %v2668 = vsub.f32 %v2599, %v2665
      %v2669 = vsub.f32 %v2600, %v2665
      %v2670 = vsub.f32 %v2601, %v2665
      %v2671 = vsub.f32 %v2602, %v2665
      %v2672 = vsub.f32 %v2603, %v2665
      %v2673 = vsub.f32 %v2604, %v2665
      %v2674 = vsub.f32 %v2605, %v2665
      %v2675 = vsub.f32 %v2606, %v2665
      %v2676 = vsub.f32 %v2607, %v2665
      %v2677 = vsub.f32 %v2608, %v2665
      %v2678 = vsub.f32 %v2609, %v2665
      %v2679 = vsub.f32 %v2610, %v2665
      %v2680 = vsub.f32 %v2611, %v2665
      %v2681 = vsub.f32 %v2612, %v2665
      %v2682 = vsub.f32 %v2613, %v2665
      %v2683 = vsub.f32 %v2614, %v2665
      %v2684 = vsub.f32 %v2615, %v2665
      %v2685 = vsub.f32 %v2616, %v2665
      %v2686 = vsub.f32 %v2617, %v2665
      %v2687 = vsub.f32 %v2618, %v2665
      %v2688 = vsub.f32 %v2619, %v2665
      %v2689 = vsub.f32 %v2620, %v2665
      %v2690 = vsub.f32 %v2621, %v2665
      %v2691 = vsub.f32 %v2622, %v2665
      %v2692 = vsub.f32 %v2623, %v2665
      %v2693 = vsub.f32 %v2624, %v2665
      %v2694 = vsub.f32 %v2625, %v2665
      %v2695 = vsub.f32 %v2626, %v2665
      %v2696 = vsub.f32 %v2627, %v2665
      %v2697 = vsub.f32 %v2628, %v2665
      %v2698 = vmul.f32 %v2666, 1.442695
      %v2699 = vpow.pop %v2698
      %v2700 = vmul.f32 %v2667, 1.442695
      %v2701 = vpow.pop %v2700
      %v2702 = vmul.f32 %v2668, 1.442695
      %v2703 = vpow.pop %v2702
      %v2704 = vmul.f32 %v2669, 1.442695
      %v2705 = vpow.pop %v2704
      %v2706 = vmul.f32 %v2670, 1.442695
      %v2707 = vpow.pop %v2706
      %v2708 = vmul.f32 %v2671, 1.442695
      %v2709 = vpow.pop %v2708
      %v2710 = vmul.f32 %v2672, 1.442695
      %v2711 = vpow.pop %v2710
      %v2712 = vmul.f32 %v2673, 1.442695
      %v2713 = vpow.pop %v2712
      %v2714 = vmul.f32 %v2674, 1.442695
      %v2715 = vpow.pop %v2714
      %v2716 = vmul.f32 %v2675, 1.442695
      %v2717 = vpow.pop %v2716
      %v2718 = vmul.f32 %v2676, 1.442695
      %v2719 = vpow.pop %v2718
      %v2720 = vmul.f32 %v2677, 1.442695
      %v2721 = vpow.pop %v2720
      %v2722 = vmul.f32 %v2678, 1.442695
      %v2723 = vpow.pop %v2722
      %v2724 = vmul.f32 %v2679, 1.442695
      %v2725 = vpow.pop %v2724
      %v2726 = vmul.f32 %v2680, 1.442695
      %v2727 = vpow.pop %v2726
      %v2728 = vmul.f32 %v2681, 1.442695
      %v2729 = vpow.pop %v2728
      %v2730 = vmul.f32 %v2682, 1.442695
      %v2731 = vpow.pop %v2730
      %v2732 = vmul.f32 %v2683, 1.442695
      %v2733 = vpow.pop %v2732
      %v2734 = vmul.f32 %v2684, 1.442695
      %v2735 = vpow.pop %v2734
      %v2736 = vmul.f32 %v2685, 1.442695
      %v2737 = vpow.pop %v2736
      %v2738 = vmul.f32 %v2686, 1.442695
      %v2739 = vpow.pop %v2738
      %v2740 = vmul.f32 %v2687, 1.442695
      %v2741 = vpow.pop %v2740
      %v2742 = vmul.f32 %v2688, 1.442695
      %v2743 = vpow.pop %v2742
      %v2744 = vmul.f32 %v2689, 1.442695
      %v2745 = vpow.pop %v2744
      %v2746 = vmul.f32 %v2690, 1.442695
      %v2747 = vpow.pop %v2746
      %v2748 = vmul.f32 %v2691, 1.442695
      %v2749 = vpow.pop %v2748
      %v2750 = vmul.f32 %v2692, 1.442695
      %v2751 = vpow.pop %v2750
      %v2752 = vmul.f32 %v2693, 1.442695
      %v2753 = vpow.pop %v2752
      %v2754 = vmul.f32 %v2694, 1.442695
      %v2755 = vpow.pop %v2754
      %v2756 = vmul.f32 %v2695, 1.442695
      %v2757 = vpow.pop %v2756
      %v2758 = vmul.f32 %v2696, 1.442695
      %v2759 = vpow.pop %v2758
      %v2760 = vmul.f32 %v2697, 1.442695
      %v2761 = vpow.pop %v2760
      %v2762 = vadd.f32 %v2699, %v2701
      %v2763 = vadd.f32 %v2762, %v2703
      %v2764 = vadd.f32 %v2763, %v2705
      %v2765 = vadd.f32 %v2764, %v2707
      %v2766 = vadd.f32 %v2765, %v2709
      %v2767 = vadd.f32 %v2766, %v2711
      %v2768 = vadd.f32 %v2767, %v2713
      %v2769 = vadd.f32 %v2768, %v2715
      %v2770 = vadd.f32 %v2769, %v2717
      %v2771 = vadd.f32 %v2770, %v2719
      %v2772 = vadd.f32 %v2771, %v2721
      %v2773 = vadd.f32 %v2772, %v2723
      %v2774 = vadd.f32 %v2773, %v2725
      %v2775 = vadd.f32 %v2774, %v2727
      %v2776 = vadd.f32 %v2775, %v2729
      %v2777 = vadd.f32 %v2776, %v2731
      %v2778 = vadd.f32 %v2777, %v2733
      %v2779 = vadd.f32 %v2778, %v2735
      %v2780 = vadd.f32 %v2779, %v2737
      %v2781 = vadd.f32 %v2780, %v2739
      %v2782 = vadd.f32 %v2781, %v2741
      %v2783 = vadd.f32 %v2782, %v2743
      %v2784 = vadd.f32 %v2783, %v2745
      %v2785 = vadd.f32 %v2784, %v2747
      %v2786 = vadd.f32 %v2785, %v2749
      %v2787 = vadd.f32 %v2786, %v2751
      %v2788 = vadd.f32 %v2787, %v2753
      %v2789 = vadd.f32 %v2788, %v2755
      %v2790 = vadd.f32 %v2789, %v2757
      %v2791 = vadd.f32 %v2790, %v2759
      %v2792 = vadd.f32 %v2791, %v2761
      %v2793 = vrot.slane %v2792, 4
      %v2794 = vadd.f32 %v2792, %v2793
      %v2795 = vrot.slane %v2794, 2
      %v2796 = vadd.f32 %v2794, %v2795
      %v2797 = vrot.slane %v2796, 1
      %v2798 = vadd.f32 %v2796, %v2797
      %v2799 = vrcp.pop %v2798
      %v2800 = vmul.f32 %v2699, %v2799
      %v2801 = vmul.f32 %v2701, %v2799
      %v2802 = vmul.f32 %v2703, %v2799
      %v2803 = vmul.f32 %v2705, %v2799
      %v2804 = vmul.f32 %v2707, %v2799
      %v2805 = vmul.f32 %v2709, %v2799
      %v2806 = vmul.f32 %v2711, %v2799
      %v2807 = vmul.f32 %v2713, %v2799
      %v2808 = vmul.f32 %v2715, %v2799
      %v2809 = vmul.f32 %v2717, %v2799
      %v2810 = vmul.f32 %v2719, %v2799
      %v2811 = vmul.f32 %v2721, %v2799
      %v2812 = vmul.f32 %v2723, %v2799
      %v2813 = vmul.f32 %v2725, %v2799
      %v2814 = vmul.f32 %v2727, %v2799
      %v2815 = vmul.f32 %v2729, %v2799
      %v2816 = vmul.f32 %v2731, %v2799
      %v2817 = vmul.f32 %v2733, %v2799
      %v2818 = vmul.f32 %v2735, %v2799
      %v2819 = vmul.f32 %v2737, %v2799
      %v2820 = vmul.f32 %v2739, %v2799
      %v2821 = vmul.f32 %v2741, %v2799
      %v2822 = vmul.f32 %v2743, %v2799
      %v2823 = vmul.f32 %v2745, %v2799
      %v2824 = vmul.f32 %v2747, %v2799
      %v2825 = vmul.f32 %v2749, %v2799
      %v2826 = vmul.f32 %v2751, %v2799
      %v2827 = vmul.f32 %v2753, %v2799
      %v2828 = vmul.f32 %v2755, %v2799
      %v2829 = vmul.f32 %v2757, %v2799
      %v2830 = vmul.f32 %v2759, %v2799
      %v2831 = vmul.f32 %v2761, %v2799
      %v2832 = vpack.c.bf16 %v2801, %v2800
      %v2833 = vpack.c.bf16 %v2803, %v2802
      %v2834 = vpack.c.bf16 %v2805, %v2804
      %v2835 = vpack.c.bf16 %v2807, %v2806
      %v2836 = vpack.c.bf16 %v2809, %v2808
      %v2837 = vpack.c.bf16 %v2811, %v2810
      %v2838 = vpack.c.bf16 %v2813, %v2812
      %v2839 = vpack.c.bf16 %v2815, %v2814
      %v2840 = vpack.c.bf16 %v2817, %v2816
      %v2841 = vpack.c.bf16 %v2819, %v2818
      %v2842 = vpack.c.bf16 %v2821, %v2820
      %v2843 = vpack.c.bf16 %v2823, %v2822
      %v2844 = vpack.c.bf16 %v2825, %v2824
      %v2845 = vpack.c.bf16 %v2827, %v2826
      %v2846 = vpack.c.bf16 %v2829, %v2828
      %v2847 = vpack.c.bf16 %v2831, %v2830
      %v2849 = vsel %vm2455, %v2437, 0
      %v2852 = vsel %vm2455, %v2438, 0
      %v2855 = vsel %vm2455, %v2439, 0
      %v2858 = vsel %vm2455, %v2440, 0
      %v2861 = vsel %vm2455, %v2441, 0
      %v2864 = vsel %vm2455, %v2442, 0
      %v2867 = vsel %vm2455, %v2443, 0
      %v2870 = vsel %vm2455, %v2444, 0
      %v2873 = vsel %vm2455, %v2445, 0
      %v2876 = vsel %vm2455, %v2446, 0
      %v2879 = vsel %vm2455, %v2447, 0
      %v2882 = vsel %vm2455, %v2448, 0
      %v2885 = vsel %vm2455, %v2449, 0
      %v2888 = vsel %vm2455, %v2450, 0
      %v2891 = vsel %vm2455, %v2451, 0
      %v2894 = vsel %vm2455, %v2452, 0
      %v2897 = vsel %vm2504, %v2372, 0
      %2899 = vmatpush.bf16.msra.mxu0 0
      %2900 = vmatpush.bf16.msra.mxu0 0
      %2901 = vmatpush.bf16.msra.mxu0 0
      %2902 = vmatpush.bf16.msra.mxu0 0
      %2903 = vmatpush.bf16.msra.mxu0 0
      %2904 = vmatpush.bf16.msra.mxu0 0
      %2905 = vmatpush.bf16.msra.mxu0 0
      %2906 = vmatpush.bf16.msra.mxu0 %v2897
      %2907 = vmatmul.bf16.gmra.mxu0 %v2849
      %v2908 = vpop.f32.mrf.mxu0
      %v2909 = vadd.f32 0.0, %v2908
      %v2910 = vpop.f32.mrf.mxu0
      %v2911 = vadd.f32 0.0, %v2910
      %2912 = vmatmul.bf16.gmra.mxu0 %v2852
      %v2913 = vpop.f32.mrf.mxu0
      %v2914 = vadd.f32 0.0, %v2913
      %v2915 = vpop.f32.mrf.mxu0
      %v2916 = vadd.f32 0.0, %v2915
      %2917 = vmatmul.bf16.gmra.mxu0 %v2855
      %v2918 = vpop.f32.mrf.mxu0
      %v2919 = vadd.f32 0.0, %v2918
      %v2920 = vpop.f32.mrf.mxu0
      %v2921 = vadd.f32 0.0, %v2920
      %2922 = vmatmul.bf16.gmra.mxu0 %v2858
      %v2923 = vpop.f32.mrf.mxu0
      %v2924 = vadd.f32 0.0, %v2923
      %v2925 = vpop.f32.mrf.mxu0
      %v2926 = vadd.f32 0.0, %v2925
      %2927 = vmatmul.bf16.gmra.mxu0 %v2861
      %v2928 = vpop.f32.mrf.mxu0
      %v2929 = vadd.f32 0.0, %v2928
      %v2930 = vpop.f32.mrf.mxu0
      %v2931 = vadd.f32 0.0, %v2930
      %2932 = vmatmul.bf16.gmra.mxu0 %v2864
      %v2933 = vpop.f32.mrf.mxu0
      %v2934 = vadd.f32 0.0, %v2933
      %v2935 = vpop.f32.mrf.mxu0
      %v2936 = vadd.f32 0.0, %v2935
      %2937 = vmatmul.bf16.gmra.mxu0 %v2867
      %v2938 = vpop.f32.mrf.mxu0
      %v2939 = vadd.f32 0.0, %v2938
      %v2940 = vpop.f32.mrf.mxu0
      %v2941 = vadd.f32 0.0, %v2940
      %2942 = vmatmul.bf16.gmra.mxu0 %v2870
      %v2943 = vpop.f32.mrf.mxu0
      %v2944 = vadd.f32 0.0, %v2943
      %v2945 = vpop.f32.mrf.mxu0
      %v2946 = vadd.f32 0.0, %v2945
      %2947 = vmatmul.bf16.gmra.mxu0 %v2873
      %v2948 = vpop.f32.mrf.mxu0
      %v2949 = vadd.f32 0.0, %v2948
      %v2950 = vpop.f32.mrf.mxu0
      %v2951 = vadd.f32 0.0, %v2950
      %2952 = vmatmul.bf16.gmra.mxu0 %v2876
      %v2953 = vpop.f32.mrf.mxu0
      %v2954 = vadd.f32 0.0, %v2953
      %v2955 = vpop.f32.mrf.mxu0
      %v2956 = vadd.f32 0.0, %v2955
      %2957 = vmatmul.bf16.gmra.mxu0 %v2879
      %v2958 = vpop.f32.mrf.mxu0
      %v2959 = vadd.f32 0.0, %v2958
      %v2960 = vpop.f32.mrf.mxu0
      %v2961 = vadd.f32 0.0, %v2960
      %2962 = vmatmul.bf16.gmra.mxu0 %v2882
      %v2963 = vpop.f32.mrf.mxu0
      %v2964 = vadd.f32 0.0, %v2963
      %v2965 = vpop.f32.mrf.mxu0
      %v2966 = vadd.f32 0.0, %v2965
      %2967 = vmatmul.bf16.gmra.mxu0 %v2885
      %v2968 = vpop.f32.mrf.mxu0
      %v2969 = vadd.f32 0.0, %v2968
      %v2970 = vpop.f32.mrf.mxu0
      %v2971 = vadd.f32 0.0, %v2970
      %2972 = vmatmul.bf16.gmra.mxu0 %v2888
      %v2973 = vpop.f32.mrf.mxu0
      %v2974 = vadd.f32 0.0, %v2973
      %v2975 = vpop.f32.mrf.mxu0
      %v2976 = vadd.f32 0.0, %v2975
      %2977 = vmatmul.bf16.gmra.mxu0 %v2891
      %v2978 = vpop.f32.mrf.mxu0
      %v2979 = vadd.f32 0.0, %v2978
      %v2980 = vpop.f32.mrf.mxu0
      %v2981 = vadd.f32 0.0, %v2980
      %2982 = vmatmul.bf16.gmra.mxu0 %v2894
      %v2983 = vpop.f32.mrf.mxu0
      %v2984 = vadd.f32 0.0, %v2983
      %v2985 = vpop.f32.mrf.mxu0
      %v2986 = vadd.f32 0.0, %v2985
      %2987 = vdwg.mxu0
      %v2988 = vmul.f32 %v2909, 0.5
      %v2989 = vmul.f32 %v2911, 0.5
      %v2990 = vmul.f32 %v2914, 0.5
      %v2991 = vmul.f32 %v2916, 0.5
      %v2992 = vmul.f32 %v2919, 0.5
      %v2993 = vmul.f32 %v2921, 0.5
      %v2994 = vmul.f32 %v2924, 0.5
      %v2995 = vmul.f32 %v2926, 0.5
      %v2996 = vmul.f32 %v2929, 0.5
      %v2997 = vmul.f32 %v2931, 0.5
      %v2998 = vmul.f32 %v2934, 0.5
      %v2999 = vmul.f32 %v2936, 0.5
      %v3000 = vmul.f32 %v2939, 0.5
      %v3001 = vmul.f32 %v2941, 0.5
      %v3002 = vmul.f32 %v2944, 0.5
      %v3003 = vmul.f32 %v2946, 0.5
      %v3004 = vmul.f32 %v2949, 0.5
      %v3005 = vmul.f32 %v2951, 0.5
      %v3006 = vmul.f32 %v2954, 0.5
      %v3007 = vmul.f32 %v2956, 0.5
      %v3008 = vmul.f32 %v2959, 0.5
      %v3009 = vmul.f32 %v2961, 0.5
      %v3010 = vmul.f32 %v2964, 0.5
      %v3011 = vmul.f32 %v2966, 0.5
      %v3012 = vmul.f32 %v2969, 0.5
      %v3013 = vmul.f32 %v2971, 0.5
      %v3014 = vmul.f32 %v2974, 0.5
      %v3015 = vmul.f32 %v2976, 0.5
      %v3016 = vmul.f32 %v2979, 0.5
      %v3017 = vmul.f32 %v2981, 0.5
      %v3018 = vmul.f32 %v2984, 0.5
      %v3019 = vmul.f32 %v2986, 0.5
      %v3020 = vmax.f32 %v2988, %v2992
      %v3021 = vmax.f32 %v2989, %v2993
      %v3022 = vmax.f32 %v2990, %v2994
      %v3023 = vmax.f32 %v2991, %v2995
      %v3024 = vmax.f32 %v3020, %v2996
      %v3025 = vmax.f32 %v3021, %v2997
      %v3026 = vmax.f32 %v3022, %v2998
      %v3027 = vmax.f32 %v3023, %v2999
      %v3028 = vmax.f32 %v3024, %v3000
      %v3029 = vmax.f32 %v3025, %v3001
      %v3030 = vmax.f32 %v3026, %v3002
      %v3031 = vmax.f32 %v3027, %v3003
      %v3032 = vmax.f32 %v3028, %v3004
      %v3033 = vmax.f32 %v3029, %v3005
      %v3034 = vmax.f32 %v3030, %v3006
      %v3035 = vmax.f32 %v3031, %v3007
      %v3036 = vmax.f32 %v3032, %v3008
      %v3037 = vmax.f32 %v3033, %v3009
      %v3038 = vmax.f32 %v3034, %v3010
      %v3039 = vmax.f32 %v3035, %v3011
      %v3040 = vmax.f32 %v3036, %v3012
      %v3041 = vmax.f32 %v3037, %v3013
      %v3042 = vmax.f32 %v3038, %v3014
      %v3043 = vmax.f32 %v3039, %v3015
      %v3044 = vmax.f32 %v3040, %v3016
      %v3045 = vmax.f32 %v3041, %v3017
      %v3046 = vmax.f32 %v3042, %v3018
      %v3047 = vmax.f32 %v3043, %v3019
      %v3048 = vmax.f32 %v3044, %v3045
      %v3049 = vmax.f32 %v3046, %v3047
      %v3050 = vmax.f32 %v3048, %v3049
      %v3051 = vrot.slane %v3050, 4
      %v3052 = vmax.f32 %v3050, %v3051
      %v3053 = vrot.slane %v3052, 2
      %v3054 = vmax.f32 %v3052, %v3053
      %v3055 = vrot.slane %v3054, 1
      %v3056 = vmax.f32 %v3054, %v3055
      %v3057 = vsub.f32 %v2988, %v3056
      %v3058 = vsub.f32 %v2989, %v3056
      %v3059 = vsub.f32 %v2990, %v3056
      %v3060 = vsub.f32 %v2991, %v3056
      %v3061 = vsub.f32 %v2992, %v3056
      %v3062 = vsub.f32 %v2993, %v3056
      %v3063 = vsub.f32 %v2994, %v3056
      %v3064 = vsub.f32 %v2995, %v3056
      %v3065 = vsub.f32 %v2996, %v3056
      %v3066 = vsub.f32 %v2997, %v3056
      %v3067 = vsub.f32 %v2998, %v3056
      %v3068 = vsub.f32 %v2999, %v3056
      %v3069 = vsub.f32 %v3000, %v3056
      %v3070 = vsub.f32 %v3001, %v3056
      %v3071 = vsub.f32 %v3002, %v3056
      %v3072 = vsub.f32 %v3003, %v3056
      %v3073 = vsub.f32 %v3004, %v3056
      %v3074 = vsub.f32 %v3005, %v3056
      %v3075 = vsub.f32 %v3006, %v3056
      %v3076 = vsub.f32 %v3007, %v3056
      %v3077 = vsub.f32 %v3008, %v3056
      %v3078 = vsub.f32 %v3009, %v3056
      %v3079 = vsub.f32 %v3010, %v3056
      %v3080 = vsub.f32 %v3011, %v3056
      %v3081 = vsub.f32 %v3012, %v3056
      %v3082 = vsub.f32 %v3013, %v3056
      %v3083 = vsub.f32 %v3014, %v3056
      %v3084 = vsub.f32 %v3015, %v3056
      %v3085 = vsub.f32 %v3016, %v3056
      %v3086 = vsub.f32 %v3017, %v3056
      %v3087 = vsub.f32 %v3018, %v3056
      %v3088 = vsub.f32 %v3019, %v3056
      %v3089 = vmul.f32 %v3057, 1.442695
      %v3090 = vpow.pop %v3089
      %v3091 = vmul.f32 %v3058, 1.442695
      %v3092 = vpow.pop %v3091
      %v3093 = vmul.f32 %v3059, 1.442695
      %v3094 = vpow.pop %v3093
      %v3095 = vmul.f32 %v3060, 1.442695
      %v3096 = vpow.pop %v3095
      %v3097 = vmul.f32 %v3061, 1.442695
      %v3098 = vpow.pop %v3097
      %v3099 = vmul.f32 %v3062, 1.442695
      %v3100 = vpow.pop %v3099
      %v3101 = vmul.f32 %v3063, 1.442695
      %v3102 = vpow.pop %v3101
      %v3103 = vmul.f32 %v3064, 1.442695
      %v3104 = vpow.pop %v3103
      %v3105 = vmul.f32 %v3065, 1.442695
      %v3106 = vpow.pop %v3105
      %v3107 = vmul.f32 %v3066, 1.442695
      %v3108 = vpow.pop %v3107
      %v3109 = vmul.f32 %v3067, 1.442695
      %v3110 = vpow.pop %v3109
      %v3111 = vmul.f32 %v3068, 1.442695
      %v3112 = vpow.pop %v3111
      %v3113 = vmul.f32 %v3069, 1.442695
      %v3114 = vpow.pop %v3113
      %v3115 = vmul.f32 %v3070, 1.442695
      %v3116 = vpow.pop %v3115
      %v3117 = vmul.f32 %v3071, 1.442695
      %v3118 = vpow.pop %v3117
      %v3119 = vmul.f32 %v3072, 1.442695
      %v3120 = vpow.pop %v3119
      %v3121 = vmul.f32 %v3073, 1.442695
      %v3122 = vpow.pop %v3121
      %v3123 = vmul.f32 %v3074, 1.442695
      %v3124 = vpow.pop %v3123
      %v3125 = vmul.f32 %v3075, 1.442695
      %v3126 = vpow.pop %v3125
      %v3127 = vmul.f32 %v3076, 1.442695
      %v3128 = vpow.pop %v3127
      %v3129 = vmul.f32 %v3077, 1.442695
      %v3130 = vpow.pop %v3129
      %v3131 = vmul.f32 %v3078, 1.442695
      %v3132 = vpow.pop %v3131
      %v3133 = vmul.f32 %v3079, 1.442695
      %v3134 = vpow.pop %v3133
      %v3135 = vmul.f32 %v3080, 1.442695
      %v3136 = vpow.pop %v3135
      %v3137 = vmul.f32 %v3081, 1.442695
      %v3138 = vpow.pop %v3137
      %v3139 = vmul.f32 %v3082, 1.442695
      %v3140 = vpow.pop %v3139
      %v3141 = vmul.f32 %v3083, 1.442695
      %v3142 = vpow.pop %v3141
      %v3143 = vmul.f32 %v3084, 1.442695
      %v3144 = vpow.pop %v3143
      %v3145 = vmul.f32 %v3085, 1.442695
      %v3146 = vpow.pop %v3145
      %v3147 = vmul.f32 %v3086, 1.442695
      %v3148 = vpow.pop %v3147
      %v3149 = vmul.f32 %v3087, 1.442695
      %v3150 = vpow.pop %v3149
      %v3151 = vmul.f32 %v3088, 1.442695
      %v3152 = vpow.pop %v3151
      %v3153 = vadd.f32 %v3090, %v3092
      %v3154 = vadd.f32 %v3153, %v3094
      %v3155 = vadd.f32 %v3154, %v3096
      %v3156 = vadd.f32 %v3155, %v3098
      %v3157 = vadd.f32 %v3156, %v3100
      %v3158 = vadd.f32 %v3157, %v3102
      %v3159 = vadd.f32 %v3158, %v3104
      %v3160 = vadd.f32 %v3159, %v3106
      %v3161 = vadd.f32 %v3160, %v3108
      %v3162 = vadd.f32 %v3161, %v3110
      %v3163 = vadd.f32 %v3162, %v3112
      %v3164 = vadd.f32 %v3163, %v3114
      %v3165 = vadd.f32 %v3164, %v3116
      %v3166 = vadd.f32 %v3165, %v3118
      %v3167 = vadd.f32 %v3166, %v3120
      %v3168 = vadd.f32 %v3167, %v3122
      %v3169 = vadd.f32 %v3168, %v3124
      %v3170 = vadd.f32 %v3169, %v3126
      %v3171 = vadd.f32 %v3170, %v3128
      %v3172 = vadd.f32 %v3171, %v3130
      %v3173 = vadd.f32 %v3172, %v3132
      %v3174 = vadd.f32 %v3173, %v3134
      %v3175 = vadd.f32 %v3174, %v3136
      %v3176 = vadd.f32 %v3175, %v3138
      %v3177 = vadd.f32 %v3176, %v3140
      %v3178 = vadd.f32 %v3177, %v3142
      %v3179 = vadd.f32 %v3178, %v3144
      %v3180 = vadd.f32 %v3179, %v3146
      %v3181 = vadd.f32 %v3180, %v3148
      %v3182 = vadd.f32 %v3181, %v3150
      %v3183 = vadd.f32 %v3182, %v3152
      %v3184 = vrot.slane %v3183, 4
      %v3185 = vadd.f32 %v3183, %v3184
      %v3186 = vrot.slane %v3185, 2
      %v3187 = vadd.f32 %v3185, %v3186
      %v3188 = vrot.slane %v3187, 1
      %v3189 = vadd.f32 %v3187, %v3188
      %v3190 = vrcp.pop %v3189
      %v3191 = vmul.f32 %v3090, %v3190
      %v3192 = vmul.f32 %v3092, %v3190
      %v3193 = vmul.f32 %v3094, %v3190
      %v3194 = vmul.f32 %v3096, %v3190
      %v3195 = vmul.f32 %v3098, %v3190
      %v3196 = vmul.f32 %v3100, %v3190
      %v3197 = vmul.f32 %v3102, %v3190
      %v3198 = vmul.f32 %v3104, %v3190
      %v3199 = vmul.f32 %v3106, %v3190
      %v3200 = vmul.f32 %v3108, %v3190
      %v3201 = vmul.f32 %v3110, %v3190
      %v3202 = vmul.f32 %v3112, %v3190
      %v3203 = vmul.f32 %v3114, %v3190
      %v3204 = vmul.f32 %v3116, %v3190
      %v3205 = vmul.f32 %v3118, %v3190
      %v3206 = vmul.f32 %v3120, %v3190
      %v3207 = vmul.f32 %v3122, %v3190
      %v3208 = vmul.f32 %v3124, %v3190
      %v3209 = vmul.f32 %v3126, %v3190
      %v3210 = vmul.f32 %v3128, %v3190
      %v3211 = vmul.f32 %v3130, %v3190
      %v3212 = vmul.f32 %v3132, %v3190
      %v3213 = vmul.f32 %v3134, %v3190
      %v3214 = vmul.f32 %v3136, %v3190
      %v3215 = vmul.f32 %v3138, %v3190
      %v3216 = vmul.f32 %v3140, %v3190
      %v3217 = vmul.f32 %v3142, %v3190
      %v3218 = vmul.f32 %v3144, %v3190
      %v3219 = vmul.f32 %v3146, %v3190
      %v3220 = vmul.f32 %v3148, %v3190
      %v3221 = vmul.f32 %v3150, %v3190
      %v3222 = vmul.f32 %v3152, %v3190
      %v3223 = vpack.c.bf16 %v3192, %v3191
      %v3224 = vpack.c.bf16 %v3194, %v3193
      %v3225 = vpack.c.bf16 %v3196, %v3195
      %v3226 = vpack.c.bf16 %v3198, %v3197
      %v3227 = vpack.c.bf16 %v3200, %v3199
      %v3228 = vpack.c.bf16 %v3202, %v3201
      %v3229 = vpack.c.bf16 %v3204, %v3203
      %v3230 = vpack.c.bf16 %v3206, %v3205
      %v3231 = vpack.c.bf16 %v3208, %v3207
      %v3232 = vpack.c.bf16 %v3210, %v3209
      %v3233 = vpack.c.bf16 %v3212, %v3211
      %v3234 = vpack.c.bf16 %v3214, %v3213
      %v3235 = vpack.c.bf16 %v3216, %v3215
      %v3236 = vpack.c.bf16 %v3218, %v3217
      %v3237 = vpack.c.bf16 %v3220, %v3219
      %v3238 = vpack.c.bf16 %v3222, %v3221
      %3239 = vmatpush.bf16.msra.mxu0 %v3230
      %3240 = vmatpush.bf16.msra.mxu0 %v3229
      %3241 = vmatpush.bf16.msra.mxu0 %v3228
      %3242 = vmatpush.bf16.msra.mxu0 %v3227
      %3243 = vmatpush.bf16.msra.mxu0 %v3226
      %3244 = vmatpush.bf16.msra.mxu0 %v3225
      %3245 = vmatpush.bf16.msra.mxu0 %v3224
      %3246 = vmatpush.bf16.msra.mxu0 %v3223
      %3247 = vmatmul.bf16.gmra.mxu0 %v2453
      %v3248 = vpop.f32.mrf.mxu0
      %v3249 = vadd.f32 0.0, %v3248
      %v3250 = vpop.f32.mrf.mxu0
      %3251 = vdwg.mxu0
      %3252 = vmatpush.bf16.msra.mxu0 %v3238
      %3253 = vmatpush.bf16.msra.mxu0 %v3237
      %3254 = vmatpush.bf16.msra.mxu0 %v3236
      %3255 = vmatpush.bf16.msra.mxu0 %v3235
      %3256 = vmatpush.bf16.msra.mxu0 %v3234
      %3257 = vmatpush.bf16.msra.mxu0 %v3233
      %3258 = vmatpush.bf16.msra.mxu0 %v3232
      %3259 = vmatpush.bf16.msra.mxu0 %v3231
      %3260 = vmatmul.bf16.gmra.mxu0 %v2454
      %v3261 = vpop.f32.mrf.mxu0
      %v3262 = vadd.f32 %v3249, %v3261
      %v3263 = vpop.f32.mrf.mxu0
      %3264 = vdwg.mxu0
      %3265 = vmatpush.bf16.msra.mxu0 %v2839
      %3266 = vmatpush.bf16.msra.mxu0 %v2838
      %3267 = vmatpush.bf16.msra.mxu0 %v2837
      %3268 = vmatpush.bf16.msra.mxu0 %v2836
      %3269 = vmatpush.bf16.msra.mxu0 %v2835
      %3270 = vmatpush.bf16.msra.mxu0 %v2834
      %3271 = vmatpush.bf16.msra.mxu0 %v2833
      %3272 = vmatpush.bf16.msra.mxu0 %v2832
      %3273 = vmatmul.bf16.gmra.mxu0 %v2256
      %v3274 = vpop.f32.mrf.mxu0
      %v3275 = vadd.f32 %v3262, %v3274
      %v3276 = vpop.f32.mrf.mxu0
      %3277 = vdwg.mxu0
      %3278 = vmatpush.bf16.msra.mxu0 %v2847
      %3279 = vmatpush.bf16.msra.mxu0 %v2846
      %3280 = vmatpush.bf16.msra.mxu0 %v2845
      %3281 = vmatpush.bf16.msra.mxu0 %v2844
      %3282 = vmatpush.bf16.msra.mxu0 %v2843
      %3283 = vmatpush.bf16.msra.mxu0 %v2842
      %3284 = vmatpush.bf16.msra.mxu0 %v2841
      %3285 = vmatpush.bf16.msra.mxu0 %v2840
      %3286 = vmatmul.bf16.gmra.mxu0 %v2257
      %v3287 = vpop.f32.mrf.mxu0
      %v3288 = vadd.f32 %v3275, %v3287
      %v3289 = vpop.f32.mrf.mxu0
      %3290 = vdwg.mxu0
      %v3292 = vunpack.c.h.b16 %v2175
      %v3293 = vpack.c.b16 %v3292, %v3292
      %v3295 = vsel %vm2504, %v3293, 0
      %3297 = vmatpush.bf16.msra.mxu0 0
      %3298 = vmatpush.bf16.msra.mxu0 0
      %3299 = vmatpush.bf16.msra.mxu0 0
      %3300 = vmatpush.bf16.msra.mxu0 0
      %3301 = vmatpush.bf16.msra.mxu0 0
      %3302 = vmatpush.bf16.msra.mxu0 0
      %3303 = vmatpush.bf16.msra.mxu0 0
      %3304 = vmatpush.bf16.msra.mxu0 %v3295
      %3305 = vmatmul.bf16.gmra.mxu0 %v2457
      %v3306 = vpop.f32.mrf.mxu0
      %v3307 = vadd.f32 0.0, %v3306
      %v3308 = vpop.f32.mrf.mxu0
      %v3309 = vadd.f32 0.0, %v3308
      %3310 = vmatmul.bf16.gmra.mxu0 %v2460
      %v3311 = vpop.f32.mrf.mxu0
      %v3312 = vadd.f32 0.0, %v3311
      %v3313 = vpop.f32.mrf.mxu0
      %v3314 = vadd.f32 0.0, %v3313
      %3315 = vmatmul.bf16.gmra.mxu0 %v2463
      %v3316 = vpop.f32.mrf.mxu0
      %v3317 = vadd.f32 0.0, %v3316
      %v3318 = vpop.f32.mrf.mxu0
      %v3319 = vadd.f32 0.0, %v3318
      %3320 = vmatmul.bf16.gmra.mxu0 %v2466
      %v3321 = vpop.f32.mrf.mxu0
      %v3322 = vadd.f32 0.0, %v3321
      %v3323 = vpop.f32.mrf.mxu0
      %v3324 = vadd.f32 0.0, %v3323
      %3325 = vmatmul.bf16.gmra.mxu0 %v2469
      %v3326 = vpop.f32.mrf.mxu0
      %v3327 = vadd.f32 0.0, %v3326
      %v3328 = vpop.f32.mrf.mxu0
      %v3329 = vadd.f32 0.0, %v3328
      %3330 = vmatmul.bf16.gmra.mxu0 %v2472
      %v3331 = vpop.f32.mrf.mxu0
      %v3332 = vadd.f32 0.0, %v3331
      %v3333 = vpop.f32.mrf.mxu0
      %v3334 = vadd.f32 0.0, %v3333
      %3335 = vmatmul.bf16.gmra.mxu0 %v2475
      %v3336 = vpop.f32.mrf.mxu0
      %v3337 = vadd.f32 0.0, %v3336
      %v3338 = vpop.f32.mrf.mxu0
      %v3339 = vadd.f32 0.0, %v3338
      %3340 = vmatmul.bf16.gmra.mxu0 %v2478
      %v3341 = vpop.f32.mrf.mxu0
      %v3342 = vadd.f32 0.0, %v3341
      %v3343 = vpop.f32.mrf.mxu0
      %v3344 = vadd.f32 0.0, %v3343
      %3345 = vmatmul.bf16.gmra.mxu0 %v2481
      %v3346 = vpop.f32.mrf.mxu0
      %v3347 = vadd.f32 0.0, %v3346
      %v3348 = vpop.f32.mrf.mxu0
      %v3349 = vadd.f32 0.0, %v3348
      %3350 = vmatmul.bf16.gmra.mxu0 %v2484
      %v3351 = vpop.f32.mrf.mxu0
      %v3352 = vadd.f32 0.0, %v3351
      %v3353 = vpop.f32.mrf.mxu0
      %v3354 = vadd.f32 0.0, %v3353
      %3355 = vmatmul.bf16.gmra.mxu0 %v2487
      %v3356 = vpop.f32.mrf.mxu0
      %v3357 = vadd.f32 0.0, %v3356
      %v3358 = vpop.f32.mrf.mxu0
      %v3359 = vadd.f32 0.0, %v3358
      %3360 = vmatmul.bf16.gmra.mxu0 %v2490
      %v3361 = vpop.f32.mrf.mxu0
      %v3362 = vadd.f32 0.0, %v3361
      %v3363 = vpop.f32.mrf.mxu0
      %v3364 = vadd.f32 0.0, %v3363
      %3365 = vmatmul.bf16.gmra.mxu0 %v2493
      %v3366 = vpop.f32.mrf.mxu0
      %v3367 = vadd.f32 0.0, %v3366
      %v3368 = vpop.f32.mrf.mxu0
      %v3369 = vadd.f32 0.0, %v3368
      %3370 = vmatmul.bf16.gmra.mxu0 %v2496
      %v3371 = vpop.f32.mrf.mxu0
      %v3372 = vadd.f32 0.0, %v3371
      %v3373 = vpop.f32.mrf.mxu0
      %v3374 = vadd.f32 0.0, %v3373
      %3375 = vmatmul.bf16.gmra.mxu0 %v2499
      %v3376 = vpop.f32.mrf.mxu0
      %v3377 = vadd.f32 0.0, %v3376
      %v3378 = vpop.f32.mrf.mxu0
      %v3379 = vadd.f32 0.0, %v3378
      %3380 = vmatmul.bf16.gmra.mxu0 %v2502
      %v3381 = vpop.f32.mrf.mxu0
      %v3382 = vadd.f32 0.0, %v3381
      %v3383 = vpop.f32.mrf.mxu0
      %v3384 = vadd.f32 0.0, %v3383
      %3385 = vdwg.mxu0
      %v3386 = vmul.f32 %v3307, 0.5
      %v3387 = vmul.f32 %v3309, 0.5
      %v3388 = vmul.f32 %v3312, 0.5
      %v3389 = vmul.f32 %v3314, 0.5
      %v3390 = vmul.f32 %v3317, 0.5
      %v3391 = vmul.f32 %v3319, 0.5
      %v3392 = vmul.f32 %v3322, 0.5
      %v3393 = vmul.f32 %v3324, 0.5
      %v3394 = vmul.f32 %v3327, 0.5
      %v3395 = vmul.f32 %v3329, 0.5
      %v3396 = vmul.f32 %v3332, 0.5
      %v3397 = vmul.f32 %v3334, 0.5
      %v3398 = vmul.f32 %v3337, 0.5
      %v3399 = vmul.f32 %v3339, 0.5
      %v3400 = vmul.f32 %v3342, 0.5
      %v3401 = vmul.f32 %v3344, 0.5
      %v3402 = vmul.f32 %v3347, 0.5
      %v3403 = vmul.f32 %v3349, 0.5
      %v3404 = vmul.f32 %v3352, 0.5
      %v3405 = vmul.f32 %v3354, 0.5
      %v3406 = vmul.f32 %v3357, 0.5
      %v3407 = vmul.f32 %v3359, 0.5
      %v3408 = vmul.f32 %v3362, 0.5
      %v3409 = vmul.f32 %v3364, 0.5
      %v3410 = vmul.f32 %v3367, 0.5
      %v3411 = vmul.f32 %v3369, 0.5
      %v3412 = vmul.f32 %v3372, 0.5
      %v3413 = vmul.f32 %v3374, 0.5
      %v3414 = vmul.f32 %v3377, 0.5
      %v3415 = vmul.f32 %v3379, 0.5
      %v3416 = vmul.f32 %v3382, 0.5
      %v3417 = vmul.f32 %v3384, 0.5
      %v3418 = vmax.f32 %v3386, %v3390
      %v3419 = vmax.f32 %v3387, %v3391
      %v3420 = vmax.f32 %v3388, %v3392
      %v3421 = vmax.f32 %v3389, %v3393
      %v3422 = vmax.f32 %v3418, %v3394
      %v3423 = vmax.f32 %v3419, %v3395
      %v3424 = vmax.f32 %v3420, %v3396
      %v3425 = vmax.f32 %v3421, %v3397
      %v3426 = vmax.f32 %v3422, %v3398
      %v3427 = vmax.f32 %v3423, %v3399
      %v3428 = vmax.f32 %v3424, %v3400
      %v3429 = vmax.f32 %v3425, %v3401
      %v3430 = vmax.f32 %v3426, %v3402
      %v3431 = vmax.f32 %v3427, %v3403
      %v3432 = vmax.f32 %v3428, %v3404
      %v3433 = vmax.f32 %v3429, %v3405
      %v3434 = vmax.f32 %v3430, %v3406
      %v3435 = vmax.f32 %v3431, %v3407
      %v3436 = vmax.f32 %v3432, %v3408
      %v3437 = vmax.f32 %v3433, %v3409
      %v3438 = vmax.f32 %v3434, %v3410
      %v3439 = vmax.f32 %v3435, %v3411
      %v3440 = vmax.f32 %v3436, %v3412
      %v3441 = vmax.f32 %v3437, %v3413
      %v3442 = vmax.f32 %v3438, %v3414
      %v3443 = vmax.f32 %v3439, %v3415
      %v3444 = vmax.f32 %v3440, %v3416
      %v3445 = vmax.f32 %v3441, %v3417
      %v3446 = vmax.f32 %v3442, %v3443
      %v3447 = vmax.f32 %v3444, %v3445
      %v3448 = vmax.f32 %v3446, %v3447
      %v3449 = vrot.slane %v3448, 4
      %v3450 = vmax.f32 %v3448, %v3449
      %v3451 = vrot.slane %v3450, 2
      %v3452 = vmax.f32 %v3450, %v3451
      %v3453 = vrot.slane %v3452, 1
      %v3454 = vmax.f32 %v3452, %v3453
      %v3455 = vsub.f32 %v3386, %v3454
      %v3456 = vsub.f32 %v3387, %v3454
      %v3457 = vsub.f32 %v3388, %v3454
      %v3458 = vsub.f32 %v3389, %v3454
      %v3459 = vsub.f32 %v3390, %v3454
      %v3460 = vsub.f32 %v3391, %v3454
      %v3461 = vsub.f32 %v3392, %v3454
      %v3462 = vsub.f32 %v3393, %v3454
      %v3463 = vsub.f32 %v3394, %v3454
      %v3464 = vsub.f32 %v3395, %v3454
      %v3465 = vsub.f32 %v3396, %v3454
      %v3466 = vsub.f32 %v3397, %v3454
      %v3467 = vsub.f32 %v3398, %v3454
      %v3468 = vsub.f32 %v3399, %v3454
      %v3469 = vsub.f32 %v3400, %v3454
      %v3470 = vsub.f32 %v3401, %v3454
      %v3471 = vsub.f32 %v3402, %v3454
      %v3472 = vsub.f32 %v3403, %v3454
      %v3473 = vsub.f32 %v3404, %v3454
      %v3474 = vsub.f32 %v3405, %v3454
      %v3475 = vsub.f32 %v3406, %v3454
      %v3476 = vsub.f32 %v3407, %v3454
      %v3477 = vsub.f32 %v3408, %v3454
      %v3478 = vsub.f32 %v3409, %v3454
      %v3479 = vsub.f32 %v3410, %v3454
      %v3480 = vsub.f32 %v3411, %v3454
      %v3481 = vsub.f32 %v3412, %v3454
      %v3482 = vsub.f32 %v3413, %v3454
      %v3483 = vsub.f32 %v3414, %v3454
      %v3484 = vsub.f32 %v3415, %v3454
      %v3485 = vsub.f32 %v3416, %v3454
      %v3486 = vsub.f32 %v3417, %v3454
      %v3487 = vmul.f32 %v3455, 1.442695
      %v3488 = vpow.pop %v3487
      %v3489 = vmul.f32 %v3456, 1.442695
      %v3490 = vpow.pop %v3489
      %v3491 = vmul.f32 %v3457, 1.442695
      %v3492 = vpow.pop %v3491
      %v3493 = vmul.f32 %v3458, 1.442695
      %v3494 = vpow.pop %v3493
      %v3495 = vmul.f32 %v3459, 1.442695
      %v3496 = vpow.pop %v3495
      %v3497 = vmul.f32 %v3460, 1.442695
      %v3498 = vpow.pop %v3497
      %v3499 = vmul.f32 %v3461, 1.442695
      %v3500 = vpow.pop %v3499
      %v3501 = vmul.f32 %v3462, 1.442695
      %v3502 = vpow.pop %v3501
      %v3503 = vmul.f32 %v3463, 1.442695
      %v3504 = vpow.pop %v3503
      %v3505 = vmul.f32 %v3464, 1.442695
      %v3506 = vpow.pop %v3505
      %v3507 = vmul.f32 %v3465, 1.442695
      %v3508 = vpow.pop %v3507
      %v3509 = vmul.f32 %v3466, 1.442695
      %v3510 = vpow.pop %v3509
      %v3511 = vmul.f32 %v3467, 1.442695
      %v3512 = vpow.pop %v3511
      %v3513 = vmul.f32 %v3468, 1.442695
      %v3514 = vpow.pop %v3513
      %v3515 = vmul.f32 %v3469, 1.442695
      %v3516 = vpow.pop %v3515
      %v3517 = vmul.f32 %v3470, 1.442695
      %v3518 = vpow.pop %v3517
      %v3519 = vmul.f32 %v3471, 1.442695
      %v3520 = vpow.pop %v3519
      %v3521 = vmul.f32 %v3472, 1.442695
      %v3522 = vpow.pop %v3521
      %v3523 = vmul.f32 %v3473, 1.442695
      %v3524 = vpow.pop %v3523
      %v3525 = vmul.f32 %v3474, 1.442695
      %v3526 = vpow.pop %v3525
      %v3527 = vmul.f32 %v3475, 1.442695
      %v3528 = vpow.pop %v3527
      %v3529 = vmul.f32 %v3476, 1.442695
      %v3530 = vpow.pop %v3529
      %v3531 = vmul.f32 %v3477, 1.442695
      %v3532 = vpow.pop %v3531
      %v3533 = vmul.f32 %v3478, 1.442695
      %v3534 = vpow.pop %v3533
      %v3535 = vmul.f32 %v3479, 1.442695
      %v3536 = vpow.pop %v3535
      %v3537 = vmul.f32 %v3480, 1.442695
      %v3538 = vpow.pop %v3537
      %v3539 = vmul.f32 %v3481, 1.442695
      %v3540 = vpow.pop %v3539
      %v3541 = vmul.f32 %v3482, 1.442695
      %v3542 = vpow.pop %v3541
      %v3543 = vmul.f32 %v3483, 1.442695
      %v3544 = vpow.pop %v3543
      %v3545 = vmul.f32 %v3484, 1.442695
      %v3546 = vpow.pop %v3545
      %v3547 = vmul.f32 %v3485, 1.442695
      %v3548 = vpow.pop %v3547
      %v3549 = vmul.f32 %v3486, 1.442695
      %v3550 = vpow.pop %v3549
      %v3551 = vadd.f32 %v3488, %v3490
      %v3552 = vadd.f32 %v3551, %v3492
      %v3553 = vadd.f32 %v3552, %v3494
      %v3554 = vadd.f32 %v3553, %v3496
      %v3555 = vadd.f32 %v3554, %v3498
      %v3556 = vadd.f32 %v3555, %v3500
      %v3557 = vadd.f32 %v3556, %v3502
      %v3558 = vadd.f32 %v3557, %v3504
      %v3559 = vadd.f32 %v3558, %v3506
      %v3560 = vadd.f32 %v3559, %v3508
      %v3561 = vadd.f32 %v3560, %v3510
      %v3562 = vadd.f32 %v3561, %v3512
      %v3563 = vadd.f32 %v3562, %v3514
      %v3564 = vadd.f32 %v3563, %v3516
      %v3565 = vadd.f32 %v3564, %v3518
      %v3566 = vadd.f32 %v3565, %v3520
      %v3567 = vadd.f32 %v3566, %v3522
      %v3568 = vadd.f32 %v3567, %v3524
      %v3569 = vadd.f32 %v3568, %v3526
      %v3570 = vadd.f32 %v3569, %v3528
      %v3571 = vadd.f32 %v3570, %v3530
      %v3572 = vadd.f32 %v3571, %v3532
      %v3573 = vadd.f32 %v3572, %v3534
      %v3574 = vadd.f32 %v3573, %v3536
      %v3575 = vadd.f32 %v3574, %v3538
      %v3576 = vadd.f32 %v3575, %v3540
      %v3577 = vadd.f32 %v3576, %v3542
      %v3578 = vadd.f32 %v3577, %v3544
      %v3579 = vadd.f32 %v3578, %v3546
      %v3580 = vadd.f32 %v3579, %v3548
      %v3581 = vadd.f32 %v3580, %v3550
      %v3582 = vrot.slane %v3581, 4
      %v3583 = vadd.f32 %v3581, %v3582
      %v3584 = vrot.slane %v3583, 2
      %v3585 = vadd.f32 %v3583, %v3584
      %v3586 = vrot.slane %v3585, 1
      %v3587 = vadd.f32 %v3585, %v3586
      %v3588 = vrcp.pop %v3587
      %v3589 = vmul.f32 %v3488, %v3588
      %v3590 = vmul.f32 %v3490, %v3588
      %v3591 = vmul.f32 %v3492, %v3588
      %v3592 = vmul.f32 %v3494, %v3588
      %v3593 = vmul.f32 %v3496, %v3588
      %v3594 = vmul.f32 %v3498, %v3588
      %v3595 = vmul.f32 %v3500, %v3588
      %v3596 = vmul.f32 %v3502, %v3588
      %v3597 = vmul.f32 %v3504, %v3588
      %v3598 = vmul.f32 %v3506, %v3588
      %v3599 = vmul.f32 %v3508, %v3588
      %v3600 = vmul.f32 %v3510, %v3588
      %v3601 = vmul.f32 %v3512, %v3588
      %v3602 = vmul.f32 %v3514, %v3588
      %v3603 = vmul.f32 %v3516, %v3588
      %v3604 = vmul.f32 %v3518, %v3588
      %v3605 = vmul.f32 %v3520, %v3588
      %v3606 = vmul.f32 %v3522, %v3588
      %v3607 = vmul.f32 %v3524, %v3588
      %v3608 = vmul.f32 %v3526, %v3588
      %v3609 = vmul.f32 %v3528, %v3588
      %v3610 = vmul.f32 %v3530, %v3588
      %v3611 = vmul.f32 %v3532, %v3588
      %v3612 = vmul.f32 %v3534, %v3588
      %v3613 = vmul.f32 %v3536, %v3588
      %v3614 = vmul.f32 %v3538, %v3588
      %v3615 = vmul.f32 %v3540, %v3588
      %v3616 = vmul.f32 %v3542, %v3588
      %v3617 = vmul.f32 %v3544, %v3588
      %v3618 = vmul.f32 %v3546, %v3588
      %v3619 = vmul.f32 %v3548, %v3588
      %v3620 = vmul.f32 %v3550, %v3588
      %v3621 = vpack.c.bf16 %v3590, %v3589
      %v3622 = vpack.c.bf16 %v3592, %v3591
      %v3623 = vpack.c.bf16 %v3594, %v3593
      %v3624 = vpack.c.bf16 %v3596, %v3595
      %v3625 = vpack.c.bf16 %v3598, %v3597
      %v3626 = vpack.c.bf16 %v3600, %v3599
      %v3627 = vpack.c.bf16 %v3602, %v3601
      %v3628 = vpack.c.bf16 %v3604, %v3603
      %v3629 = vpack.c.bf16 %v3606, %v3605
      %v3630 = vpack.c.bf16 %v3608, %v3607
      %v3631 = vpack.c.bf16 %v3610, %v3609
      %v3632 = vpack.c.bf16 %v3612, %v3611
      %v3633 = vpack.c.bf16 %v3614, %v3613
      %v3634 = vpack.c.bf16 %v3616, %v3615
      %v3635 = vpack.c.bf16 %v3618, %v3617
      %v3636 = vpack.c.bf16 %v3620, %v3619
      %v3638 = vunpack.c.h.b16 %v2372
      %v3639 = vpack.c.b16 %v3638, %v3638
      %v3641 = vsel %vm2504, %v3639, 0
      %3643 = vmatpush.bf16.msra.mxu0 0
      %3644 = vmatpush.bf16.msra.mxu0 0
      %3645 = vmatpush.bf16.msra.mxu0 0
      %3646 = vmatpush.bf16.msra.mxu0 0
      %3647 = vmatpush.bf16.msra.mxu0 0
      %3648 = vmatpush.bf16.msra.mxu0 0
      %3649 = vmatpush.bf16.msra.mxu0 0
      %3650 = vmatpush.bf16.msra.mxu0 %v3641
      %3651 = vmatmul.bf16.gmra.mxu0 %v2849
      %v3652 = vpop.f32.mrf.mxu0
      %v3653 = vadd.f32 0.0, %v3652
      %v3654 = vpop.f32.mrf.mxu0
      %v3655 = vadd.f32 0.0, %v3654
      %3656 = vmatmul.bf16.gmra.mxu0 %v2852
      %v3657 = vpop.f32.mrf.mxu0
      %v3658 = vadd.f32 0.0, %v3657
      %v3659 = vpop.f32.mrf.mxu0
      %v3660 = vadd.f32 0.0, %v3659
      %3661 = vmatmul.bf16.gmra.mxu0 %v2855
      %v3662 = vpop.f32.mrf.mxu0
      %v3663 = vadd.f32 0.0, %v3662
      %v3664 = vpop.f32.mrf.mxu0
      %v3665 = vadd.f32 0.0, %v3664
      %3666 = vmatmul.bf16.gmra.mxu0 %v2858
      %v3667 = vpop.f32.mrf.mxu0
      %v3668 = vadd.f32 0.0, %v3667
      %v3669 = vpop.f32.mrf.mxu0
      %v3670 = vadd.f32 0.0, %v3669
      %3671 = vmatmul.bf16.gmra.mxu0 %v2861
      %v3672 = vpop.f32.mrf.mxu0
      %v3673 = vadd.f32 0.0, %v3672
      %v3674 = vpop.f32.mrf.mxu0
      %v3675 = vadd.f32 0.0, %v3674
      %3676 = vmatmul.bf16.gmra.mxu0 %v2864
      %v3677 = vpop.f32.mrf.mxu0
      %v3678 = vadd.f32 0.0, %v3677
      %v3679 = vpop.f32.mrf.mxu0
      %v3680 = vadd.f32 0.0, %v3679
      %3681 = vmatmul.bf16.gmra.mxu0 %v2867
      %v3682 = vpop.f32.mrf.mxu0
      %v3683 = vadd.f32 0.0, %v3682
      %v3684 = vpop.f32.mrf.mxu0
      %v3685 = vadd.f32 0.0, %v3684
      %3686 = vmatmul.bf16.gmra.mxu0 %v2870
      %v3687 = vpop.f32.mrf.mxu0
      %v3688 = vadd.f32 0.0, %v3687
      %v3689 = vpop.f32.mrf.mxu0
      %v3690 = vadd.f32 0.0, %v3689
      %3691 = vmatmul.bf16.gmra.mxu0 %v2873
      %v3692 = vpop.f32.mrf.mxu0
      %v3693 = vadd.f32 0.0, %v3692
      %v3694 = vpop.f32.mrf.mxu0
      %v3695 = vadd.f32 0.0, %v3694
      %3696 = vmatmul.bf16.gmra.mxu0 %v2876
      %v3697 = vpop.f32.mrf.mxu0
      %v3698 = vadd.f32 0.0, %v3697
      %v3699 = vpop.f32.mrf.mxu0
      %v3700 = vadd.f32 0.0, %v3699
      %3701 = vmatmul.bf16.gmra.mxu0 %v2879
      %v3702 = vpop.f32.mrf.mxu0
      %v3703 = vadd.f32 0.0, %v3702
      %v3704 = vpop.f32.mrf.mxu0
      %v3705 = vadd.f32 0.0, %v3704
      %3706 = vmatmul.bf16.gmra.mxu0 %v2882
      %v3707 = vpop.f32.mrf.mxu0
      %v3708 = vadd.f32 0.0, %v3707
      %v3709 = vpop.f32.mrf.mxu0
      %v3710 = vadd.f32 0.0, %v3709
      %3711 = vmatmul.bf16.gmra.mxu0 %v2885
      %v3712 = vpop.f32.mrf.mxu0
      %v3713 = vadd.f32 0.0, %v3712
      %v3714 = vpop.f32.mrf.mxu0
      %v3715 = vadd.f32 0.0, %v3714
      %3716 = vmatmul.bf16.gmra.mxu0 %v2888
      %v3717 = vpop.f32.mrf.mxu0
      %v3718 = vadd.f32 0.0, %v3717
      %v3719 = vpop.f32.mrf.mxu0
      %v3720 = vadd.f32 0.0, %v3719
      %3721 = vmatmul.bf16.gmra.mxu0 %v2891
      %v3722 = vpop.f32.mrf.mxu0
      %v3723 = vadd.f32 0.0, %v3722
      %v3724 = vpop.f32.mrf.mxu0
      %v3725 = vadd.f32 0.0, %v3724
      %3726 = vmatmul.bf16.gmra.mxu0 %v2894
      %v3727 = vpop.f32.mrf.mxu0
      %v3728 = vadd.f32 0.0, %v3727
      %v3729 = vpop.f32.mrf.mxu0
      %v3730 = vadd.f32 0.0, %v3729
      %3731 = vdwg.mxu0
      %v3732 = vmul.f32 %v3653, 0.5
      %v3733 = vmul.f32 %v3655, 0.5
      %v3734 = vmul.f32 %v3658, 0.5
      %v3735 = vmul.f32 %v3660, 0.5
      %v3736 = vmul.f32 %v3663, 0.5
      %v3737 = vmul.f32 %v3665, 0.5
      %v3738 = vmul.f32 %v3668, 0.5
      %v3739 = vmul.f32 %v3670, 0.5
      %v3740 = vmul.f32 %v3673, 0.5
      %v3741 = vmul.f32 %v3675, 0.5
      %v3742 = vmul.f32 %v3678, 0.5
      %v3743 = vmul.f32 %v3680, 0.5
      %v3744 = vmul.f32 %v3683, 0.5
      %v3745 = vmul.f32 %v3685, 0.5
      %v3746 = vmul.f32 %v3688, 0.5
      %v3747 = vmul.f32 %v3690, 0.5
      %v3748 = vmul.f32 %v3693, 0.5
      %v3749 = vmul.f32 %v3695, 0.5
      %v3750 = vmul.f32 %v3698, 0.5
      %v3751 = vmul.f32 %v3700, 0.5
      %v3752 = vmul.f32 %v3703, 0.5
      %v3753 = vmul.f32 %v3705, 0.5
      %v3754 = vmul.f32 %v3708, 0.5
      %v3755 = vmul.f32 %v3710, 0.5
      %v3756 = vmul.f32 %v3713, 0.5
      %v3757 = vmul.f32 %v3715, 0.5
      %v3758 = vmul.f32 %v3718, 0.5
      %v3759 = vmul.f32 %v3720, 0.5
      %v3760 = vmul.f32 %v3723, 0.5
      %v3761 = vmul.f32 %v3725, 0.5
      %v3762 = vmul.f32 %v3728, 0.5
      %v3763 = vmul.f32 %v3730, 0.5
      %v3764 = vmax.f32 %v3732, %v3736
      %v3765 = vmax.f32 %v3733, %v3737
      %v3766 = vmax.f32 %v3734, %v3738
      %v3767 = vmax.f32 %v3735, %v3739
      %v3768 = vmax.f32 %v3764, %v3740
      %v3769 = vmax.f32 %v3765, %v3741
      %v3770 = vmax.f32 %v3766, %v3742
      %v3771 = vmax.f32 %v3767, %v3743
      %v3772 = vmax.f32 %v3768, %v3744
      %v3773 = vmax.f32 %v3769, %v3745
      %v3774 = vmax.f32 %v3770, %v3746
      %v3775 = vmax.f32 %v3771, %v3747
      %v3776 = vmax.f32 %v3772, %v3748
      %v3777 = vmax.f32 %v3773, %v3749
      %v3778 = vmax.f32 %v3774, %v3750
      %v3779 = vmax.f32 %v3775, %v3751
      %v3780 = vmax.f32 %v3776, %v3752
      %v3781 = vmax.f32 %v3777, %v3753
      %v3782 = vmax.f32 %v3778, %v3754
      %v3783 = vmax.f32 %v3779, %v3755
      %v3784 = vmax.f32 %v3780, %v3756
      %v3785 = vmax.f32 %v3781, %v3757
      %v3786 = vmax.f32 %v3782, %v3758
      %v3787 = vmax.f32 %v3783, %v3759
      %v3788 = vmax.f32 %v3784, %v3760
      %v3789 = vmax.f32 %v3785, %v3761
      %v3790 = vmax.f32 %v3786, %v3762
      %v3791 = vmax.f32 %v3787, %v3763
      %v3792 = vmax.f32 %v3788, %v3789
      %v3793 = vmax.f32 %v3790, %v3791
      %v3794 = vmax.f32 %v3792, %v3793
      %v3795 = vrot.slane %v3794, 4
      %v3796 = vmax.f32 %v3794, %v3795
      %v3797 = vrot.slane %v3796, 2
      %v3798 = vmax.f32 %v3796, %v3797
      %v3799 = vrot.slane %v3798, 1
      %v3800 = vmax.f32 %v3798, %v3799
      %v3801 = vsub.f32 %v3732, %v3800
      %v3802 = vsub.f32 %v3733, %v3800
      %v3803 = vsub.f32 %v3734, %v3800
      %v3804 = vsub.f32 %v3735, %v3800
      %v3805 = vsub.f32 %v3736, %v3800
      %v3806 = vsub.f32 %v3737, %v3800
      %v3807 = vsub.f32 %v3738, %v3800
      %v3808 = vsub.f32 %v3739, %v3800
      %v3809 = vsub.f32 %v3740, %v3800
      %v3810 = vsub.f32 %v3741, %v3800
      %v3811 = vsub.f32 %v3742, %v3800
      %v3812 = vsub.f32 %v3743, %v3800
      %v3813 = vsub.f32 %v3744, %v3800
      %v3814 = vsub.f32 %v3745, %v3800
      %v3815 = vsub.f32 %v3746, %v3800
      %v3816 = vsub.f32 %v3747, %v3800
      %v3817 = vsub.f32 %v3748, %v3800
      %v3818 = vsub.f32 %v3749, %v3800
      %v3819 = vsub.f32 %v3750, %v3800
      %v3820 = vsub.f32 %v3751, %v3800
      %v3821 = vsub.f32 %v3752, %v3800
      %v3822 = vsub.f32 %v3753, %v3800
      %v3823 = vsub.f32 %v3754, %v3800
      %v3824 = vsub.f32 %v3755, %v3800
      %v3825 = vsub.f32 %v3756, %v3800
      %v3826 = vsub.f32 %v3757, %v3800
      %v3827 = vsub.f32 %v3758, %v3800
      %v3828 = vsub.f32 %v3759, %v3800
      %v3829 = vsub.f32 %v3760, %v3800
      %v3830 = vsub.f32 %v3761, %v3800
      %v3831 = vsub.f32 %v3762, %v3800
      %v3832 = vsub.f32 %v3763, %v3800
      %v3833 = vmul.f32 %v3801, 1.442695
      %v3834 = vpow.pop %v3833
      %v3835 = vmul.f32 %v3802, 1.442695
      %v3836 = vpow.pop %v3835
      %v3837 = vmul.f32 %v3803, 1.442695
      %v3838 = vpow.pop %v3837
      %v3839 = vmul.f32 %v3804, 1.442695
      %v3840 = vpow.pop %v3839
      %v3841 = vmul.f32 %v3805, 1.442695
      %v3842 = vpow.pop %v3841
      %v3843 = vmul.f32 %v3806, 1.442695
      %v3844 = vpow.pop %v3843
      %v3845 = vmul.f32 %v3807, 1.442695
      %v3846 = vpow.pop %v3845
      %v3847 = vmul.f32 %v3808, 1.442695
      %v3848 = vpow.pop %v3847
      %v3849 = vmul.f32 %v3809, 1.442695
      %v3850 = vpow.pop %v3849
      %v3851 = vmul.f32 %v3810, 1.442695
      %v3852 = vpow.pop %v3851
      %v3853 = vmul.f32 %v3811, 1.442695
      %v3854 = vpow.pop %v3853
      %v3855 = vmul.f32 %v3812, 1.442695
      %v3856 = vpow.pop %v3855
      %v3857 = vmul.f32 %v3813, 1.442695
      %v3858 = vpow.pop %v3857
      %v3859 = vmul.f32 %v3814, 1.442695
      %v3860 = vpow.pop %v3859
      %v3861 = vmul.f32 %v3815, 1.442695
      %v3862 = vpow.pop %v3861
      %v3863 = vmul.f32 %v3816, 1.442695
      %v3864 = vpow.pop %v3863
      %v3865 = vmul.f32 %v3817, 1.442695
      %v3866 = vpow.pop %v3865
      %v3867 = vmul.f32 %v3818, 1.442695
      %v3868 = vpow.pop %v3867
      %v3869 = vmul.f32 %v3819, 1.442695
      %v3870 = vpow.pop %v3869
      %v3871 = vmul.f32 %v3820, 1.442695
      %v3872 = vpow.pop %v3871
      %v3873 = vmul.f32 %v3821, 1.442695
      %v3874 = vpow.pop %v3873
      %v3875 = vmul.f32 %v3822, 1.442695
      %v3876 = vpow.pop %v3875
      %v3877 = vmul.f32 %v3823, 1.442695
      %v3878 = vpow.pop %v3877
      %v3879 = vmul.f32 %v3824, 1.442695
      %v3880 = vpow.pop %v3879
      %v3881 = vmul.f32 %v3825, 1.442695
      %v3882 = vpow.pop %v3881
      %v3883 = vmul.f32 %v3826, 1.442695
      %v3884 = vpow.pop %v3883
      %v3885 = vmul.f32 %v3827, 1.442695
      %v3886 = vpow.pop %v3885
      %v3887 = vmul.f32 %v3828, 1.442695
      %v3888 = vpow.pop %v3887
      %v3889 = vmul.f32 %v3829, 1.442695
      %v3890 = vpow.pop %v3889
      %v3891 = vmul.f32 %v3830, 1.442695
      %v3892 = vpow.pop %v3891
      %v3893 = vmul.f32 %v3831, 1.442695
      %v3894 = vpow.pop %v3893
      %v3895 = vmul.f32 %v3832, 1.442695
      %v3896 = vpow.pop %v3895
      %v3897 = vadd.f32 %v3834, %v3836
      %v3898 = vadd.f32 %v3897, %v3838
      %v3899 = vadd.f32 %v3898, %v3840
      %v3900 = vadd.f32 %v3899, %v3842
      %v3901 = vadd.f32 %v3900, %v3844
      %v3902 = vadd.f32 %v3901, %v3846
      %v3903 = vadd.f32 %v3902, %v3848
      %v3904 = vadd.f32 %v3903, %v3850
      %v3905 = vadd.f32 %v3904, %v3852
      %v3906 = vadd.f32 %v3905, %v3854
      %v3907 = vadd.f32 %v3906, %v3856
      %v3908 = vadd.f32 %v3907, %v3858
      %v3909 = vadd.f32 %v3908, %v3860
      %v3910 = vadd.f32 %v3909, %v3862
      %v3911 = vadd.f32 %v3910, %v3864
      %v3912 = vadd.f32 %v3911, %v3866
      %v3913 = vadd.f32 %v3912, %v3868
      %v3914 = vadd.f32 %v3913, %v3870
      %v3915 = vadd.f32 %v3914, %v3872
      %v3916 = vadd.f32 %v3915, %v3874
      %v3917 = vadd.f32 %v3916, %v3876
      %v3918 = vadd.f32 %v3917, %v3878
      %v3919 = vadd.f32 %v3918, %v3880
      %v3920 = vadd.f32 %v3919, %v3882
      %v3921 = vadd.f32 %v3920, %v3884
      %v3922 = vadd.f32 %v3921, %v3886
      %v3923 = vadd.f32 %v3922, %v3888
      %v3924 = vadd.f32 %v3923, %v3890
      %v3925 = vadd.f32 %v3924, %v3892
      %v3926 = vadd.f32 %v3925, %v3894
      %v3927 = vadd.f32 %v3926, %v3896
      %v3928 = vrot.slane %v3927, 4
      %v3929 = vadd.f32 %v3927, %v3928
      %v3930 = vrot.slane %v3929, 2
      %v3931 = vadd.f32 %v3929, %v3930
      %v3932 = vrot.slane %v3931, 1
      %v3933 = vadd.f32 %v3931, %v3932
      %v3934 = vrcp.pop %v3933
      %v3935 = vmul.f32 %v3834, %v3934
      %v3936 = vmul.f32 %v3836, %v3934
      %v3937 = vmul.f32 %v3838, %v3934
      %v3938 = vmul.f32 %v3840, %v3934
      %v3939 = vmul.f32 %v3842, %v3934
      %v3940 = vmul.f32 %v3844, %v3934
      %v3941 = vmul.f32 %v3846, %v3934
      %v3942 = vmul.f32 %v3848, %v3934
      %v3943 = vmul.f32 %v3850, %v3934
      %v3944 = vmul.f32 %v3852, %v3934
      %v3945 = vmul.f32 %v3854, %v3934
      %v3946 = vmul.f32 %v3856, %v3934
      %v3947 = vmul.f32 %v3858, %v3934
      %v3948 = vmul.f32 %v3860, %v3934
      %v3949 = vmul.f32 %v3862, %v3934
      %v3950 = vmul.f32 %v3864, %v3934
      %v3951 = vmul.f32 %v3866, %v3934
      %v3952 = vmul.f32 %v3868, %v3934
      %v3953 = vmul.f32 %v3870, %v3934
      %v3954 = vmul.f32 %v3872, %v3934
      %v3955 = vmul.f32 %v3874, %v3934
      %v3956 = vmul.f32 %v3876, %v3934
      %v3957 = vmul.f32 %v3878, %v3934
      %v3958 = vmul.f32 %v3880, %v3934
      %v3959 = vmul.f32 %v3882, %v3934
      %v3960 = vmul.f32 %v3884, %v3934
      %v3961 = vmul.f32 %v3886, %v3934
      %v3962 = vmul.f32 %v3888, %v3934
      %v3963 = vmul.f32 %v3890, %v3934
      %v3964 = vmul.f32 %v3892, %v3934
      %v3965 = vmul.f32 %v3894, %v3934
      %v3966 = vmul.f32 %v3896, %v3934
      %v3967 = vpack.c.bf16 %v3936, %v3935
      %v3968 = vpack.c.bf16 %v3938, %v3937
      %v3969 = vpack.c.bf16 %v3940, %v3939
      %v3970 = vpack.c.bf16 %v3942, %v3941
      %v3971 = vpack.c.bf16 %v3944, %v3943
      %v3972 = vpack.c.bf16 %v3946, %v3945
      %v3973 = vpack.c.bf16 %v3948, %v3947
      %v3974 = vpack.c.bf16 %v3950, %v3949
      %v3975 = vpack.c.bf16 %v3952, %v3951
      %v3976 = vpack.c.bf16 %v3954, %v3953
      %v3977 = vpack.c.bf16 %v3956, %v3955
      %v3978 = vpack.c.bf16 %v3958, %v3957
      %v3979 = vpack.c.bf16 %v3960, %v3959
      %v3980 = vpack.c.bf16 %v3962, %v3961
      %v3981 = vpack.c.bf16 %v3964, %v3963
      %v3982 = vpack.c.bf16 %v3966, %v3965
      %3983 = vmatpush.bf16.msra.mxu0 %v3974
      %3984 = vmatpush.bf16.msra.mxu0 %v3973
      %3985 = vmatpush.bf16.msra.mxu0 %v3972
      %3986 = vmatpush.bf16.msra.mxu0 %v3971
      %3987 = vmatpush.bf16.msra.mxu0 %v3970
      %3988 = vmatpush.bf16.msra.mxu0 %v3969
      %3989 = vmatpush.bf16.msra.mxu0 %v3968
      %3990 = vmatpush.bf16.msra.mxu0 %v3967
      %3991 = vmatmul.bf16.gmra.mxu0 %v2453
      %v3992 = vpop.f32.mrf.mxu0
      %v3993 = vadd.f32 0.0, %v3992
      %v3994 = vpop.f32.mrf.mxu0
      %3995 = vdwg.mxu0
      %3996 = vmatpush.bf16.msra.mxu0 %v3982
      %3997 = vmatpush.bf16.msra.mxu0 %v3981
      %3998 = vmatpush.bf16.msra.mxu0 %v3980
      %3999 = vmatpush.bf16.msra.mxu0 %v3979
      %4000 = vmatpush.bf16.msra.mxu0 %v3978
      %4001 = vmatpush.bf16.msra.mxu0 %v3977
      %4002 = vmatpush.bf16.msra.mxu0 %v3976
      %4003 = vmatpush.bf16.msra.mxu0 %v3975
      %4004 = vmatmul.bf16.gmra.mxu0 %v2454
      %v4005 = vpop.f32.mrf.mxu0
      %v4006 = vadd.f32 %v3993, %v4005
      %v4007 = vpop.f32.mrf.mxu0
      %4008 = vdwg.mxu0
      %4009 = vmatpush.bf16.msra.mxu0 %v3628
      %4010 = vmatpush.bf16.msra.mxu0 %v3627
      %4011 = vmatpush.bf16.msra.mxu0 %v3626
      %4012 = vmatpush.bf16.msra.mxu0 %v3625
      %4013 = vmatpush.bf16.msra.mxu0 %v3624
      %4014 = vmatpush.bf16.msra.mxu0 %v3623
      %4015 = vmatpush.bf16.msra.mxu0 %v3622
      %4016 = vmatpush.bf16.msra.mxu0 %v3621
      %4017 = vmatmul.bf16.gmra.mxu0 %v2256
      %v4018 = vpop.f32.mrf.mxu0
      %v4019 = vadd.f32 %v4006, %v4018
      %v4020 = vpop.f32.mrf.mxu0
      %4021 = vdwg.mxu0
      %4022 = vmatpush.bf16.msra.mxu0 %v3636
      %4023 = vmatpush.bf16.msra.mxu0 %v3635
      %4024 = vmatpush.bf16.msra.mxu0 %v3634
      %4025 = vmatpush.bf16.msra.mxu0 %v3633
      %4026 = vmatpush.bf16.msra.mxu0 %v3632
      %4027 = vmatpush.bf16.msra.mxu0 %v3631
      %4028 = vmatpush.bf16.msra.mxu0 %v3630
      %4029 = vmatpush.bf16.msra.mxu0 %v3629
      %4030 = vmatmul.bf16.gmra.mxu0 %v2257
      %v4031 = vpop.f32.mrf.mxu0
      %v4032 = vadd.f32 %v4019, %v4031
      %v4033 = vpop.f32.mrf.mxu0
      %4034 = vdwg.mxu0
      %v4035 = vadd.f32 %v1858, %v3288
      %v4036 = vadd.f32 %v1859, %v4032
      %v4037 = vld [vmem:[%s24] sm:$0xff]
      %4039 = vset.pattern.permute.xlu0 0
      %4040 = vperm.xlu0 %4039, %v4037
      %v4041 = vpop.permute.xlu0 %4040
      %v4043 = vadd.f32 %v4035, %v4041
      %v4044 = vadd.f32 %v4036, %v4041
      %4045 = vst [vmem:[%s801] sm:$0xff] %v4043
      %4046 = vst [vmem:[%s801 + $0x8] sm:$0xff] %v4044
      %p4047 = scmp.lt.s32.totalorder %s36, 1
      %s4048 = scalar_select %p4047, %s36, 1
      %s4049 = smul.addr %s4048, 2
      %s4050 = smul.addr %s4049, 8
      %s4051 = scalar_lea.vmem %s25, %s4050
      // Predicated region
      $region121: #{upblock_forward.1} parent=119 // pred_check
        %p4052 = pneg %p594
      $region122: #{upblock_forward.1} parent=119 // pred_check_branch
        %4054 = sbr.rel (%p4052) target = $region124
      $region123: #{upblock_forward.1} parent=119 // pred_region
        _
      $region124: #{upblock_forward.1} parent=119 // pred_fallthru
        _
    $region120: #{upblock_forward.1} parent=5 // pred_fallthru
      _
    %p4055 = scmp.le.s32.totalorder 2, %s31
    // Predicated region
    $region125: #{upblock_forward.1} parent=5 // pred_check
      %p4056 = pneg %p4055
    $region126: #{upblock_forward.1} parent=5 // pred_check_branch
      %4058 = sbr.rel (%p4056) target = $region128
    $region127: #{upblock_forward.1} parent=5 // pred_region
      %s4059 = ssub.s32 %s31, 2
      // Predicated region
      $region129: #{upblock_forward.1} parent=127 // pred_check
        %p4060 = pneg %p600
      $region130: #{upblock_forward.1} parent=127 // pred_check_branch
        %4062 = sbr.rel (%p4060) target = $region132
      $region131: #{upblock_forward.1} parent=127 // pred_region
        %p4063 = scmp.lt.s32.totalorder %s37, 1
        %s4064 = scalar_select %p4063, %s37, 1
        %s4065 = smul.addr %s4064, 2
        %s4066 = smul.addr %s4065, 8
        %s4067 = scalar_lea.vmem %s25, %s4066
      $region132: #{upblock_forward.1} parent=127 // pred_fallthru
        _
    $region128: #{upblock_forward.1} parent=5 // pred_fallthru
      _
  $region6: #{upblock_forward.1} parent=0 // loop_footer
    %s35 = sadd.s32 1, %s31
  $region7: #{upblock_forward.1} parent=0 // loop_footer_branch
    %30 = sbr.rel target = $region3
  $region8: #{upblock_forward.1} parent=0 // loop_exit
    _

</llo_original>
